<compile_context>
chip_gen: v5e
topology: v5e:2x2
jax: 0.10.0
libtpu: 0.0.40
codegen_flags: <defaults>
</compile_context>

<pallas_src>
import functools

import jax
import jax.numpy as jnp
from jax.experimental import pallas as pl
from jax.experimental.pallas import tpu as pltpu


# ----------------------------- fused Pallas kernel -------------------------- #
def _fused_net_kernel(x_ref, s0w_ref, s0b_ref, bw_ref, bb_ref, fw_ref, fb_ref,
                      mid_ref, out_ref, *, num_search, mid_body_idx):
    """Runs the whole dropped-network block chain on one row-tile.

    x_ref is a (tm, Cin) rows-by-channels tile.  Every 1x1 conv is a channel
    matmul on the MXU; intermediate activations stay in VMEM/vregs (no HBM
    round trips between blocks).
    """
    # stem0: conv1x1 + bias + ReLU
    h = jnp.dot(x_ref[...], s0w_ref[...], preferred_element_type=jnp.float32)
    h = jnp.maximum(h + s0b_ref[...], 0.0)

    # body index 0 = stem1: conv1x1 + bias + ReLU (no residual)
    h = jnp.dot(h, bw_ref[0], preferred_element_type=jnp.float32)
    h = jnp.maximum(h + bb_ref[0], 0.0)

    # searchable blocks (only the dropped/selected op): conv1x1 + ReLU + residual.
    # Residual is added AFTER the ReLU, matching the previous per-block impl.
    for j in range(1, 1 + num_search):
        y = jnp.dot(h, bw_ref[j], preferred_element_type=jnp.float32)
        h = jnp.maximum(y + bb_ref[j], 0.0) + h
        if j == mid_body_idx:
            # intermediate output collected at output_indices[0] (blocks[3])
            mid_ref[...] = h.astype(mid_ref.dtype)

    # final projection: conv1x1 + bias, no ReLU
    out = jnp.dot(h, fw_ref[...], preferred_element_type=jnp.float32)
    out_ref[...] = (out + fb_ref[...]).astype(out_ref.dtype)


def _choose_row_tile(m, cap=2048):
    """Single grid step when the whole row set fits; otherwise tile rows."""
    if m <= cap:
        return m
    for t in range(cap - (cap % 8), 7, -8):
        if m % t == 0:
            return t
    return m  # fallback: full-extent block (still legal: block == full dims)


def fused_dropped_net(x_nchw, s0w, s0b, bw, bb, fw, fb, *,
                      num_search, mid_body_idx):
    """Whole network forward (except sub-objective glue) in one pallas_call."""
    N, Cin, H, W = x_nchw.shape
    width = bw.shape[-1]
    out_ch = fw.shape[-1]
    M = N * H * W

    # single layout change at the entry: NCHW -> (rows, channels)
    x2d = jnp.transpose(x_nchw, (0, 2, 3, 1)).reshape(M, Cin)

    tm = _choose_row_tile(M)
    grid = (M // tm,)

    kernel = functools.partial(_fused_net_kernel,
                               num_search=num_search,
                               mid_body_idx=mid_body_idx)

    mid2d, out2d = pl.pallas_call(
        kernel,
        out_shape=(jax.ShapeDtypeStruct((M, width), x2d.dtype),
                   jax.ShapeDtypeStruct((M, out_ch), x2d.dtype)),
        grid_spec=pltpu.PrefetchScalarGridSpec(
            num_scalar_prefetch=0,
            grid=grid,
            in_specs=[
                pl.BlockSpec((tm, Cin), lambda i: (i, 0)),      # activation rows
                pl.BlockSpec(s0w.shape, lambda i: (0, 0)),      # stem0 weight (resident)
                pl.BlockSpec(s0b.shape, lambda i: (0, 0)),      # stem0 bias
                pl.BlockSpec(bw.shape, lambda i: (0, 0, 0)),    # body weight stack
                pl.BlockSpec(bb.shape, lambda i: (0, 0, 0)),    # body bias stack
                pl.BlockSpec(fw.shape, lambda i: (0, 0)),       # final weight
                pl.BlockSpec(fb.shape, lambda i: (0, 0)),       # final bias
            ],
            out_specs=[
                pl.BlockSpec((tm, width), lambda i: (i, 0)),
                pl.BlockSpec((tm, out_ch), lambda i: (i, 0)),
            ],
        ),
        compiler_params=pltpu.CompilerParams(
            dimension_semantics=("parallel",)),
    )(x2d, s0w, s0b, bw, bb, fw, fb)

    # one layout change per collected output: rows -> NCHW
    mid = jnp.transpose(mid2d.reshape(N, H, W, width), (0, 3, 1, 2))
    out = jnp.transpose(out2d.reshape(N, H, W, out_ch), (0, 3, 1, 2))
    return mid, out


def _forward_impl(x, s0w, s0b, bw, bb, fw, fb, alphas_normal, sub_obj_list,
                  *, num_search, mid_body_idx):
    mid, out = fused_dropped_net(x, s0w, s0b, bw, bb, fw, fb,
                                 num_search=num_search,
                                 mid_body_idx=mid_body_idx)
    # Vectorized version of the per-block "softmax(alpha) . sub_obj" accumulation.
    net_sub_obj = jnp.sum(
        jax.nn.softmax(alphas_normal, axis=-1) * sub_obj_list)
    return (mid, out), net_sub_obj


# --------------------------- dropped network wrapper ------------------------ #
class YolofDroppedNetworkPallas:
    """JAX/Pallas realization of Yolof_Dropped_Network.

    blocks[0], blocks[1]          : stem (conv1x1 + ReLU)
    blocks[2 .. 2+num_search-1]   : searchable blocks; only the op selected by
                                    alpha_index is kept (conv1x1 + ReLU +
                                    residual); block_sub_obj =
                                    softmax(alphas_normal[i]) . sub_obj_list[i]
    blocks[-1]                    : final projection conv1x1 (no ReLU)
    """

    def __init__(self, key, in_ch=4, width=32, out_ch=64,
                 num_search_blocks=4, num_ops=3):
        self.num_search_blocks = num_search_blocks
        self.num_ops = num_ops
        # outputs collected after block index 3 (search block i=1) and after
        # the final block (index 2 + num_search_blocks)
        self.output_indices = (3, 2 + num_search_blocks)

        keys = jax.random.split(key, 4 + num_search_blocks)

        def winit(k, cin, cout):
            scale = 1.0 / jnp.sqrt(jnp.float32(cin))
            return (jax.random.normal(k, (cin, cout), jnp.float32) * scale,
                    jnp.zeros((cout,), jnp.float32))

        # stem
        self.stem0_w, self.stem0_b = winit(keys[0], in_ch, width)
        self.stem1_w, self.stem1_b = winit(keys[1], width, width)
        # final block
        self.final_w, self.final_b = winit(keys[2], width, out_ch)

        # searchable candidate ops + architecture parameters
        self.ops_w, self.ops_b = [], []
        for i in range(num_search_blocks):
            opk = jax.random.split(keys[3 + i], num_ops)
            ws, bs = [], []
            for j in range(num_ops):
                w, b = winit(opk[j], width, width)
                ws.append(w)
                bs.append(b)
            self.ops_w.append(ws)
            self.ops_b.append(bs)

        ak = jax.random.split(keys[3 + num_search_blocks], 3)
        self.alphas_normal = jax.random.normal(
            ak[0], (num_search_blocks, num_ops), jnp.float32)
        self.alphas_reduce = jax.random.normal(
            ak[1], (num_search_blocks, num_ops), jnp.float32)
        # TODO(synk): alphas_reduce is carried like in the reference API, but
        # this synthetic block realization only consumes alphas_normal for the
        # sub-objective (super_model block internals are unspecified).
        self.sub_obj_list = jnp.abs(
            jax.random.normal(ak[2], (num_search_blocks, num_ops), jnp.float32))
        # discrete (dropped) choice per block -- static Python ints
        self.alpha_index = [int(j) for j in
                            jax.device_get(jnp.argmax(self.alphas_normal, -1))]

        # ---- pack the discretized network for the fused kernel ----
        # body stack = [stem1] + [selected op of each search block]
        body_w = [self.stem1_w] + [self.ops_w[i][self.alpha_index[i]]
                                   for i in range(num_search_blocks)]
        body_b = [self.stem1_b] + [self.ops_b[i][self.alpha_index[i]]
                                   for i in range(num_search_blocks)]
        self.body_w = jnp.stack(body_w)                         # (1+nsb, w, w)
        self.body_b = jnp.stack(body_b).reshape(-1, 1, width)   # (1+nsb, 1, w)
        self.stem0_b2 = self.stem0_b.reshape(1, width)
        self.final_b2 = self.final_b.reshape(1, out_ch)

        # body-stack index at which the intermediate output is collected:
        # blocks[output_indices[0]] is search block (output_indices[0]-2),
        # which sits at body index (output_indices[0]-2)+1.
        self._mid_body_idx = self.output_indices[0] - 2 + 1

        self._forward = jax.jit(
            _forward_impl, static_argnames=("num_search", "mid_body_idx"))

    def __call__(self, inputs):
        return self._forward(
            inputs, self.stem0_w, self.stem0_b2,
            self.body_w, self.body_b,
            self.final_w, self.final_b2,
            self.alphas_normal, self.sub_obj_list,
            num_search=self.num_search_blocks,
            mid_body_idx=self._mid_body_idx)


# --------------------------------- main ------------------------------------- #
if __name__ == "__main__":
    key = jax.random.PRNGKey(0)
    pkey, xkey = jax.random.split(key)

    model = YolofDroppedNetworkPallas(pkey, in_ch=4, width=32, out_ch=64,
                                      num_search_blocks=4, num_ops=3)

    # NCHW input, matching the PyTorch convention.
    x = jax.random.normal(xkey, (2, 4, 16, 16), jnp.float32)

    outs, net_sub_obj = model(x)
    outs = jax.block_until_ready(outs)
    net_sub_obj = jax.block_until_ready(net_sub_obj)

    assert isinstance(outs, tuple) and len(outs) == 2
    assert outs[0].shape == (2, 32, 16, 16)
    assert outs[1].shape == (2, 64, 16, 16)
    assert net_sub_obj.shape == ()
    print("KERNEL_OK")
</pallas_src>

<mosaic_0001>
module attributes {stable_mosaic.version = 11 : i64} {
  func.func @_fused_net_kernel(%arg0: i32, %arg1: memref<512x4xf32, #tpu.memory_space<vmem>>, %arg2: memref<4x32xf32, #tpu.memory_space<vmem>>, %arg3: memref<1x32xf32, #tpu.memory_space<vmem>>, %arg4: memref<5x32x32xf32, #tpu.memory_space<vmem>>, %arg5: memref<5x1x32xf32, #tpu.memory_space<vmem>>, %arg6: memref<32x64xf32, #tpu.memory_space<vmem>>, %arg7: memref<1x64xf32, #tpu.memory_space<vmem>>, %arg8: memref<512x32xf32, #tpu.memory_space<vmem>>, %arg9: memref<512x64xf32, #tpu.memory_space<vmem>>) attributes {dimension_semantics = [#tpu.dimension_semantics<parallel>], iteration_bounds = array<i64: 1>, scalar_prefetch = 0 : i64, scratch_operands = 0 : i64, tpu.core_type = #tpu.core_type<tc>, window_params = [{transform_indices = @transform_0, window_bounds = array<i64: 512, 4>}, {pipeline_mode = #tpu.pipeline_mode<synchronous>, transform_indices = @transform_1, window_bounds = array<i64: 4, 32>}, {pipeline_mode = #tpu.pipeline_mode<synchronous>, transform_indices = @transform_2, window_bounds = array<i64: 1, 32>}, {pipeline_mode = #tpu.pipeline_mode<synchronous>, transform_indices = @transform_3, window_bounds = array<i64: 5, 32, 32>}, {pipeline_mode = #tpu.pipeline_mode<synchronous>, transform_indices = @transform_4, window_bounds = array<i64: 5, 1, 32>}, {pipeline_mode = #tpu.pipeline_mode<synchronous>, transform_indices = @transform_5, window_bounds = array<i64: 32, 64>}, {pipeline_mode = #tpu.pipeline_mode<synchronous>, transform_indices = @transform_6, window_bounds = array<i64: 1, 64>}, {transform_indices = @transform_7, window_bounds = array<i64: 512, 32>}, {transform_indices = @transform_8, window_bounds = array<i64: 512, 64>}]} {
    %c0 = arith.constant 0 : index
    %c0_0 = arith.constant 0 : index
    %0 = vector.load %arg1[%c0, %c0_0] : memref<512x4xf32, #tpu.memory_space<vmem>>, vector<512x4xf32>
    %c0_1 = arith.constant 0 : index
    %c0_2 = arith.constant 0 : index
    %1 = vector.load %arg2[%c0_1, %c0_2] : memref<4x32xf32, #tpu.memory_space<vmem>>, vector<4x32xf32>
    %cst = arith.constant dense<0.000000e+00> : vector<512x32xf32>
    %2 = tpu.matmul %0, %1, %cst {dimension_numbers = #tpu.dot_dimension_numbers<[1], [0], [0], [1], [0, 0, 1, 1], [], []>} : vector<512x4xf32>, vector<4x32xf32>, vector<512x32xf32> -> vector<512x32xf32>
    %c0_3 = arith.constant 0 : index
    %c0_4 = arith.constant 0 : index
    %3 = vector.load %arg3[%c0_3, %c0_4] : memref<1x32xf32, #tpu.memory_space<vmem>>, vector<1x32xf32>
    %4 = vector.broadcast %3 : vector<1x32xf32> to vector<512x32xf32>
    %5 = arith.addf %2, %4 : vector<512x32xf32>
    %cst_5 = arith.constant 0.000000e+00 : f32
    %6 = vector.broadcast %cst_5 : f32 to vector<512x32xf32>
    %7 = arith.maximumf %5, %6 : vector<512x32xf32>
    %c0_6 = arith.constant 0 : index
    %c0_7 = arith.constant 0 : index
    %c0_8 = arith.constant 0 : index
    %8 = vector.load %arg4[%c0_6, %c0_7, %c0_8] : memref<5x32x32xf32, #tpu.memory_space<vmem>>, vector<1x32x32xf32>
    %9 = vector.shape_cast %8 : vector<1x32x32xf32> to vector<32x32xf32>
    %cst_9 = arith.constant dense<0.000000e+00> : vector<512x32xf32>
    %10 = tpu.matmul %7, %9, %cst_9 {dimension_numbers = #tpu.dot_dimension_numbers<[1], [0], [0], [1], [0, 0, 1, 1], [], []>} : vector<512x32xf32>, vector<32x32xf32>, vector<512x32xf32> -> vector<512x32xf32>
    %c0_10 = arith.constant 0 : index
    %c0_11 = arith.constant 0 : index
    %c0_12 = arith.constant 0 : index
    %11 = vector.load %arg5[%c0_10, %c0_11, %c0_12] : memref<5x1x32xf32, #tpu.memory_space<vmem>>, vector<1x1x32xf32>
    %12 = vector.shape_cast %11 : vector<1x1x32xf32> to vector<1x32xf32>
    %13 = vector.broadcast %12 : vector<1x32xf32> to vector<512x32xf32>
    %14 = arith.addf %10, %13 : vector<512x32xf32>
    %cst_13 = arith.constant 0.000000e+00 : f32
    %15 = vector.broadcast %cst_13 : f32 to vector<512x32xf32>
    %16 = arith.maximumf %14, %15 : vector<512x32xf32>
    %c1 = arith.constant 1 : index
    %c0_14 = arith.constant 0 : index
    %c0_15 = arith.constant 0 : index
    %17 = vector.load %arg4[%c1, %c0_14, %c0_15] : memref<5x32x32xf32, #tpu.memory_space<vmem>>, vector<1x32x32xf32>
    %18 = vector.shape_cast %17 : vector<1x32x32xf32> to vector<32x32xf32>
    %cst_16 = arith.constant dense<0.000000e+00> : vector<512x32xf32>
    %19 = tpu.matmul %16, %18, %cst_16 {dimension_numbers = #tpu.dot_dimension_numbers<[1], [0], [0], [1], [0, 0, 1, 1], [], []>} : vector<512x32xf32>, vector<32x32xf32>, vector<512x32xf32> -> vector<512x32xf32>
    %c1_17 = arith.constant 1 : index
    %c0_18 = arith.constant 0 : index
    %c0_19 = arith.constant 0 : index
    %20 = vector.load %arg5[%c1_17, %c0_18, %c0_19] : memref<5x1x32xf32, #tpu.memory_space<vmem>>, vector<1x1x32xf32>
    %21 = vector.shape_cast %20 : vector<1x1x32xf32> to vector<1x32xf32>
    %22 = vector.broadcast %21 : vector<1x32xf32> to vector<512x32xf32>
    %23 = arith.addf %19, %22 : vector<512x32xf32>
    %cst_20 = arith.constant 0.000000e+00 : f32
    %24 = vector.broadcast %cst_20 : f32 to vector<512x32xf32>
    %25 = arith.maximumf %23, %24 : vector<512x32xf32>
    %26 = arith.addf %25, %16 : vector<512x32xf32>
    %c2 = arith.constant 2 : index
    %c0_21 = arith.constant 0 : index
    %c0_22 = arith.constant 0 : index
    %27 = vector.load %arg4[%c2, %c0_21, %c0_22] : memref<5x32x32xf32, #tpu.memory_space<vmem>>, vector<1x32x32xf32>
    %28 = vector.shape_cast %27 : vector<1x32x32xf32> to vector<32x32xf32>
    %cst_23 = arith.constant dense<0.000000e+00> : vector<512x32xf32>
    %29 = tpu.matmul %26, %28, %cst_23 {dimension_numbers = #tpu.dot_dimension_numbers<[1], [0], [0], [1], [0, 0, 1, 1], [], []>} : vector<512x32xf32>, vector<32x32xf32>, vector<512x32xf32> -> vector<512x32xf32>
    %c2_24 = arith.constant 2 : index
    %c0_25 = arith.constant 0 : index
    %c0_26 = arith.constant 0 : index
    %30 = vector.load %arg5[%c2_24, %c0_25, %c0_26] : memref<5x1x32xf32, #tpu.memory_space<vmem>>, vector<1x1x32xf32>
    %31 = vector.shape_cast %30 : vector<1x1x32xf32> to vector<1x32xf32>
    %32 = vector.broadcast %31 : vector<1x32xf32> to vector<512x32xf32>
    %33 = arith.addf %29, %32 : vector<512x32xf32>
    %cst_27 = arith.constant 0.000000e+00 : f32
    %34 = vector.broadcast %cst_27 : f32 to vector<512x32xf32>
    %35 = arith.maximumf %33, %34 : vector<512x32xf32>
    %36 = arith.addf %35, %26 : vector<512x32xf32>
    %c0_28 = arith.constant 0 : index
    %c0_29 = arith.constant 0 : index
    %37 = vector.load %arg8[%c0_28, %c0_29] : memref<512x32xf32, #tpu.memory_space<vmem>>, vector<512x32xf32>
    tpu.vector_store %arg8[%c0_28, %c0_29], %36 {strides = array<i32>} : memref<512x32xf32, #tpu.memory_space<vmem>>, vector<512x32xf32>,
    %c3 = arith.constant 3 : index
    %c0_30 = arith.constant 0 : index
    %c0_31 = arith.constant 0 : index
    %38 = vector.load %arg4[%c3, %c0_30, %c0_31] : memref<5x32x32xf32, #tpu.memory_space<vmem>>, vector<1x32x32xf32>
    %39 = vector.shape_cast %38 : vector<1x32x32xf32> to vector<32x32xf32>
    %cst_32 = arith.constant dense<0.000000e+00> : vector<512x32xf32>
    %40 = tpu.matmul %36, %39, %cst_32 {dimension_numbers = #tpu.dot_dimension_numbers<[1], [0], [0], [1], [0, 0, 1, 1], [], []>} : vector<512x32xf32>, vector<32x32xf32>, vector<512x32xf32> -> vector<512x32xf32>
    %c3_33 = arith.constant 3 : index
    %c0_34 = arith.constant 0 : index
    %c0_35 = arith.constant 0 : index
    %41 = vector.load %arg5[%c3_33, %c0_34, %c0_35] : memref<5x1x32xf32, #tpu.memory_space<vmem>>, vector<1x1x32xf32>
    %42 = vector.shape_cast %41 : vector<1x1x32xf32> to vector<1x32xf32>
    %43 = vector.broadcast %42 : vector<1x32xf32> to vector<512x32xf32>
    %44 = arith.addf %40, %43 : vector<512x32xf32>
    %cst_36 = arith.constant 0.000000e+00 : f32
    %45 = vector.broadcast %cst_36 : f32 to vector<512x32xf32>
    %46 = arith.maximumf %44, %45 : vector<512x32xf32>
    %47 = arith.addf %46, %36 : vector<512x32xf32>
    %c4 = arith.constant 4 : index
    %c0_37 = arith.constant 0 : index
    %c0_38 = arith.constant 0 : index
    %48 = vector.load %arg4[%c4, %c0_37, %c0_38] : memref<5x32x32xf32, #tpu.memory_space<vmem>>, vector<1x32x32xf32>
    %49 = vector.shape_cast %48 : vector<1x32x32xf32> to vector<32x32xf32>
    %cst_39 = arith.constant dense<0.000000e+00> : vector<512x32xf32>
    %50 = tpu.matmul %47, %49, %cst_39 {dimension_numbers = #tpu.dot_dimension_numbers<[1], [0], [0], [1], [0, 0, 1, 1], [], []>} : vector<512x32xf32>, vector<32x32xf32>, vector<512x32xf32> -> vector<512x32xf32>
    %c4_40 = arith.constant 4 : index
    %c0_41 = arith.constant 0 : index
    %c0_42 = arith.constant 0 : index
    %51 = vector.load %arg5[%c4_40, %c0_41, %c0_42] : memref<5x1x32xf32, #tpu.memory_space<vmem>>, vector<1x1x32xf32>
    %52 = vector.shape_cast %51 : vector<1x1x32xf32> to vector<1x32xf32>
    %53 = vector.broadcast %52 : vector<1x32xf32> to vector<512x32xf32>
    %54 = arith.addf %50, %53 : vector<512x32xf32>
    %cst_43 = arith.constant 0.000000e+00 : f32
    %55 = vector.broadcast %cst_43 : f32 to vector<512x32xf32>
    %56 = arith.maximumf %54, %55 : vector<512x32xf32>
    %57 = arith.addf %56, %47 : vector<512x32xf32>
    %c0_44 = arith.constant 0 : index
    %c0_45 = arith.constant 0 : index
    %58 = vector.load %arg6[%c0_44, %c0_45] : memref<32x64xf32, #tpu.memory_space<vmem>>, vector<32x64xf32>
    %cst_46 = arith.constant dense<0.000000e+00> : vector<512x64xf32>
    %59 = tpu.matmul %57, %58, %cst_46 {dimension_numbers = #tpu.dot_dimension_numbers<[1], [0], [0], [1], [0, 0, 1, 1], [], []>} : vector<512x32xf32>, vector<32x64xf32>, vector<512x64xf32> -> vector<512x64xf32>
    %c0_47 = arith.constant 0 : index
    %c0_48 = arith.constant 0 : index
    %60 = vector.load %arg7[%c0_47, %c0_48] : memref<1x64xf32, #tpu.memory_space<vmem>>, vector<1x64xf32>
    %61 = vector.broadcast %60 : vector<1x64xf32> to vector<512x64xf32>
    %62 = arith.addf %59, %61 : vector<512x64xf32>
    %c0_49 = arith.constant 0 : index
    %c0_50 = arith.constant 0 : index
    %63 = vector.load %arg9[%c0_49, %c0_50] : memref<512x64xf32, #tpu.memory_space<vmem>>, vector<512x64xf32>
    tpu.vector_store %arg9[%c0_49, %c0_50], %62 {strides = array<i32>} : memref<512x64xf32, #tpu.memory_space<vmem>>, vector<512x64xf32>,
    return
  }
  func.func @transform_0(%arg0: i32) -> (i32, i32) {
    %c0_i32 = arith.constant 0 : i32
    %c0_i32_0 = arith.constant 0 : i32
    return %arg0, %c0_i32 : i32, i32
  }
  func.func @transform_1(%arg0: i32) -> (i32, i32) {
    %c0_i32 = arith.constant 0 : i32
    %c0_i32_0 = arith.constant 0 : i32
    %c0_i32_1 = arith.constant 0 : i32
    return %c0_i32, %c0_i32_0 : i32, i32
  }
  func.func @transform_2(%arg0: i32) -> (i32, i32) {
    %c0_i32 = arith.constant 0 : i32
    %c0_i32_0 = arith.constant 0 : i32
    %c0_i32_1 = arith.constant 0 : i32
    return %c0_i32, %c0_i32_0 : i32, i32
  }
  func.func @transform_3(%arg0: i32) -> (i32, i32, i32) {
    %c0_i32 = arith.constant 0 : i32
    %c0_i32_0 = arith.constant 0 : i32
    %c0_i32_1 = arith.constant 0 : i32
    %c0_i32_2 = arith.constant 0 : i32
    return %c0_i32, %c0_i32_0, %c0_i32_1 : i32, i32, i32
  }
  func.func @transform_4(%arg0: i32) -> (i32, i32, i32) {
    %c0_i32 = arith.constant 0 : i32
    %c0_i32_0 = arith.constant 0 : i32
    %c0_i32_1 = arith.constant 0 : i32
    %c0_i32_2 = arith.constant 0 : i32
    return %c0_i32, %c0_i32_0, %c0_i32_1 : i32, i32, i32
  }
  func.func @transform_5(%arg0: i32) -> (i32, i32) {
    %c0_i32 = arith.constant 0 : i32
    %c0_i32_0 = arith.constant 0 : i32
    %c0_i32_1 = arith.constant 0 : i32
    return %c0_i32, %c0_i32_0 : i32, i32
  }
  func.func @transform_6(%arg0: i32) -> (i32, i32) {
    %c0_i32 = arith.constant 0 : i32
    %c0_i32_0 = arith.constant 0 : i32
    %c0_i32_1 = arith.constant 0 : i32
    return %c0_i32, %c0_i32_0 : i32, i32
  }
  func.func @transform_7(%arg0: i32) -> (i32, i32) {
    %c0_i32 = arith.constant 0 : i32
    %c0_i32_0 = arith.constant 0 : i32
    return %arg0, %c0_i32 : i32, i32
  }
  func.func @transform_8(%arg0: i32) -> (i32, i32) {
    %c0_i32 = arith.constant 0 : i32
    %c0_i32_0 = arith.constant 0 : i32
    return %arg0, %c0_i32 : i32, i32
  }
}

</mosaic_0001>

<llo_original>
// kernel: _forward_impl.1
$region0: #{_forward_impl.1}
  #allocation0 [shape = 'u32[]', space=smem, size = 0x4, offset = 0x4, fixed_abs, tag = 'smem constant byte address 0x4 - core index']
  #allocation1 [shape = 'u32[72,128]{1,0:T(1,128)}', space=vmem, size = 0x9000, scoped, tag = 'internal scratch']
  %s0 = inlined_call_operand.vmem [shape: f32[512,4], index: 0, kind: input, shape index: {}]
  %s1 = inlined_call_operand.vmem [shape: f32[4,32], index: 1, kind: input, shape index: {}]
  %s2 = inlined_call_operand.vmem [shape: f32[1,32], index: 2, kind: input, shape index: {}]
  %s3 = inlined_call_operand.vmem [shape: f32[5,32,32], index: 3, kind: input, shape index: {}]
  %s4 = inlined_call_operand.vmem [shape: f32[5,1,32], index: 4, kind: input, shape index: {}]
  %s5 = inlined_call_operand.vmem [shape: f32[32,64], index: 5, kind: input, shape index: {}]
  %s6 = inlined_call_operand.vmem [shape: f32[1,64], index: 6, kind: input, shape index: {}]
  %s7 = inlined_call_operand.hbm [shape: f32[512,32], index: 7, kind: output, shape index: {0}]
  %s8 = inlined_call_operand.hbm [shape: f32[512,64], index: 8, kind: output, shape index: {1}]
  %9 = xla_tuple %s7, %s8
  %s10 = sld [smem:[#allocation0]]
  $region46: #{_forward_impl.1} parent=0
    _
  %s12 = ssub.s32 1, %s10
  %s13 = scalar_select 0, %s12, %s10
  $region1: #{_forward_impl.1} parent=0
    #allocation2 [shape = 'u8[262144]{0}', space=vmem, size = 0x40000, scoped, tag = 'output window, operand 0, single buffered']
    #allocation3 [shape = 's32[1]{0}', space=sflag, size = 0x4, scoped, tag = 'scoped memory for _forward_impl.1']
    #allocation4 [shape = 'u8[262144]{0}', space=vmem, size = 0x40000, scoped, tag = 'output window, operand 1, single buffered']
    #allocation5 [shape = 's32[1]{0}', space=sflag, size = 0x4, scoped, tag = 'scoped memory for _forward_impl.1']
    %14 = vsyncpa [#allocation3], 0
    %15 = vsyncpa [#allocation5], 0
    // Predicated region
    $region2: #{_forward_impl.1} parent=1 // pred_check
      _
    $region3: #{_forward_impl.1} parent=1 // pred_check_branch
      %17 = sbr.rel (0) target = $region5
    $region4: #{_forward_impl.1} parent=1 // pred_region
      _
    $region5: #{_forward_impl.1} parent=1 // pred_fallthru
      _
    // Predicated region
    $region6: #{_forward_impl.1} parent=1 // pred_check
      _
    $region7: #{_forward_impl.1} parent=1 // pred_check_branch
      %19 = sbr.rel (0) target = $region9
    $region8: #{_forward_impl.1} parent=1 // pred_region
      _
    $region9: #{_forward_impl.1} parent=1 // pred_fallthru
      _
    // Predicated region
    $region10: #{_forward_impl.1} parent=1 // pred_check
      _
    $region11: #{_forward_impl.1} parent=1 // pred_check_branch
      %21 = sbr.rel (0) target = $region13
    $region12: #{_forward_impl.1} parent=1 // pred_region
      _
    $region13: #{_forward_impl.1} parent=1 // pred_fallthru
      _
    // Predicated region
    $region14: #{_forward_impl.1} parent=1 // pred_check
      _
    $region15: #{_forward_impl.1} parent=1 // pred_check_branch
      %23 = sbr.rel (0) target = $region17
    $region16: #{_forward_impl.1} parent=1 // pred_region
      _
    $region17: #{_forward_impl.1} parent=1 // pred_fallthru
      _
    // Predicated region
    $region18: #{_forward_impl.1} parent=1 // pred_check
      _
    $region19: #{_forward_impl.1} parent=1 // pred_check_branch
      %25 = sbr.rel (0) target = $region21
    $region20: #{_forward_impl.1} parent=1 // pred_region
      _
    $region21: #{_forward_impl.1} parent=1 // pred_fallthru
      _
    // Predicated region
    $region22: #{_forward_impl.1} parent=1 // pred_check
      _
    $region23: #{_forward_impl.1} parent=1 // pred_check_branch
      %27 = sbr.rel (0) target = $region25
    $region24: #{_forward_impl.1} parent=1 // pred_region
      _
    $region25: #{_forward_impl.1} parent=1 // pred_fallthru
      _
    // Predicated region
    $region26: #{_forward_impl.1} parent=1 // pred_check
      _
    $region27: #{_forward_impl.1} parent=1 // pred_check_branch
      %29 = sbr.rel (0) target = $region29
    $region28: #{_forward_impl.1} parent=1 // pred_region
      _
    $region29: #{_forward_impl.1} parent=1 // pred_fallthru
      _
    %v30 = vld [vmem:[%s0] sm:$0xff]
    %v31 = vld [vmem:[%s0 + $0x8] sm:$0xff]
    %v32 = vld [vmem:[%s0 + $0x10] sm:$0xff]
    %v33 = vld [vmem:[%s0 + $0x18] sm:$0xff]
    %v34 = vld [vmem:[%s0 + $0x20] sm:$0xff]
    %v35 = vld [vmem:[%s0 + $0x28] sm:$0xff]
    %v36 = vld [vmem:[%s0 + $0x30] sm:$0xff]
    %v37 = vld [vmem:[%s0 + $0x38] sm:$0xff]
    %v38 = vld [vmem:[%s0 + $0x40] sm:$0xff]
    %v39 = vld [vmem:[%s0 + $0x48] sm:$0xff]
    %v40 = vld [vmem:[%s0 + $0x50] sm:$0xff]
    %v41 = vld [vmem:[%s0 + $0x58] sm:$0xff]
    %v42 = vld [vmem:[%s0 + $0x60] sm:$0xff]
    %v43 = vld [vmem:[%s0 + $0x68] sm:$0xff]
    %v44 = vld [vmem:[%s0 + $0x70] sm:$0xff]
    %v45 = vld [vmem:[%s0 + $0x78] sm:$0xff]
    %v46 = vld [vmem:[%s0 + $0x80] sm:$0xff]
    %v47 = vld [vmem:[%s0 + $0x88] sm:$0xff]
    %v48 = vld [vmem:[%s0 + $0x90] sm:$0xff]
    %v49 = vld [vmem:[%s0 + $0x98] sm:$0xff]
    %v50 = vld [vmem:[%s0 + $0xa0] sm:$0xff]
    %v51 = vld [vmem:[%s0 + $0xa8] sm:$0xff]
    %v52 = vld [vmem:[%s0 + $0xb0] sm:$0xff]
    %v53 = vld [vmem:[%s0 + $0xb8] sm:$0xff]
    %v54 = vld [vmem:[%s0 + $0xc0] sm:$0xff]
    %v55 = vld [vmem:[%s0 + $0xc8] sm:$0xff]
    %v56 = vld [vmem:[%s0 + $0xd0] sm:$0xff]
    %v57 = vld [vmem:[%s0 + $0xd8] sm:$0xff]
    %v58 = vld [vmem:[%s0 + $0xe0] sm:$0xff]
    %v59 = vld [vmem:[%s0 + $0xe8] sm:$0xff]
    %v60 = vld [vmem:[%s0 + $0xf0] sm:$0xff]
    %v61 = vld [vmem:[%s0 + $0xf8] sm:$0xff]
    %v62 = vld [vmem:[%s0 + $0x100] sm:$0xff]
    %v63 = vld [vmem:[%s0 + $0x108] sm:$0xff]
    %v64 = vld [vmem:[%s0 + $0x110] sm:$0xff]
    %v65 = vld [vmem:[%s0 + $0x118] sm:$0xff]
    %v66 = vld [vmem:[%s0 + $0x120] sm:$0xff]
    %v67 = vld [vmem:[%s0 + $0x128] sm:$0xff]
    %v68 = vld [vmem:[%s0 + $0x130] sm:$0xff]
    %v69 = vld [vmem:[%s0 + $0x138] sm:$0xff]
    %v70 = vld [vmem:[%s0 + $0x140] sm:$0xff]
    %v71 = vld [vmem:[%s0 + $0x148] sm:$0xff]
    %v72 = vld [vmem:[%s0 + $0x150] sm:$0xff]
    %v73 = vld [vmem:[%s0 + $0x158] sm:$0xff]
    %v74 = vld [vmem:[%s0 + $0x160] sm:$0xff]
    %v75 = vld [vmem:[%s0 + $0x168] sm:$0xff]
    %v76 = vld [vmem:[%s0 + $0x170] sm:$0xff]
    %v77 = vld [vmem:[%s0 + $0x178] sm:$0xff]
    %v78 = vld [vmem:[%s0 + $0x180] sm:$0xff]
    %v79 = vld [vmem:[%s0 + $0x188] sm:$0xff]
    %v80 = vld [vmem:[%s0 + $0x190] sm:$0xff]
    %v81 = vld [vmem:[%s0 + $0x198] sm:$0xff]
    %v82 = vld [vmem:[%s0 + $0x1a0] sm:$0xff]
    %v83 = vld [vmem:[%s0 + $0x1a8] sm:$0xff]
    %v84 = vld [vmem:[%s0 + $0x1b0] sm:$0xff]
    %v85 = vld [vmem:[%s0 + $0x1b8] sm:$0xff]
    %v86 = vld [vmem:[%s0 + $0x1c0] sm:$0xff]
    %v87 = vld [vmem:[%s0 + $0x1c8] sm:$0xff]
    %v88 = vld [vmem:[%s0 + $0x1d0] sm:$0xff]
    %v89 = vld [vmem:[%s0 + $0x1d8] sm:$0xff]
    %v90 = vld [vmem:[%s0 + $0x1e0] sm:$0xff]
    %v91 = vld [vmem:[%s0 + $0x1e8] sm:$0xff]
    %v92 = vld [vmem:[%s0 + $0x1f0] sm:$0xff]
    %v93 = vld [vmem:[%s0 + $0x1f8] sm:$0xff]
    %v94 = vld [vmem:[%s1] sm:$0xf]
    %v95 = vld [vmem:[%s2] sm:$0x1]
    %v97 = vperm.slane %v95, 0
    %vm99 = vcmask 31744
    %v101 = vsel %vm99, %v30, 0
    %v104 = vsel %vm99, %v31, 0
    %v107 = vsel %vm99, %v32, 0
    %v110 = vsel %vm99, %v33, 0
    %v113 = vsel %vm99, %v34, 0
    %v116 = vsel %vm99, %v35, 0
    %v119 = vsel %vm99, %v36, 0
    %v122 = vsel %vm99, %v37, 0
    %v125 = vsel %vm99, %v38, 0
    %v128 = vsel %vm99, %v39, 0
    %v131 = vsel %vm99, %v40, 0
    %v134 = vsel %vm99, %v41, 0
    %v137 = vsel %vm99, %v42, 0
    %v140 = vsel %vm99, %v43, 0
    %v143 = vsel %vm99, %v44, 0
    %v146 = vsel %vm99, %v45, 0
    %v149 = vsel %vm99, %v46, 0
    %v152 = vsel %vm99, %v47, 0
    %v155 = vsel %vm99, %v48, 0
    %v158 = vsel %vm99, %v49, 0
    %v161 = vsel %vm99, %v50, 0
    %v164 = vsel %vm99, %v51, 0
    %v167 = vsel %vm99, %v52, 0
    %v170 = vsel %vm99, %v53, 0
    %v173 = vsel %vm99, %v54, 0
    %v176 = vsel %vm99, %v55, 0
    %v179 = vsel %vm99, %v56, 0
    %v182 = vsel %vm99, %v57, 0
    %v185 = vsel %vm99, %v58, 0
    %v188 = vsel %vm99, %v59, 0
    %v191 = vsel %vm99, %v60, 0
    %v194 = vsel %vm99, %v61, 0
    %v197 = vsel %vm99, %v62, 0
    %v200 = vsel %vm99, %v63, 0
    %v203 = vsel %vm99, %v64, 0
    %v206 = vsel %vm99, %v65, 0
    %v209 = vsel %vm99, %v66, 0
    %v212 = vsel %vm99, %v67, 0
    %v215 = vsel %vm99, %v68, 0
    %v218 = vsel %vm99, %v69, 0
    %v221 = vsel %vm99, %v70, 0
    %v224 = vsel %vm99, %v71, 0
    %v227 = vsel %vm99, %v72, 0
    %v230 = vsel %vm99, %v73, 0
    %v233 = vsel %vm99, %v74, 0
    %v236 = vsel %vm99, %v75, 0
    %v239 = vsel %vm99, %v76, 0
    %v242 = vsel %vm99, %v77, 0
    %v245 = vsel %vm99, %v78, 0
    %v248 = vsel %vm99, %v79, 0
    %v251 = vsel %vm99, %v80, 0
    %v254 = vsel %vm99, %v81, 0
    %v257 = vsel %vm99, %v82, 0
    %v260 = vsel %vm99, %v83, 0
    %v263 = vsel %vm99, %v84, 0
    %v266 = vsel %vm99, %v85, 0
    %v269 = vsel %vm99, %v86, 0
    %v272 = vsel %vm99, %v87, 0
    %v275 = vsel %vm99, %v88, 0
    %v278 = vsel %vm99, %v89, 0
    %v281 = vsel %vm99, %v90, 0
    %v284 = vsel %vm99, %v91, 0
    %v287 = vsel %vm99, %v92, 0
    %v290 = vsel %vm99, %v93, 0
    %vm292 = vcmask 1043456
    %v294 = vsel %vm292, %v94, 0
    %296 = vmatpush.msra.mxu0 0.0
    %297 = vmatpush.msra.mxu0 0.0
    %298 = vmatpush.msra.mxu0 0.0
    %299 = vmatpush.msra.mxu0 0.0
    %300 = vmatpush.msra.mxu0 0.0
    %301 = vmatpush.msra.mxu0 0.0
    %302 = vmatpush.msra.mxu0 0.0
    %303 = vmatpush.msra.mxu0 0.0
    %304 = vmatpush.msra.mxu0 0.0
    %305 = vmatpush.msra.mxu0 0.0
    %306 = vmatpush.msra.mxu0 0.0
    %307 = vmatpush.msra.mxu0 0.0
    %308 = vmatpush.msra.mxu0 0.0
    %309 = vmatpush.msra.mxu0 0.0
    %310 = vmatpush.msra.mxu0 0.0
    %311 = vmatpush.msra.mxu0 %v294
    %312 = vmatmul.f32.gmra.mxu0 %v101
    %v313 = vpop.f32.mrf.mxu0
    %v314 = vadd.f32 %v97, %v313
    %315 = vmatmul.f32.gmra.mxu0 %v104
    %v316 = vpop.f32.mrf.mxu0
    %v317 = vadd.f32 %v97, %v316
    %318 = vmatmul.f32.gmra.mxu0 %v107
    %v319 = vpop.f32.mrf.mxu0
    %v320 = vadd.f32 %v97, %v319
    %321 = vmatmul.f32.gmra.mxu0 %v110
    %v322 = vpop.f32.mrf.mxu0
    %v323 = vadd.f32 %v97, %v322
    %324 = vmatmul.f32.gmra.mxu0 %v113
    %v325 = vpop.f32.mrf.mxu0
    %v326 = vadd.f32 %v97, %v325
    %327 = vmatmul.f32.gmra.mxu0 %v116
    %v328 = vpop.f32.mrf.mxu0
    %v329 = vadd.f32 %v97, %v328
    %330 = vmatmul.f32.gmra.mxu0 %v119
    %v331 = vpop.f32.mrf.mxu0
    %v332 = vadd.f32 %v97, %v331
    %333 = vmatmul.f32.gmra.mxu0 %v122
    %v334 = vpop.f32.mrf.mxu0
    %v335 = vadd.f32 %v97, %v334
    %336 = vmatmul.f32.gmra.mxu0 %v125
    %v337 = vpop.f32.mrf.mxu0
    %v338 = vadd.f32 %v97, %v337
    %339 = vmatmul.f32.gmra.mxu0 %v128
    %v340 = vpop.f32.mrf.mxu0
    %v341 = vadd.f32 %v97, %v340
    %342 = vmatmul.f32.gmra.mxu0 %v131
    %v343 = vpop.f32.mrf.mxu0
    %v344 = vadd.f32 %v97, %v343
    %345 = vmatmul.f32.gmra.mxu0 %v134
    %v346 = vpop.f32.mrf.mxu0
    %v347 = vadd.f32 %v97, %v346
    %348 = vmatmul.f32.gmra.mxu0 %v137
    %v349 = vpop.f32.mrf.mxu0
    %v350 = vadd.f32 %v97, %v349
    %351 = vmatmul.f32.gmra.mxu0 %v140
    %v352 = vpop.f32.mrf.mxu0
    %v353 = vadd.f32 %v97, %v352
    %354 = vmatmul.f32.gmra.mxu0 %v143
    %v355 = vpop.f32.mrf.mxu0
    %v356 = vadd.f32 %v97, %v355
    %357 = vmatmul.f32.gmra.mxu0 %v146
    %v358 = vpop.f32.mrf.mxu0
    %v359 = vadd.f32 %v97, %v358
    %360 = vmatmul.f32.gmra.mxu0 %v149
    %v361 = vpop.f32.mrf.mxu0
    %v362 = vadd.f32 %v97, %v361
    %363 = vmatmul.f32.gmra.mxu0 %v152
    %v364 = vpop.f32.mrf.mxu0
    %v365 = vadd.f32 %v97, %v364
    %366 = vmatmul.f32.gmra.mxu0 %v155
    %v367 = vpop.f32.mrf.mxu0
    %v368 = vadd.f32 %v97, %v367
    %369 = vmatmul.f32.gmra.mxu0 %v158
    %v370 = vpop.f32.mrf.mxu0
    %v371 = vadd.f32 %v97, %v370
    %372 = vmatmul.f32.gmra.mxu0 %v161
    %v373 = vpop.f32.mrf.mxu0
    %v374 = vadd.f32 %v97, %v373
    %375 = vmatmul.f32.gmra.mxu0 %v164
    %v376 = vpop.f32.mrf.mxu0
    %v377 = vadd.f32 %v97, %v376
    %378 = vmatmul.f32.gmra.mxu0 %v167
    %v379 = vpop.f32.mrf.mxu0
    %v380 = vadd.f32 %v97, %v379
    %381 = vmatmul.f32.gmra.mxu0 %v170
    %v382 = vpop.f32.mrf.mxu0
    %v383 = vadd.f32 %v97, %v382
    %384 = vmatmul.f32.gmra.mxu0 %v173
    %v385 = vpop.f32.mrf.mxu0
    %v386 = vadd.f32 %v97, %v385
    %387 = vmatmul.f32.gmra.mxu0 %v176
    %v388 = vpop.f32.mrf.mxu0
    %v389 = vadd.f32 %v97, %v388
    %390 = vmatmul.f32.gmra.mxu0 %v179
    %v391 = vpop.f32.mrf.mxu0
    %v392 = vadd.f32 %v97, %v391
    %393 = vmatmul.f32.gmra.mxu0 %v182
    %v394 = vpop.f32.mrf.mxu0
    %v395 = vadd.f32 %v97, %v394
    %396 = vmatmul.f32.gmra.mxu0 %v185
    %v397 = vpop.f32.mrf.mxu0
    %v398 = vadd.f32 %v97, %v397
    %399 = vmatmul.f32.gmra.mxu0 %v188
    %v400 = vpop.f32.mrf.mxu0
    %v401 = vadd.f32 %v97, %v400
    %402 = vmatmul.f32.gmra.mxu0 %v191
    %v403 = vpop.f32.mrf.mxu0
    %v404 = vadd.f32 %v97, %v403
    %405 = vmatmul.f32.gmra.mxu0 %v194
    %v406 = vpop.f32.mrf.mxu0
    %v407 = vadd.f32 %v97, %v406
    %408 = vmatmul.f32.gmra.mxu0 %v197
    %v409 = vpop.f32.mrf.mxu0
    %v410 = vadd.f32 %v97, %v409
    %411 = vmatmul.f32.gmra.mxu0 %v200
    %v412 = vpop.f32.mrf.mxu0
    %v413 = vadd.f32 %v97, %v412
    %414 = vmatmul.f32.gmra.mxu0 %v203
    %v415 = vpop.f32.mrf.mxu0
    %v416 = vadd.f32 %v97, %v415
    %417 = vmatmul.f32.gmra.mxu0 %v206
    %v418 = vpop.f32.mrf.mxu0
    %v419 = vadd.f32 %v97, %v418
    %420 = vmatmul.f32.gmra.mxu0 %v209
    %v421 = vpop.f32.mrf.mxu0
    %v422 = vadd.f32 %v97, %v421
    %423 = vmatmul.f32.gmra.mxu0 %v212
    %v424 = vpop.f32.mrf.mxu0
    %v425 = vadd.f32 %v97, %v424
    %426 = vmatmul.f32.gmra.mxu0 %v215
    %v427 = vpop.f32.mrf.mxu0
    %v428 = vadd.f32 %v97, %v427
    %429 = vmatmul.f32.gmra.mxu0 %v218
    %v430 = vpop.f32.mrf.mxu0
    %v431 = vadd.f32 %v97, %v430
    %432 = vmatmul.f32.gmra.mxu0 %v221
    %v433 = vpop.f32.mrf.mxu0
    %v434 = vadd.f32 %v97, %v433
    %435 = vmatmul.f32.gmra.mxu0 %v224
    %v436 = vpop.f32.mrf.mxu0
    %v437 = vadd.f32 %v97, %v436
    %438 = vmatmul.f32.gmra.mxu0 %v227
    %v439 = vpop.f32.mrf.mxu0
    %v440 = vadd.f32 %v97, %v439
    %441 = vmatmul.f32.gmra.mxu0 %v230
    %v442 = vpop.f32.mrf.mxu0
    %v443 = vadd.f32 %v97, %v442
    %444 = vmatmul.f32.gmra.mxu0 %v233
    %v445 = vpop.f32.mrf.mxu0
    %v446 = vadd.f32 %v97, %v445
    %447 = vmatmul.f32.gmra.mxu0 %v236
    %v448 = vpop.f32.mrf.mxu0
    %v449 = vadd.f32 %v97, %v448
    %450 = vmatmul.f32.gmra.mxu0 %v239
    %v451 = vpop.f32.mrf.mxu0
    %v452 = vadd.f32 %v97, %v451
    %453 = vmatmul.f32.gmra.mxu0 %v242
    %v454 = vpop.f32.mrf.mxu0
    %v455 = vadd.f32 %v97, %v454
    %456 = vmatmul.f32.gmra.mxu0 %v245
    %v457 = vpop.f32.mrf.mxu0
    %v458 = vadd.f32 %v97, %v457
    %459 = vmatmul.f32.gmra.mxu0 %v248
    %v460 = vpop.f32.mrf.mxu0
    %v461 = vadd.f32 %v97, %v460
    %462 = vmatmul.f32.gmra.mxu0 %v251
    %v463 = vpop.f32.mrf.mxu0
    %v464 = vadd.f32 %v97, %v463
    %465 = vmatmul.f32.gmra.mxu0 %v254
    %v466 = vpop.f32.mrf.mxu0
    %v467 = vadd.f32 %v97, %v466
    %468 = vmatmul.f32.gmra.mxu0 %v257
    %v469 = vpop.f32.mrf.mxu0
    %v470 = vadd.f32 %v97, %v469
    %471 = vmatmul.f32.gmra.mxu0 %v260
    %v472 = vpop.f32.mrf.mxu0
    %v473 = vadd.f32 %v97, %v472
    %474 = vmatmul.f32.gmra.mxu0 %v263
    %v475 = vpop.f32.mrf.mxu0
    %v476 = vadd.f32 %v97, %v475
    %477 = vmatmul.f32.gmra.mxu0 %v266
    %v478 = vpop.f32.mrf.mxu0
    %v479 = vadd.f32 %v97, %v478
    %480 = vmatmul.f32.gmra.mxu0 %v269
    %v481 = vpop.f32.mrf.mxu0
    %v482 = vadd.f32 %v97, %v481
    %483 = vmatmul.f32.gmra.mxu0 %v272
    %v484 = vpop.f32.mrf.mxu0
    %v485 = vadd.f32 %v97, %v484
    %486 = vmatmul.f32.gmra.mxu0 %v275
    %v487 = vpop.f32.mrf.mxu0
    %v488 = vadd.f32 %v97, %v487
    %489 = vmatmul.f32.gmra.mxu0 %v278
    %v490 = vpop.f32.mrf.mxu0
    %v491 = vadd.f32 %v97, %v490
    %492 = vmatmul.f32.gmra.mxu0 %v281
    %v493 = vpop.f32.mrf.mxu0
    %v494 = vadd.f32 %v97, %v493
    %495 = vmatmul.f32.gmra.mxu0 %v284
    %v496 = vpop.f32.mrf.mxu0
    %v497 = vadd.f32 %v97, %v496
    %498 = vmatmul.f32.gmra.mxu0 %v287
    %v499 = vpop.f32.mrf.mxu0
    %v500 = vadd.f32 %v97, %v499
    %501 = vmatmul.f32.gmra.mxu0 %v290
    %v502 = vpop.f32.mrf.mxu0
    %v503 = vadd.f32 %v97, %v502
    %504 = vdwg.mxu0
    %v505 = vmax.f32 %v314, 0.0
    %v506 = vmax.f32 %v317, 0.0
    %v507 = vmax.f32 %v320, 0.0
    %v508 = vmax.f32 %v323, 0.0
    %v509 = vmax.f32 %v326, 0.0
    %v510 = vmax.f32 %v329, 0.0
    %v511 = vmax.f32 %v332, 0.0
    %v512 = vmax.f32 %v335, 0.0
    %v513 = vmax.f32 %v338, 0.0
    %v514 = vmax.f32 %v341, 0.0
    %v515 = vmax.f32 %v344, 0.0
    %v516 = vmax.f32 %v347, 0.0
    %v517 = vmax.f32 %v350, 0.0
    %v518 = vmax.f32 %v353, 0.0
    %v519 = vmax.f32 %v356, 0.0
    %v520 = vmax.f32 %v359, 0.0
    %v521 = vmax.f32 %v362, 0.0
    %v522 = vmax.f32 %v365, 0.0
    %v523 = vmax.f32 %v368, 0.0
    %v524 = vmax.f32 %v371, 0.0
    %v525 = vmax.f32 %v374, 0.0
    %v526 = vmax.f32 %v377, 0.0
    %v527 = vmax.f32 %v380, 0.0
    %v528 = vmax.f32 %v383, 0.0
    %v529 = vmax.f32 %v386, 0.0
    %v530 = vmax.f32 %v389, 0.0
    %v531 = vmax.f32 %v392, 0.0
    %v532 = vmax.f32 %v395, 0.0
    %v533 = vmax.f32 %v398, 0.0
    %v534 = vmax.f32 %v401, 0.0
    %v535 = vmax.f32 %v404, 0.0
    %v536 = vmax.f32 %v407, 0.0
    %v537 = vmax.f32 %v410, 0.0
    %v538 = vmax.f32 %v413, 0.0
    %v539 = vmax.f32 %v416, 0.0
    %v540 = vmax.f32 %v419, 0.0
    %v541 = vmax.f32 %v422, 0.0
    %v542 = vmax.f32 %v425, 0.0
    %v543 = vmax.f32 %v428, 0.0
    %v544 = vmax.f32 %v431, 0.0
    %v545 = vmax.f32 %v434, 0.0
    %v546 = vmax.f32 %v437, 0.0
    %v547 = vmax.f32 %v440, 0.0
    %v548 = vmax.f32 %v443, 0.0
    %v549 = vmax.f32 %v446, 0.0
    %v550 = vmax.f32 %v449, 0.0
    %v551 = vmax.f32 %v452, 0.0
    %v552 = vmax.f32 %v455, 0.0
    %v553 = vmax.f32 %v458, 0.0
    %v554 = vmax.f32 %v461, 0.0
    %v555 = vmax.f32 %v464, 0.0
    %v556 = vmax.f32 %v467, 0.0
    %v557 = vmax.f32 %v470, 0.0
    %v558 = vmax.f32 %v473, 0.0
    %v559 = vmax.f32 %v476, 0.0
    %v560 = vmax.f32 %v479, 0.0
    %v561 = vmax.f32 %v482, 0.0
    %v562 = vmax.f32 %v485, 0.0
    %v563 = vmax.f32 %v488, 0.0
    %v564 = vmax.f32 %v491, 0.0
    %v565 = vmax.f32 %v494, 0.0
    %v566 = vmax.f32 %v497, 0.0
    %v567 = vmax.f32 %v500, 0.0
    %v568 = vmax.f32 %v503, 0.0
    %v569 = vld [vmem:[%s3] sm:$0xff]
    %v570 = vld [vmem:[%s3 + $0x8] sm:$0xff]
    %v571 = vld [vmem:[%s3 + $0x10] sm:$0xff]
    %v572 = vld [vmem:[%s3 + $0x18] sm:$0xff]
    %v573 = vld [vmem:[%s4] sm:$0x1]
    %v575 = vperm.slane %v573, 0
    %vm577 = vcmask 261120
    %v579 = vsel %vm577, %v505, 0
    %v582 = vsel %vm577, %v506, 0
    %v585 = vsel %vm577, %v507, 0
    %v588 = vsel %vm577, %v508, 0
    %v591 = vsel %vm577, %v509, 0
    %v594 = vsel %vm577, %v510, 0
    %v597 = vsel %vm577, %v511, 0
    %v600 = vsel %vm577, %v512, 0
    %v603 = vsel %vm577, %v513, 0
    %v606 = vsel %vm577, %v514, 0
    %v609 = vsel %vm577, %v515, 0
    %v612 = vsel %vm577, %v516, 0
    %v615 = vsel %vm577, %v517, 0
    %v618 = vsel %vm577, %v518, 0
    %v621 = vsel %vm577, %v519, 0
    %v624 = vsel %vm577, %v520, 0
    %v627 = vsel %vm577, %v521, 0
    %v630 = vsel %vm577, %v522, 0
    %v633 = vsel %vm577, %v523, 0
    %v636 = vsel %vm577, %v524, 0
    %v639 = vsel %vm577, %v525, 0
    %v642 = vsel %vm577, %v526, 0
    %v645 = vsel %vm577, %v527, 0
    %v648 = vsel %vm577, %v528, 0
    %v651 = vsel %vm577, %v529, 0
    %v654 = vsel %vm577, %v530, 0
    %v657 = vsel %vm577, %v531, 0
    %v660 = vsel %vm577, %v532, 0
    %v663 = vsel %vm577, %v533, 0
    %v666 = vsel %vm577, %v534, 0
    %v669 = vsel %vm577, %v535, 0
    %v672 = vsel %vm577, %v536, 0
    %v675 = vsel %vm577, %v537, 0
    %v678 = vsel %vm577, %v538, 0
    %v681 = vsel %vm577, %v539, 0
    %v684 = vsel %vm577, %v540, 0
    %v687 = vsel %vm577, %v541, 0
    %v690 = vsel %vm577, %v542, 0
    %v693 = vsel %vm577, %v543, 0
    %v696 = vsel %vm577, %v544, 0
    %v699 = vsel %vm577, %v545, 0
    %v702 = vsel %vm577, %v546, 0
    %v705 = vsel %vm577, %v547, 0
    %v708 = vsel %vm577, %v548, 0
    %v711 = vsel %vm577, %v549, 0
    %v714 = vsel %vm577, %v550, 0
    %v717 = vsel %vm577, %v551, 0
    %v720 = vsel %vm577, %v552, 0
    %v723 = vsel %vm577, %v553, 0
    %v726 = vsel %vm577, %v554, 0
    %v729 = vsel %vm577, %v555, 0
    %v732 = vsel %vm577, %v556, 0
    %v735 = vsel %vm577, %v557, 0
    %v738 = vsel %vm577, %v558, 0
    %v741 = vsel %vm577, %v559, 0
    %v744 = vsel %vm577, %v560, 0
    %v747 = vsel %vm577, %v561, 0
    %v750 = vsel %vm577, %v562, 0
    %v753 = vsel %vm577, %v563, 0
    %v756 = vsel %vm577, %v564, 0
    %v759 = vsel %vm577, %v565, 0
    %v762 = vsel %vm577, %v566, 0
    %v765 = vsel %vm577, %v567, 0
    %v768 = vsel %vm577, %v568, 0
    %770 = vmatpush.msra.mxu0 0.0
    %771 = vmatpush.msra.mxu0 0.0
    %772 = vmatpush.msra.mxu0 0.0
    %773 = vmatpush.msra.mxu0 0.0
    %774 = vmatpush.msra.mxu0 0.0
    %775 = vmatpush.msra.mxu0 0.0
    %776 = vmatpush.msra.mxu0 0.0
    %777 = vmatpush.msra.mxu0 0.0
    %778 = vmatpush.msra.mxu0 0.0
    %779 = vmatpush.msra.mxu0 0.0
    %780 = vmatpush.msra.mxu0 0.0
    %781 = vmatpush.msra.mxu0 0.0
    %782 = vmatpush.msra.mxu0 %v572
    %783 = vmatpush.msra.mxu0 %v571
    %784 = vmatpush.msra.mxu0 %v570
    %785 = vmatpush.msra.mxu0 %v569
    %786 = vmatmul.f32.gmra.mxu0 %v579
    %v787 = vpop.f32.mrf.mxu0
    %v788 = vadd.f32 %v575, %v787
    %789 = vmatmul.f32.gmra.mxu0 %v582
    %v790 = vpop.f32.mrf.mxu0
    %v791 = vadd.f32 %v575, %v790
    %792 = vmatmul.f32.gmra.mxu0 %v585
    %v793 = vpop.f32.mrf.mxu0
    %v794 = vadd.f32 %v575, %v793
    %795 = vmatmul.f32.gmra.mxu0 %v588
    %v796 = vpop.f32.mrf.mxu0
    %v797 = vadd.f32 %v575, %v796
    %798 = vmatmul.f32.gmra.mxu0 %v591
    %v799 = vpop.f32.mrf.mxu0
    %v800 = vadd.f32 %v575, %v799
    %801 = vmatmul.f32.gmra.mxu0 %v594
    %v802 = vpop.f32.mrf.mxu0
    %v803 = vadd.f32 %v575, %v802
    %804 = vmatmul.f32.gmra.mxu0 %v597
    %v805 = vpop.f32.mrf.mxu0
    %v806 = vadd.f32 %v575, %v805
    %807 = vmatmul.f32.gmra.mxu0 %v600
    %v808 = vpop.f32.mrf.mxu0
    %v809 = vadd.f32 %v575, %v808
    %810 = vmatmul.f32.gmra.mxu0 %v603
    %v811 = vpop.f32.mrf.mxu0
    %v812 = vadd.f32 %v575, %v811
    %813 = vmatmul.f32.gmra.mxu0 %v606
    %v814 = vpop.f32.mrf.mxu0
    %v815 = vadd.f32 %v575, %v814
    %816 = vmatmul.f32.gmra.mxu0 %v609
    %v817 = vpop.f32.mrf.mxu0
    %v818 = vadd.f32 %v575, %v817
    %819 = vmatmul.f32.gmra.mxu0 %v612
    %v820 = vpop.f32.mrf.mxu0
    %v821 = vadd.f32 %v575, %v820
    %822 = vmatmul.f32.gmra.mxu0 %v615
    %v823 = vpop.f32.mrf.mxu0
    %v824 = vadd.f32 %v575, %v823
    %825 = vmatmul.f32.gmra.mxu0 %v618
    %v826 = vpop.f32.mrf.mxu0
    %v827 = vadd.f32 %v575, %v826
    %828 = vmatmul.f32.gmra.mxu0 %v621
    %v829 = vpop.f32.mrf.mxu0
    %v830 = vadd.f32 %v575, %v829
    %831 = vmatmul.f32.gmra.mxu0 %v624
    %v832 = vpop.f32.mrf.mxu0
    %v833 = vadd.f32 %v575, %v832
    %834 = vmatmul.f32.gmra.mxu0 %v627
    %v835 = vpop.f32.mrf.mxu0
    %v836 = vadd.f32 %v575, %v835
    %837 = vmatmul.f32.gmra.mxu0 %v630
    %v838 = vpop.f32.mrf.mxu0
    %v839 = vadd.f32 %v575, %v838
    %840 = vmatmul.f32.gmra.mxu0 %v633
    %v841 = vpop.f32.mrf.mxu0
    %v842 = vadd.f32 %v575, %v841
    %843 = vmatmul.f32.gmra.mxu0 %v636
    %v844 = vpop.f32.mrf.mxu0
    %v845 = vadd.f32 %v575, %v844
    %846 = vmatmul.f32.gmra.mxu0 %v639
    %v847 = vpop.f32.mrf.mxu0
    %v848 = vadd.f32 %v575, %v847
    %849 = vmatmul.f32.gmra.mxu0 %v642
    %v850 = vpop.f32.mrf.mxu0
    %v851 = vadd.f32 %v575, %v850
    %852 = vmatmul.f32.gmra.mxu0 %v645
    %v853 = vpop.f32.mrf.mxu0
    %v854 = vadd.f32 %v575, %v853
    %855 = vmatmul.f32.gmra.mxu0 %v648
    %v856 = vpop.f32.mrf.mxu0
    %v857 = vadd.f32 %v575, %v856
    %858 = vmatmul.f32.gmra.mxu0 %v651
    %v859 = vpop.f32.mrf.mxu0
    %v860 = vadd.f32 %v575, %v859
    %861 = vmatmul.f32.gmra.mxu0 %v654
    %v862 = vpop.f32.mrf.mxu0
    %v863 = vadd.f32 %v575, %v862
    %864 = vmatmul.f32.gmra.mxu0 %v657
    %v865 = vpop.f32.mrf.mxu0
    %v866 = vadd.f32 %v575, %v865
    %867 = vmatmul.f32.gmra.mxu0 %v660
    %v868 = vpop.f32.mrf.mxu0
    %v869 = vadd.f32 %v575, %v868
    %870 = vmatmul.f32.gmra.mxu0 %v663
    %v871 = vpop.f32.mrf.mxu0
    %v872 = vadd.f32 %v575, %v871
    %873 = vmatmul.f32.gmra.mxu0 %v666
    %v874 = vpop.f32.mrf.mxu0
    %v875 = vadd.f32 %v575, %v874
    %876 = vmatmul.f32.gmra.mxu0 %v669
    %v877 = vpop.f32.mrf.mxu0
    %v878 = vadd.f32 %v575, %v877
    %879 = vmatmul.f32.gmra.mxu0 %v672
    %v880 = vpop.f32.mrf.mxu0
    %v881 = vadd.f32 %v575, %v880
    %882 = vmatmul.f32.gmra.mxu0 %v675
    %v883 = vpop.f32.mrf.mxu0
    %v884 = vadd.f32 %v575, %v883
    %885 = vmatmul.f32.gmra.mxu0 %v678
    %v886 = vpop.f32.mrf.mxu0
    %v887 = vadd.f32 %v575, %v886
    %888 = vmatmul.f32.gmra.mxu0 %v681
    %v889 = vpop.f32.mrf.mxu0
    %v890 = vadd.f32 %v575, %v889
    %891 = vmatmul.f32.gmra.mxu0 %v684
    %v892 = vpop.f32.mrf.mxu0
    %v893 = vadd.f32 %v575, %v892
    %894 = vmatmul.f32.gmra.mxu0 %v687
    %v895 = vpop.f32.mrf.mxu0
    %v896 = vadd.f32 %v575, %v895
    %897 = vmatmul.f32.gmra.mxu0 %v690
    %v898 = vpop.f32.mrf.mxu0
    %v899 = vadd.f32 %v575, %v898
    %900 = vmatmul.f32.gmra.mxu0 %v693
    %v901 = vpop.f32.mrf.mxu0
    %v902 = vadd.f32 %v575, %v901
    %903 = vmatmul.f32.gmra.mxu0 %v696
    %v904 = vpop.f32.mrf.mxu0
    %v905 = vadd.f32 %v575, %v904
    %906 = vmatmul.f32.gmra.mxu0 %v699
    %v907 = vpop.f32.mrf.mxu0
    %v908 = vadd.f32 %v575, %v907
    %909 = vmatmul.f32.gmra.mxu0 %v702
    %v910 = vpop.f32.mrf.mxu0
    %v911 = vadd.f32 %v575, %v910
    %912 = vmatmul.f32.gmra.mxu0 %v705
    %v913 = vpop.f32.mrf.mxu0
    %v914 = vadd.f32 %v575, %v913
    %915 = vmatmul.f32.gmra.mxu0 %v708
    %v916 = vpop.f32.mrf.mxu0
    %v917 = vadd.f32 %v575, %v916
    %918 = vmatmul.f32.gmra.mxu0 %v711
    %v919 = vpop.f32.mrf.mxu0
    %v920 = vadd.f32 %v575, %v919
    %921 = vmatmul.f32.gmra.mxu0 %v714
    %v922 = vpop.f32.mrf.mxu0
    %v923 = vadd.f32 %v575, %v922
    %924 = vmatmul.f32.gmra.mxu0 %v717
    %v925 = vpop.f32.mrf.mxu0
    %v926 = vadd.f32 %v575, %v925
    %927 = vmatmul.f32.gmra.mxu0 %v720
    %v928 = vpop.f32.mrf.mxu0
    %v929 = vadd.f32 %v575, %v928
    %930 = vmatmul.f32.gmra.mxu0 %v723
    %v931 = vpop.f32.mrf.mxu0
    %v932 = vadd.f32 %v575, %v931
    %933 = vmatmul.f32.gmra.mxu0 %v726
    %v934 = vpop.f32.mrf.mxu0
    %v935 = vadd.f32 %v575, %v934
    %936 = vmatmul.f32.gmra.mxu0 %v729
    %v937 = vpop.f32.mrf.mxu0
    %v938 = vadd.f32 %v575, %v937
    %939 = vmatmul.f32.gmra.mxu0 %v732
    %v940 = vpop.f32.mrf.mxu0
    %v941 = vadd.f32 %v575, %v940
    %942 = vmatmul.f32.gmra.mxu0 %v735
    %v943 = vpop.f32.mrf.mxu0
    %v944 = vadd.f32 %v575, %v943
    %945 = vmatmul.f32.gmra.mxu0 %v738
    %v946 = vpop.f32.mrf.mxu0
    %v947 = vadd.f32 %v575, %v946
    %948 = vmatmul.f32.gmra.mxu0 %v741
    %v949 = vpop.f32.mrf.mxu0
    %v950 = vadd.f32 %v575, %v949
    %951 = vmatmul.f32.gmra.mxu0 %v744
    %v952 = vpop.f32.mrf.mxu0
    %v953 = vadd.f32 %v575, %v952
    %954 = vmatmul.f32.gmra.mxu0 %v747
    %v955 = vpop.f32.mrf.mxu0
    %v956 = vadd.f32 %v575, %v955
    %957 = vmatmul.f32.gmra.mxu0 %v750
    %v958 = vpop.f32.mrf.mxu0
    %v959 = vadd.f32 %v575, %v958
    %960 = vmatmul.f32.gmra.mxu0 %v753
    %v961 = vpop.f32.mrf.mxu0
    %v962 = vadd.f32 %v575, %v961
    %963 = vmatmul.f32.gmra.mxu0 %v756
    %v964 = vpop.f32.mrf.mxu0
    %v965 = vadd.f32 %v575, %v964
    %966 = vmatmul.f32.gmra.mxu0 %v759
    %v967 = vpop.f32.mrf.mxu0
    %v968 = vadd.f32 %v575, %v967
    %969 = vmatmul.f32.gmra.mxu0 %v762
    %v970 = vpop.f32.mrf.mxu0
    %v971 = vadd.f32 %v575, %v970
    %972 = vmatmul.f32.gmra.mxu0 %v765
    %v973 = vpop.f32.mrf.mxu0
    %v974 = vadd.f32 %v575, %v973
    %975 = vmatmul.f32.gmra.mxu0 %v768
    %v976 = vpop.f32.mrf.mxu0
    %v977 = vadd.f32 %v575, %v976
    %978 = vdwg.mxu0
    %v979 = vmax.f32 %v788, 0.0
    %v980 = vmax.f32 %v791, 0.0
    %v981 = vmax.f32 %v794, 0.0
    %v982 = vmax.f32 %v797, 0.0
    %v983 = vmax.f32 %v800, 0.0
    %v984 = vmax.f32 %v803, 0.0
    %v985 = vmax.f32 %v806, 0.0
    %v986 = vmax.f32 %v809, 0.0
    %v987 = vmax.f32 %v812, 0.0
    %v988 = vmax.f32 %v815, 0.0
    %v989 = vmax.f32 %v818, 0.0
    %v990 = vmax.f32 %v821, 0.0
    %v991 = vmax.f32 %v824, 0.0
    %v992 = vmax.f32 %v827, 0.0
    %v993 = vmax.f32 %v830, 0.0
    %v994 = vmax.f32 %v833, 0.0
    %v995 = vmax.f32 %v836, 0.0
    %v996 = vmax.f32 %v839, 0.0
    %v997 = vmax.f32 %v842, 0.0
    %v998 = vmax.f32 %v845, 0.0
    %v999 = vmax.f32 %v848, 0.0
    %v1000 = vmax.f32 %v851, 0.0
    %v1001 = vmax.f32 %v854, 0.0
    %v1002 = vmax.f32 %v857, 0.0
    %v1003 = vmax.f32 %v860, 0.0
    %v1004 = vmax.f32 %v863, 0.0
    %v1005 = vmax.f32 %v866, 0.0
    %v1006 = vmax.f32 %v869, 0.0
    %v1007 = vmax.f32 %v872, 0.0
    %v1008 = vmax.f32 %v875, 0.0
    %v1009 = vmax.f32 %v878, 0.0
    %v1010 = vmax.f32 %v881, 0.0
    %v1011 = vmax.f32 %v884, 0.0
    %v1012 = vmax.f32 %v887, 0.0
    %v1013 = vmax.f32 %v890, 0.0
    %v1014 = vmax.f32 %v893, 0.0
    %v1015 = vmax.f32 %v896, 0.0
    %v1016 = vmax.f32 %v899, 0.0
    %v1017 = vmax.f32 %v902, 0.0
    %v1018 = vmax.f32 %v905, 0.0
    %v1019 = vmax.f32 %v908, 0.0
    %v1020 = vmax.f32 %v911, 0.0
    %v1021 = vmax.f32 %v914, 0.0
    %v1022 = vmax.f32 %v917, 0.0
    %v1023 = vmax.f32 %v920, 0.0
    %v1024 = vmax.f32 %v923, 0.0
    %v1025 = vmax.f32 %v926, 0.0
    %v1026 = vmax.f32 %v929, 0.0
    %v1027 = vmax.f32 %v932, 0.0
    %v1028 = vmax.f32 %v935, 0.0
    %v1029 = vmax.f32 %v938, 0.0
    %v1030 = vmax.f32 %v941, 0.0
    %v1031 = vmax.f32 %v944, 0.0
    %v1032 = vmax.f32 %v947, 0.0
    %v1033 = vmax.f32 %v950, 0.0
    %v1034 = vmax.f32 %v953, 0.0
    %v1035 = vmax.f32 %v956, 0.0
    %v1036 = vmax.f32 %v959, 0.0
    %v1037 = vmax.f32 %v962, 0.0
    %v1038 = vmax.f32 %v965, 0.0
    %v1039 = vmax.f32 %v968, 0.0
    %v1040 = vmax.f32 %v971, 0.0
    %v1041 = vmax.f32 %v974, 0.0
    %v1042 = vmax.f32 %v977, 0.0
    %s1043 = scalar_lea.vmem %s3, 32
    %v1044 = vld [vmem:[%s1043] sm:$0xff]
    %v1045 = vld [vmem:[%s1043 + $0x8] sm:$0xff]
    %v1046 = vld [vmem:[%s1043 + $0x10] sm:$0xff]
    %v1047 = vld [vmem:[%s1043 + $0x18] sm:$0xff]
    %s1048 = scalar_lea.vmem %s4, 1
    %v1049 = vld [vmem:[%s1048] sm:$0x1]
    %v1051 = vperm.slane %v1049, 0
    %v1054 = vsel %vm577, %v979, 0
    %v1057 = vsel %vm577, %v980, 0
    %v1060 = vsel %vm577, %v981, 0
    %v1063 = vsel %vm577, %v982, 0
    %v1066 = vsel %vm577, %v983, 0
    %v1069 = vsel %vm577, %v984, 0
    %v1072 = vsel %vm577, %v985, 0
    %v1075 = vsel %vm577, %v986, 0
    %v1078 = vsel %vm577, %v987, 0
    %v1081 = vsel %vm577, %v988, 0
    %v1084 = vsel %vm577, %v989, 0
    %v1087 = vsel %vm577, %v990, 0
    %v1090 = vsel %vm577, %v991, 0
    %v1093 = vsel %vm577, %v992, 0
    %v1096 = vsel %vm577, %v993, 0
    %v1099 = vsel %vm577, %v994, 0
    %v1102 = vsel %vm577, %v995, 0
    %v1105 = vsel %vm577, %v996, 0
    %v1108 = vsel %vm577, %v997, 0
    %v1111 = vsel %vm577, %v998, 0
    %v1114 = vsel %vm577, %v999, 0
    %v1117 = vsel %vm577, %v1000, 0
    %v1120 = vsel %vm577, %v1001, 0
    %v1123 = vsel %vm577, %v1002, 0
    %v1126 = vsel %vm577, %v1003, 0
    %v1129 = vsel %vm577, %v1004, 0
    %v1132 = vsel %vm577, %v1005, 0
    %v1135 = vsel %vm577, %v1006, 0
    %v1138 = vsel %vm577, %v1007, 0
    %v1141 = vsel %vm577, %v1008, 0
    %v1144 = vsel %vm577, %v1009, 0
    %v1147 = vsel %vm577, %v1010, 0
    %v1150 = vsel %vm577, %v1011, 0
    %v1153 = vsel %vm577, %v1012, 0
    %v1156 = vsel %vm577, %v1013, 0
    %v1159 = vsel %vm577, %v1014, 0
    %v1162 = vsel %vm577, %v1015, 0
    %v1165 = vsel %vm577, %v1016, 0
    %v1168 = vsel %vm577, %v1017, 0
    %v1171 = vsel %vm577, %v1018, 0
    %v1174 = vsel %vm577, %v1019, 0
    %v1177 = vsel %vm577, %v1020, 0
    %v1180 = vsel %vm577, %v1021, 0
    %v1183 = vsel %vm577, %v1022, 0
    %v1186 = vsel %vm577, %v1023, 0
    %v1189 = vsel %vm577, %v1024, 0
    %v1192 = vsel %vm577, %v1025, 0
    %v1195 = vsel %vm577, %v1026, 0
    %v1198 = vsel %vm577, %v1027, 0
    %v1201 = vsel %vm577, %v1028, 0
    %v1204 = vsel %vm577, %v1029, 0
    %v1207 = vsel %vm577, %v1030, 0
    %v1210 = vsel %vm577, %v1031, 0
    %v1213 = vsel %vm577, %v1032, 0
    %v1216 = vsel %vm577, %v1033, 0
    %v1219 = vsel %vm577, %v1034, 0
    %v1222 = vsel %vm577, %v1035, 0
    %v1225 = vsel %vm577, %v1036, 0
    %v1228 = vsel %vm577, %v1037, 0
    %v1231 = vsel %vm577, %v1038, 0
    %v1234 = vsel %vm577, %v1039, 0
    %v1237 = vsel %vm577, %v1040, 0
    %v1240 = vsel %vm577, %v1041, 0
    %v1243 = vsel %vm577, %v1042, 0
    %1245 = vmatpush.msra.mxu0 0.0
    %1246 = vmatpush.msra.mxu0 0.0
    %1247 = vmatpush.msra.mxu0 0.0
    %1248 = vmatpush.msra.mxu0 0.0
    %1249 = vmatpush.msra.mxu0 0.0
    %1250 = vmatpush.msra.mxu0 0.0
    %1251 = vmatpush.msra.mxu0 0.0
    %1252 = vmatpush.msra.mxu0 0.0
    %1253 = vmatpush.msra.mxu0 0.0
    %1254 = vmatpush.msra.mxu0 0.0
    %1255 = vmatpush.msra.mxu0 0.0
    %1256 = vmatpush.msra.mxu0 0.0
    %1257 = vmatpush.msra.mxu0 %v1047
    %1258 = vmatpush.msra.mxu0 %v1046
    %1259 = vmatpush.msra.mxu0 %v1045
    %1260 = vmatpush.msra.mxu0 %v1044
    %1261 = vmatmul.f32.gmra.mxu0 %v1054
    %v1262 = vpop.f32.mrf.mxu0
    %v1263 = vadd.f32 %v1051, %v1262
    %1264 = vmatmul.f32.gmra.mxu0 %v1057
    %v1265 = vpop.f32.mrf.mxu0
    %v1266 = vadd.f32 %v1051, %v1265
    %1267 = vmatmul.f32.gmra.mxu0 %v1060
    %v1268 = vpop.f32.mrf.mxu0
    %v1269 = vadd.f32 %v1051, %v1268
    %1270 = vmatmul.f32.gmra.mxu0 %v1063
    %v1271 = vpop.f32.mrf.mxu0
    %v1272 = vadd.f32 %v1051, %v1271
    %1273 = vmatmul.f32.gmra.mxu0 %v1066
    %v1274 = vpop.f32.mrf.mxu0
    %v1275 = vadd.f32 %v1051, %v1274
    %1276 = vmatmul.f32.gmra.mxu0 %v1069
    %v1277 = vpop.f32.mrf.mxu0
    %v1278 = vadd.f32 %v1051, %v1277
    %1279 = vmatmul.f32.gmra.mxu0 %v1072
    %v1280 = vpop.f32.mrf.mxu0
    %v1281 = vadd.f32 %v1051, %v1280
    %1282 = vmatmul.f32.gmra.mxu0 %v1075
    %v1283 = vpop.f32.mrf.mxu0
    %v1284 = vadd.f32 %v1051, %v1283
    %1285 = vmatmul.f32.gmra.mxu0 %v1078
    %v1286 = vpop.f32.mrf.mxu0
    %v1287 = vadd.f32 %v1051, %v1286
    %1288 = vmatmul.f32.gmra.mxu0 %v1081
    %v1289 = vpop.f32.mrf.mxu0
    %v1290 = vadd.f32 %v1051, %v1289
    %1291 = vmatmul.f32.gmra.mxu0 %v1084
    %v1292 = vpop.f32.mrf.mxu0
    %v1293 = vadd.f32 %v1051, %v1292
    %1294 = vmatmul.f32.gmra.mxu0 %v1087
    %v1295 = vpop.f32.mrf.mxu0
    %v1296 = vadd.f32 %v1051, %v1295
    %1297 = vmatmul.f32.gmra.mxu0 %v1090
    %v1298 = vpop.f32.mrf.mxu0
    %v1299 = vadd.f32 %v1051, %v1298
    %1300 = vmatmul.f32.gmra.mxu0 %v1093
    %v1301 = vpop.f32.mrf.mxu0
    %v1302 = vadd.f32 %v1051, %v1301
    %1303 = vmatmul.f32.gmra.mxu0 %v1096
    %v1304 = vpop.f32.mrf.mxu0
    %v1305 = vadd.f32 %v1051, %v1304
    %1306 = vmatmul.f32.gmra.mxu0 %v1099
    %v1307 = vpop.f32.mrf.mxu0
    %v1308 = vadd.f32 %v1051, %v1307
    %1309 = vmatmul.f32.gmra.mxu0 %v1102
    %v1310 = vpop.f32.mrf.mxu0
    %v1311 = vadd.f32 %v1051, %v1310
    %1312 = vmatmul.f32.gmra.mxu0 %v1105
    %v1313 = vpop.f32.mrf.mxu0
    %v1314 = vadd.f32 %v1051, %v1313
    %1315 = vmatmul.f32.gmra.mxu0 %v1108
    %v1316 = vpop.f32.mrf.mxu0
    %v1317 = vadd.f32 %v1051, %v1316
    %1318 = vmatmul.f32.gmra.mxu0 %v1111
    %v1319 = vpop.f32.mrf.mxu0
    %v1320 = vadd.f32 %v1051, %v1319
    %1321 = vmatmul.f32.gmra.mxu0 %v1114
    %v1322 = vpop.f32.mrf.mxu0
    %v1323 = vadd.f32 %v1051, %v1322
    %1324 = vmatmul.f32.gmra.mxu0 %v1117
    %v1325 = vpop.f32.mrf.mxu0
    %v1326 = vadd.f32 %v1051, %v1325
    %1327 = vmatmul.f32.gmra.mxu0 %v1120
    %v1328 = vpop.f32.mrf.mxu0
    %v1329 = vadd.f32 %v1051, %v1328
    %1330 = vmatmul.f32.gmra.mxu0 %v1123
    %v1331 = vpop.f32.mrf.mxu0
    %v1332 = vadd.f32 %v1051, %v1331
    %1333 = vmatmul.f32.gmra.mxu0 %v1126
    %v1334 = vpop.f32.mrf.mxu0
    %v1335 = vadd.f32 %v1051, %v1334
    %1336 = vmatmul.f32.gmra.mxu0 %v1129
    %v1337 = vpop.f32.mrf.mxu0
    %v1338 = vadd.f32 %v1051, %v1337
    %1339 = vmatmul.f32.gmra.mxu0 %v1132
    %v1340 = vpop.f32.mrf.mxu0
    %v1341 = vadd.f32 %v1051, %v1340
    %1342 = vmatmul.f32.gmra.mxu0 %v1135
    %v1343 = vpop.f32.mrf.mxu0
    %v1344 = vadd.f32 %v1051, %v1343
    %1345 = vmatmul.f32.gmra.mxu0 %v1138
    %v1346 = vpop.f32.mrf.mxu0
    %v1347 = vadd.f32 %v1051, %v1346
    %1348 = vmatmul.f32.gmra.mxu0 %v1141
    %v1349 = vpop.f32.mrf.mxu0
    %v1350 = vadd.f32 %v1051, %v1349
    %1351 = vmatmul.f32.gmra.mxu0 %v1144
    %v1352 = vpop.f32.mrf.mxu0
    %v1353 = vadd.f32 %v1051, %v1352
    %1354 = vmatmul.f32.gmra.mxu0 %v1147
    %v1355 = vpop.f32.mrf.mxu0
    %v1356 = vadd.f32 %v1051, %v1355
    %1357 = vmatmul.f32.gmra.mxu0 %v1150
    %v1358 = vpop.f32.mrf.mxu0
    %v1359 = vadd.f32 %v1051, %v1358
    %1360 = vmatmul.f32.gmra.mxu0 %v1153
    %v1361 = vpop.f32.mrf.mxu0
    %v1362 = vadd.f32 %v1051, %v1361
    %1363 = vmatmul.f32.gmra.mxu0 %v1156
    %v1364 = vpop.f32.mrf.mxu0
    %v1365 = vadd.f32 %v1051, %v1364
    %1366 = vmatmul.f32.gmra.mxu0 %v1159
    %v1367 = vpop.f32.mrf.mxu0
    %v1368 = vadd.f32 %v1051, %v1367
    %1369 = vmatmul.f32.gmra.mxu0 %v1162
    %v1370 = vpop.f32.mrf.mxu0
    %v1371 = vadd.f32 %v1051, %v1370
    %1372 = vmatmul.f32.gmra.mxu0 %v1165
    %v1373 = vpop.f32.mrf.mxu0
    %v1374 = vadd.f32 %v1051, %v1373
    %1375 = vmatmul.f32.gmra.mxu0 %v1168
    %v1376 = vpop.f32.mrf.mxu0
    %v1377 = vadd.f32 %v1051, %v1376
    %1378 = vmatmul.f32.gmra.mxu0 %v1171
    %v1379 = vpop.f32.mrf.mxu0
    %v1380 = vadd.f32 %v1051, %v1379
    %1381 = vmatmul.f32.gmra.mxu0 %v1174
    %v1382 = vpop.f32.mrf.mxu0
    %v1383 = vadd.f32 %v1051, %v1382
    %1384 = vmatmul.f32.gmra.mxu0 %v1177
    %v1385 = vpop.f32.mrf.mxu0
    %v1386 = vadd.f32 %v1051, %v1385
    %1387 = vmatmul.f32.gmra.mxu0 %v1180
    %v1388 = vpop.f32.mrf.mxu0
    %v1389 = vadd.f32 %v1051, %v1388
    %1390 = vmatmul.f32.gmra.mxu0 %v1183
    %v1391 = vpop.f32.mrf.mxu0
    %v1392 = vadd.f32 %v1051, %v1391
    %1393 = vmatmul.f32.gmra.mxu0 %v1186
    %v1394 = vpop.f32.mrf.mxu0
    %v1395 = vadd.f32 %v1051, %v1394
    %1396 = vmatmul.f32.gmra.mxu0 %v1189
    %v1397 = vpop.f32.mrf.mxu0
    %v1398 = vadd.f32 %v1051, %v1397
    %1399 = vmatmul.f32.gmra.mxu0 %v1192
    %v1400 = vpop.f32.mrf.mxu0
    %v1401 = vadd.f32 %v1051, %v1400
    %1402 = vmatmul.f32.gmra.mxu0 %v1195
    %v1403 = vpop.f32.mrf.mxu0
    %v1404 = vadd.f32 %v1051, %v1403
    %1405 = vmatmul.f32.gmra.mxu0 %v1198
    %v1406 = vpop.f32.mrf.mxu0
    %v1407 = vadd.f32 %v1051, %v1406
    %1408 = vmatmul.f32.gmra.mxu0 %v1201
    %v1409 = vpop.f32.mrf.mxu0
    %v1410 = vadd.f32 %v1051, %v1409
    %1411 = vmatmul.f32.gmra.mxu0 %v1204
    %v1412 = vpop.f32.mrf.mxu0
    %v1413 = vadd.f32 %v1051, %v1412
    %1414 = vmatmul.f32.gmra.mxu0 %v1207
    %v1415 = vpop.f32.mrf.mxu0
    %v1416 = vadd.f32 %v1051, %v1415
    %1417 = vmatmul.f32.gmra.mxu0 %v1210
    %v1418 = vpop.f32.mrf.mxu0
    %v1419 = vadd.f32 %v1051, %v1418
    %1420 = vmatmul.f32.gmra.mxu0 %v1213
    %v1421 = vpop.f32.mrf.mxu0
    %v1422 = vadd.f32 %v1051, %v1421
    %1423 = vmatmul.f32.gmra.mxu0 %v1216
    %v1424 = vpop.f32.mrf.mxu0
    %v1425 = vadd.f32 %v1051, %v1424
    %1426 = vmatmul.f32.gmra.mxu0 %v1219
    %v1427 = vpop.f32.mrf.mxu0
    %v1428 = vadd.f32 %v1051, %v1427
    %1429 = vmatmul.f32.gmra.mxu0 %v1222
    %v1430 = vpop.f32.mrf.mxu0
    %v1431 = vadd.f32 %v1051, %v1430
    %1432 = vmatmul.f32.gmra.mxu0 %v1225
    %v1433 = vpop.f32.mrf.mxu0
    %v1434 = vadd.f32 %v1051, %v1433
    %1435 = vmatmul.f32.gmra.mxu0 %v1228
    %v1436 = vpop.f32.mrf.mxu0
    %v1437 = vadd.f32 %v1051, %v1436
    %1438 = vmatmul.f32.gmra.mxu0 %v1231
    %v1439 = vpop.f32.mrf.mxu0
    %v1440 = vadd.f32 %v1051, %v1439
    %1441 = vmatmul.f32.gmra.mxu0 %v1234
    %v1442 = vpop.f32.mrf.mxu0
    %v1443 = vadd.f32 %v1051, %v1442
    %1444 = vmatmul.f32.gmra.mxu0 %v1237
    %v1445 = vpop.f32.mrf.mxu0
    %v1446 = vadd.f32 %v1051, %v1445
    %1447 = vmatmul.f32.gmra.mxu0 %v1240
    %v1448 = vpop.f32.mrf.mxu0
    %v1449 = vadd.f32 %v1051, %v1448
    %1450 = vmatmul.f32.gmra.mxu0 %v1243
    %v1451 = vpop.f32.mrf.mxu0
    %v1452 = vadd.f32 %v1051, %v1451
    %1453 = vdwg.mxu0
    %v1454 = vmax.f32 %v1263, 0.0
    %v1455 = vmax.f32 %v1266, 0.0
    %v1456 = vmax.f32 %v1269, 0.0
    %v1457 = vmax.f32 %v1272, 0.0
    %v1458 = vmax.f32 %v1275, 0.0
    %v1459 = vmax.f32 %v1278, 0.0
    %v1460 = vmax.f32 %v1281, 0.0
    %v1461 = vmax.f32 %v1284, 0.0
    %v1462 = vmax.f32 %v1287, 0.0
    %v1463 = vmax.f32 %v1290, 0.0
    %v1464 = vmax.f32 %v1293, 0.0
    %v1465 = vmax.f32 %v1296, 0.0
    %v1466 = vmax.f32 %v1299, 0.0
    %v1467 = vmax.f32 %v1302, 0.0
    %v1468 = vmax.f32 %v1305, 0.0
    %v1469 = vmax.f32 %v1308, 0.0
    %v1470 = vmax.f32 %v1311, 0.0
    %v1471 = vmax.f32 %v1314, 0.0
    %v1472 = vmax.f32 %v1317, 0.0
    %v1473 = vmax.f32 %v1320, 0.0
    %v1474 = vmax.f32 %v1323, 0.0
    %v1475 = vmax.f32 %v1326, 0.0
    %v1476 = vmax.f32 %v1329, 0.0
    %v1477 = vmax.f32 %v1332, 0.0
    %v1478 = vmax.f32 %v1335, 0.0
    %v1479 = vmax.f32 %v1338, 0.0
    %v1480 = vmax.f32 %v1341, 0.0
    %v1481 = vmax.f32 %v1344, 0.0
    %v1482 = vmax.f32 %v1347, 0.0
    %v1483 = vmax.f32 %v1350, 0.0
    %v1484 = vmax.f32 %v1353, 0.0
    %v1485 = vmax.f32 %v1356, 0.0
    %v1486 = vmax.f32 %v1359, 0.0
    %v1487 = vmax.f32 %v1362, 0.0
    %v1488 = vmax.f32 %v1365, 0.0
    %v1489 = vmax.f32 %v1368, 0.0
    %v1490 = vmax.f32 %v1371, 0.0
    %v1491 = vmax.f32 %v1374, 0.0
    %v1492 = vmax.f32 %v1377, 0.0
    %v1493 = vmax.f32 %v1380, 0.0
    %v1494 = vmax.f32 %v1383, 0.0
    %v1495 = vmax.f32 %v1386, 0.0
    %v1496 = vmax.f32 %v1389, 0.0
    %v1497 = vmax.f32 %v1392, 0.0
    %v1498 = vmax.f32 %v1395, 0.0
    %v1499 = vmax.f32 %v1398, 0.0
    %v1500 = vmax.f32 %v1401, 0.0
    %v1501 = vmax.f32 %v1404, 0.0
    %v1502 = vmax.f32 %v1407, 0.0
    %v1503 = vmax.f32 %v1410, 0.0
    %v1504 = vmax.f32 %v1413, 0.0
    %v1505 = vmax.f32 %v1416, 0.0
    %v1506 = vmax.f32 %v1419, 0.0
    %v1507 = vmax.f32 %v1422, 0.0
    %v1508 = vmax.f32 %v1425, 0.0
    %v1509 = vmax.f32 %v1428, 0.0
    %v1510 = vmax.f32 %v1431, 0.0
    %v1511 = vmax.f32 %v1434, 0.0
    %v1512 = vmax.f32 %v1437, 0.0
    %v1513 = vmax.f32 %v1440, 0.0
    %v1514 = vmax.f32 %v1443, 0.0
    %v1515 = vmax.f32 %v1446, 0.0
    %v1516 = vmax.f32 %v1449, 0.0
    %v1517 = vmax.f32 %v1452, 0.0
    %v1518 = vadd.f32 %v1454, %v979
    %v1519 = vadd.f32 %v1455, %v980
    %v1520 = vadd.f32 %v1456, %v981
    %v1521 = vadd.f32 %v1457, %v982
    %v1522 = vadd.f32 %v1458, %v983
    %v1523 = vadd.f32 %v1459, %v984
    %v1524 = vadd.f32 %v1460, %v985
    %v1525 = vadd.f32 %v1461, %v986
    %v1526 = vadd.f32 %v1462, %v987
    %v1527 = vadd.f32 %v1463, %v988
    %v1528 = vadd.f32 %v1464, %v989
    %v1529 = vadd.f32 %v1465, %v990
    %v1530 = vadd.f32 %v1466, %v991
    %v1531 = vadd.f32 %v1467, %v992
    %v1532 = vadd.f32 %v1468, %v993
    %v1533 = vadd.f32 %v1469, %v994
    %v1534 = vadd.f32 %v1470, %v995
    %v1535 = vadd.f32 %v1471, %v996
    %v1536 = vadd.f32 %v1472, %v997
    %v1537 = vadd.f32 %v1473, %v998
    %v1538 = vadd.f32 %v1474, %v999
    %v1539 = vadd.f32 %v1475, %v1000
    %v1540 = vadd.f32 %v1476, %v1001
    %v1541 = vadd.f32 %v1477, %v1002
    %v1542 = vadd.f32 %v1478, %v1003
    %v1543 = vadd.f32 %v1479, %v1004
    %v1544 = vadd.f32 %v1480, %v1005
    %v1545 = vadd.f32 %v1481, %v1006
    %v1546 = vadd.f32 %v1482, %v1007
    %v1547 = vadd.f32 %v1483, %v1008
    %v1548 = vadd.f32 %v1484, %v1009
    %v1549 = vadd.f32 %v1485, %v1010
    %v1550 = vadd.f32 %v1486, %v1011
    %v1551 = vadd.f32 %v1487, %v1012
    %v1552 = vadd.f32 %v1488, %v1013
    %v1553 = vadd.f32 %v1489, %v1014
    %v1554 = vadd.f32 %v1490, %v1015
    %v1555 = vadd.f32 %v1491, %v1016
    %v1556 = vadd.f32 %v1492, %v1017
    %v1557 = vadd.f32 %v1493, %v1018
    %v1558 = vadd.f32 %v1494, %v1019
    %v1559 = vadd.f32 %v1495, %v1020
    %v1560 = vadd.f32 %v1496, %v1021
    %v1561 = vadd.f32 %v1497, %v1022
    %v1562 = vadd.f32 %v1498, %v1023
    %v1563 = vadd.f32 %v1499, %v1024
    %v1564 = vadd.f32 %v1500, %v1025
    %v1565 = vadd.f32 %v1501, %v1026
    %v1566 = vadd.f32 %v1502, %v1027
    %v1567 = vadd.f32 %v1503, %v1028
    %v1568 = vadd.f32 %v1504, %v1029
    %v1569 = vadd.f32 %v1505, %v1030
    %v1570 = vadd.f32 %v1506, %v1031
    %v1571 = vadd.f32 %v1507, %v1032
    %v1572 = vadd.f32 %v1508, %v1033
    %v1573 = vadd.f32 %v1509, %v1034
    %v1574 = vadd.f32 %v1510, %v1035
    %v1575 = vadd.f32 %v1511, %v1036
    %v1576 = vadd.f32 %v1512, %v1037
    %v1577 = vadd.f32 %v1513, %v1038
    %v1578 = vadd.f32 %v1514, %v1039
    %v1579 = vadd.f32 %v1515, %v1040
    %v1580 = vadd.f32 %v1516, %v1041
    %v1581 = vadd.f32 %v1517, %v1042
    %s1582 = scalar_lea.vmem %s3, 64
    %v1583 = vld [vmem:[%s1582] sm:$0xff]
    %v1584 = vld [vmem:[%s1582 + $0x8] sm:$0xff]
    %v1585 = vld [vmem:[%s1582 + $0x10] sm:$0xff]
    %v1586 = vld [vmem:[%s1582 + $0x18] sm:$0xff]
    %s1587 = scalar_lea.vmem %s4, 2
    %v1588 = vld [vmem:[%s1587] sm:$0x1]
    %v1590 = vperm.slane %v1588, 0
    %v1593 = vsel %vm577, %v1518, 0
    %v1596 = vsel %vm577, %v1519, 0
    %v1599 = vsel %vm577, %v1520, 0
    %v1602 = vsel %vm577, %v1521, 0
    %v1605 = vsel %vm577, %v1522, 0
    %v1608 = vsel %vm577, %v1523, 0
    %v1611 = vsel %vm577, %v1524, 0
    %v1614 = vsel %vm577, %v1525, 0
    %v1617 = vsel %vm577, %v1526, 0
    %v1620 = vsel %vm577, %v1527, 0
    %v1623 = vsel %vm577, %v1528, 0
    %v1626 = vsel %vm577, %v1529, 0
    %v1629 = vsel %vm577, %v1530, 0
    %v1632 = vsel %vm577, %v1531, 0
    %v1635 = vsel %vm577, %v1532, 0
    %v1638 = vsel %vm577, %v1533, 0
    %v1641 = vsel %vm577, %v1534, 0
    %v1644 = vsel %vm577, %v1535, 0
    %v1647 = vsel %vm577, %v1536, 0
    %v1650 = vsel %vm577, %v1537, 0
    %v1653 = vsel %vm577, %v1538, 0
    %v1656 = vsel %vm577, %v1539, 0
    %v1659 = vsel %vm577, %v1540, 0
    %v1662 = vsel %vm577, %v1541, 0
    %v1665 = vsel %vm577, %v1542, 0
    %v1668 = vsel %vm577, %v1543, 0
    %v1671 = vsel %vm577, %v1544, 0
    %v1674 = vsel %vm577, %v1545, 0
    %v1677 = vsel %vm577, %v1546, 0
    %v1680 = vsel %vm577, %v1547, 0
    %v1683 = vsel %vm577, %v1548, 0
    %v1686 = vsel %vm577, %v1549, 0
    %v1689 = vsel %vm577, %v1550, 0
    %v1692 = vsel %vm577, %v1551, 0
    %v1695 = vsel %vm577, %v1552, 0
    %v1698 = vsel %vm577, %v1553, 0
    %v1701 = vsel %vm577, %v1554, 0
    %v1704 = vsel %vm577, %v1555, 0
    %v1707 = vsel %vm577, %v1556, 0
    %v1710 = vsel %vm577, %v1557, 0
    %v1713 = vsel %vm577, %v1558, 0
    %v1716 = vsel %vm577, %v1559, 0
    %v1719 = vsel %vm577, %v1560, 0
    %v1722 = vsel %vm577, %v1561, 0
    %v1725 = vsel %vm577, %v1562, 0
    %v1728 = vsel %vm577, %v1563, 0
    %v1731 = vsel %vm577, %v1564, 0
    %v1734 = vsel %vm577, %v1565, 0
    %v1737 = vsel %vm577, %v1566, 0
    %v1740 = vsel %vm577, %v1567, 0
    %v1743 = vsel %vm577, %v1568, 0
    %v1746 = vsel %vm577, %v1569, 0
    %v1749 = vsel %vm577, %v1570, 0
    %v1752 = vsel %vm577, %v1571, 0
    %v1755 = vsel %vm577, %v1572, 0
    %v1758 = vsel %vm577, %v1573, 0
    %v1761 = vsel %vm577, %v1574, 0
    %v1764 = vsel %vm577, %v1575, 0
    %v1767 = vsel %vm577, %v1576, 0
    %v1770 = vsel %vm577, %v1577, 0
    %v1773 = vsel %vm577, %v1578, 0
    %v1776 = vsel %vm577, %v1579, 0
    %v1779 = vsel %vm577, %v1580, 0
    %v1782 = vsel %vm577, %v1581, 0
    %1784 = vmatpush.msra.mxu0 0.0
    %1785 = vmatpush.msra.mxu0 0.0
    %1786 = vmatpush.msra.mxu0 0.0
    %1787 = vmatpush.msra.mxu0 0.0
    %1788 = vmatpush.msra.mxu0 0.0
    %1789 = vmatpush.msra.mxu0 0.0
    %1790 = vmatpush.msra.mxu0 0.0
    %1791 = vmatpush.msra.mxu0 0.0
    %1792 = vmatpush.msra.mxu0 0.0
    %1793 = vmatpush.msra.mxu0 0.0
    %1794 = vmatpush.msra.mxu0 0.0
    %1795 = vmatpush.msra.mxu0 0.0
    %1796 = vmatpush.msra.mxu0 %v1586
    %1797 = vmatpush.msra.mxu0 %v1585
    %1798 = vmatpush.msra.mxu0 %v1584
    %1799 = vmatpush.msra.mxu0 %v1583
    %1800 = vmatmul.f32.gmra.mxu0 %v1593
    %v1801 = vpop.f32.mrf.mxu0
    %v1802 = vadd.f32 %v1590, %v1801
    %1803 = vmatmul.f32.gmra.mxu0 %v1596
    %v1804 = vpop.f32.mrf.mxu0
    %v1805 = vadd.f32 %v1590, %v1804
    %1806 = vmatmul.f32.gmra.mxu0 %v1599
    %v1807 = vpop.f32.mrf.mxu0
    %v1808 = vadd.f32 %v1590, %v1807
    %1809 = vmatmul.f32.gmra.mxu0 %v1602
    %v1810 = vpop.f32.mrf.mxu0
    %v1811 = vadd.f32 %v1590, %v1810
    %1812 = vmatmul.f32.gmra.mxu0 %v1605
    %v1813 = vpop.f32.mrf.mxu0
    %v1814 = vadd.f32 %v1590, %v1813
    %1815 = vmatmul.f32.gmra.mxu0 %v1608
    %v1816 = vpop.f32.mrf.mxu0
    %v1817 = vadd.f32 %v1590, %v1816
    %1818 = vmatmul.f32.gmra.mxu0 %v1611
    %v1819 = vpop.f32.mrf.mxu0
    %v1820 = vadd.f32 %v1590, %v1819
    %1821 = vmatmul.f32.gmra.mxu0 %v1614
    %v1822 = vpop.f32.mrf.mxu0
    %v1823 = vadd.f32 %v1590, %v1822
    %1824 = vmatmul.f32.gmra.mxu0 %v1617
    %v1825 = vpop.f32.mrf.mxu0
    %v1826 = vadd.f32 %v1590, %v1825
    %1827 = vmatmul.f32.gmra.mxu0 %v1620
    %v1828 = vpop.f32.mrf.mxu0
    %v1829 = vadd.f32 %v1590, %v1828
    %1830 = vmatmul.f32.gmra.mxu0 %v1623
    %v1831 = vpop.f32.mrf.mxu0
    %v1832 = vadd.f32 %v1590, %v1831
    %1833 = vmatmul.f32.gmra.mxu0 %v1626
    %v1834 = vpop.f32.mrf.mxu0
    %v1835 = vadd.f32 %v1590, %v1834
    %1836 = vmatmul.f32.gmra.mxu0 %v1629
    %v1837 = vpop.f32.mrf.mxu0
    %v1838 = vadd.f32 %v1590, %v1837
    %1839 = vmatmul.f32.gmra.mxu0 %v1632
    %v1840 = vpop.f32.mrf.mxu0
    %v1841 = vadd.f32 %v1590, %v1840
    %1842 = vmatmul.f32.gmra.mxu0 %v1635
    %v1843 = vpop.f32.mrf.mxu0
    %v1844 = vadd.f32 %v1590, %v1843
    %1845 = vmatmul.f32.gmra.mxu0 %v1638
    %v1846 = vpop.f32.mrf.mxu0
    %v1847 = vadd.f32 %v1590, %v1846
    %1848 = vmatmul.f32.gmra.mxu0 %v1641
    %v1849 = vpop.f32.mrf.mxu0
    %v1850 = vadd.f32 %v1590, %v1849
    %1851 = vmatmul.f32.gmra.mxu0 %v1644
    %v1852 = vpop.f32.mrf.mxu0
    %v1853 = vadd.f32 %v1590, %v1852
    %1854 = vmatmul.f32.gmra.mxu0 %v1647
    %v1855 = vpop.f32.mrf.mxu0
    %v1856 = vadd.f32 %v1590, %v1855
    %1857 = vmatmul.f32.gmra.mxu0 %v1650
    %v1858 = vpop.f32.mrf.mxu0
    %v1859 = vadd.f32 %v1590, %v1858
    %1860 = vmatmul.f32.gmra.mxu0 %v1653
    %v1861 = vpop.f32.mrf.mxu0
    %v1862 = vadd.f32 %v1590, %v1861
    %1863 = vmatmul.f32.gmra.mxu0 %v1656
    %v1864 = vpop.f32.mrf.mxu0
    %v1865 = vadd.f32 %v1590, %v1864
    %1866 = vmatmul.f32.gmra.mxu0 %v1659
    %v1867 = vpop.f32.mrf.mxu0
    %v1868 = vadd.f32 %v1590, %v1867
    %1869 = vmatmul.f32.gmra.mxu0 %v1662
    %v1870 = vpop.f32.mrf.mxu0
    %v1871 = vadd.f32 %v1590, %v1870
    %1872 = vmatmul.f32.gmra.mxu0 %v1665
    %v1873 = vpop.f32.mrf.mxu0
    %v1874 = vadd.f32 %v1590, %v1873
    %1875 = vmatmul.f32.gmra.mxu0 %v1668
    %v1876 = vpop.f32.mrf.mxu0
    %v1877 = vadd.f32 %v1590, %v1876
    %1878 = vmatmul.f32.gmra.mxu0 %v1671
    %v1879 = vpop.f32.mrf.mxu0
    %v1880 = vadd.f32 %v1590, %v1879
    %1881 = vmatmul.f32.gmra.mxu0 %v1674
    %v1882 = vpop.f32.mrf.mxu0
    %v1883 = vadd.f32 %v1590, %v1882
    %1884 = vmatmul.f32.gmra.mxu0 %v1677
    %v1885 = vpop.f32.mrf.mxu0
    %v1886 = vadd.f32 %v1590, %v1885
    %1887 = vmatmul.f32.gmra.mxu0 %v1680
    %v1888 = vpop.f32.mrf.mxu0
    %v1889 = vadd.f32 %v1590, %v1888
    %1890 = vmatmul.f32.gmra.mxu0 %v1683
    %v1891 = vpop.f32.mrf.mxu0
    %v1892 = vadd.f32 %v1590, %v1891
    %1893 = vmatmul.f32.gmra.mxu0 %v1686
    %v1894 = vpop.f32.mrf.mxu0
    %v1895 = vadd.f32 %v1590, %v1894
    %1896 = vmatmul.f32.gmra.mxu0 %v1689
    %v1897 = vpop.f32.mrf.mxu0
    %v1898 = vadd.f32 %v1590, %v1897
    %1899 = vmatmul.f32.gmra.mxu0 %v1692
    %v1900 = vpop.f32.mrf.mxu0
    %v1901 = vadd.f32 %v1590, %v1900
    %1902 = vmatmul.f32.gmra.mxu0 %v1695
    %v1903 = vpop.f32.mrf.mxu0
    %v1904 = vadd.f32 %v1590, %v1903
    %1905 = vmatmul.f32.gmra.mxu0 %v1698
    %v1906 = vpop.f32.mrf.mxu0
    %v1907 = vadd.f32 %v1590, %v1906
    %1908 = vmatmul.f32.gmra.mxu0 %v1701
    %v1909 = vpop.f32.mrf.mxu0
    %v1910 = vadd.f32 %v1590, %v1909
    %1911 = vmatmul.f32.gmra.mxu0 %v1704
    %v1912 = vpop.f32.mrf.mxu0
    %v1913 = vadd.f32 %v1590, %v1912
    %1914 = vmatmul.f32.gmra.mxu0 %v1707
    %v1915 = vpop.f32.mrf.mxu0
    %v1916 = vadd.f32 %v1590, %v1915
    %1917 = vmatmul.f32.gmra.mxu0 %v1710
    %v1918 = vpop.f32.mrf.mxu0
    %v1919 = vadd.f32 %v1590, %v1918
    %1920 = vmatmul.f32.gmra.mxu0 %v1713
    %v1921 = vpop.f32.mrf.mxu0
    %v1922 = vadd.f32 %v1590, %v1921
    %1923 = vmatmul.f32.gmra.mxu0 %v1716
    %v1924 = vpop.f32.mrf.mxu0
    %v1925 = vadd.f32 %v1590, %v1924
    %1926 = vmatmul.f32.gmra.mxu0 %v1719
    %v1927 = vpop.f32.mrf.mxu0
    %v1928 = vadd.f32 %v1590, %v1927
    %1929 = vmatmul.f32.gmra.mxu0 %v1722
    %v1930 = vpop.f32.mrf.mxu0
    %v1931 = vadd.f32 %v1590, %v1930
    %1932 = vmatmul.f32.gmra.mxu0 %v1725
    %v1933 = vpop.f32.mrf.mxu0
    %v1934 = vadd.f32 %v1590, %v1933
    %1935 = vmatmul.f32.gmra.mxu0 %v1728
    %v1936 = vpop.f32.mrf.mxu0
    %v1937 = vadd.f32 %v1590, %v1936
    %1938 = vmatmul.f32.gmra.mxu0 %v1731
    %v1939 = vpop.f32.mrf.mxu0
    %v1940 = vadd.f32 %v1590, %v1939
    %1941 = vmatmul.f32.gmra.mxu0 %v1734
    %v1942 = vpop.f32.mrf.mxu0
    %v1943 = vadd.f32 %v1590, %v1942
    %1944 = vmatmul.f32.gmra.mxu0 %v1737
    %v1945 = vpop.f32.mrf.mxu0
    %v1946 = vadd.f32 %v1590, %v1945
    %1947 = vmatmul.f32.gmra.mxu0 %v1740
    %v1948 = vpop.f32.mrf.mxu0
    %v1949 = vadd.f32 %v1590, %v1948
    %1950 = vmatmul.f32.gmra.mxu0 %v1743
    %v1951 = vpop.f32.mrf.mxu0
    %v1952 = vadd.f32 %v1590, %v1951
    %1953 = vmatmul.f32.gmra.mxu0 %v1746
    %v1954 = vpop.f32.mrf.mxu0
    %v1955 = vadd.f32 %v1590, %v1954
    %1956 = vmatmul.f32.gmra.mxu0 %v1749
    %v1957 = vpop.f32.mrf.mxu0
    %v1958 = vadd.f32 %v1590, %v1957
    %1959 = vmatmul.f32.gmra.mxu0 %v1752
    %v1960 = vpop.f32.mrf.mxu0
    %v1961 = vadd.f32 %v1590, %v1960
    %1962 = vmatmul.f32.gmra.mxu0 %v1755
    %v1963 = vpop.f32.mrf.mxu0
    %v1964 = vadd.f32 %v1590, %v1963
    %1965 = vmatmul.f32.gmra.mxu0 %v1758
    %v1966 = vpop.f32.mrf.mxu0
    %v1967 = vadd.f32 %v1590, %v1966
    %1968 = vmatmul.f32.gmra.mxu0 %v1761
    %v1969 = vpop.f32.mrf.mxu0
    %v1970 = vadd.f32 %v1590, %v1969
    %1971 = vmatmul.f32.gmra.mxu0 %v1764
    %v1972 = vpop.f32.mrf.mxu0
    %v1973 = vadd.f32 %v1590, %v1972
    %1974 = vmatmul.f32.gmra.mxu0 %v1767
    %v1975 = vpop.f32.mrf.mxu0
    %v1976 = vadd.f32 %v1590, %v1975
    %1977 = vmatmul.f32.gmra.mxu0 %v1770
    %v1978 = vpop.f32.mrf.mxu0
    %v1979 = vadd.f32 %v1590, %v1978
    %1980 = vmatmul.f32.gmra.mxu0 %v1773
    %v1981 = vpop.f32.mrf.mxu0
    %v1982 = vadd.f32 %v1590, %v1981
    %1983 = vmatmul.f32.gmra.mxu0 %v1776
    %v1984 = vpop.f32.mrf.mxu0
    %v1985 = vadd.f32 %v1590, %v1984
    %1986 = vmatmul.f32.gmra.mxu0 %v1779
    %v1987 = vpop.f32.mrf.mxu0
    %v1988 = vadd.f32 %v1590, %v1987
    %1989 = vmatmul.f32.gmra.mxu0 %v1782
    %v1990 = vpop.f32.mrf.mxu0
    %v1991 = vadd.f32 %v1590, %v1990
    %1992 = vdwg.mxu0
    %v1993 = vmax.f32 %v1802, 0.0
    %v1994 = vmax.f32 %v1805, 0.0
    %v1995 = vmax.f32 %v1808, 0.0
    %v1996 = vmax.f32 %v1811, 0.0
    %v1997 = vmax.f32 %v1814, 0.0
    %v1998 = vmax.f32 %v1817, 0.0
    %v1999 = vmax.f32 %v1820, 0.0
    %v2000 = vmax.f32 %v1823, 0.0
    %v2001 = vmax.f32 %v1826, 0.0
    %v2002 = vmax.f32 %v1829, 0.0
    %v2003 = vmax.f32 %v1832, 0.0
    %v2004 = vmax.f32 %v1835, 0.0
    %v2005 = vmax.f32 %v1838, 0.0
    %v2006 = vmax.f32 %v1841, 0.0
    %v2007 = vmax.f32 %v1844, 0.0
    %v2008 = vmax.f32 %v1847, 0.0
    %v2009 = vmax.f32 %v1850, 0.0
    %v2010 = vmax.f32 %v1853, 0.0
    %v2011 = vmax.f32 %v1856, 0.0
    %v2012 = vmax.f32 %v1859, 0.0
    %v2013 = vmax.f32 %v1862, 0.0
    %v2014 = vmax.f32 %v1865, 0.0
    %v2015 = vmax.f32 %v1868, 0.0
    %v2016 = vmax.f32 %v1871, 0.0
    %v2017 = vmax.f32 %v1874, 0.0
    %v2018 = vmax.f32 %v1877, 0.0
    %v2019 = vmax.f32 %v1880, 0.0
    %v2020 = vmax.f32 %v1883, 0.0
    %v2021 = vmax.f32 %v1886, 0.0
    %v2022 = vmax.f32 %v1889, 0.0
    %v2023 = vmax.f32 %v1892, 0.0
    %v2024 = vmax.f32 %v1895, 0.0
    %v2025 = vmax.f32 %v1898, 0.0
    %v2026 = vmax.f32 %v1901, 0.0
    %v2027 = vmax.f32 %v1904, 0.0
    %v2028 = vmax.f32 %v1907, 0.0
    %v2029 = vmax.f32 %v1910, 0.0
    %v2030 = vmax.f32 %v1913, 0.0
    %v2031 = vmax.f32 %v1916, 0.0
    %v2032 = vmax.f32 %v1919, 0.0
    %v2033 = vmax.f32 %v1922, 0.0
    %v2034 = vmax.f32 %v1925, 0.0
    %v2035 = vmax.f32 %v1928, 0.0
    %v2036 = vmax.f32 %v1931, 0.0
    %v2037 = vmax.f32 %v1934, 0.0
    %v2038 = vmax.f32 %v1937, 0.0
    %v2039 = vmax.f32 %v1940, 0.0
    %v2040 = vmax.f32 %v1943, 0.0
    %v2041 = vmax.f32 %v1946, 0.0
    %v2042 = vmax.f32 %v1949, 0.0
    %v2043 = vmax.f32 %v1952, 0.0
    %v2044 = vmax.f32 %v1955, 0.0
    %v2045 = vmax.f32 %v1958, 0.0
    %v2046 = vmax.f32 %v1961, 0.0
    %v2047 = vmax.f32 %v1964, 0.0
    %v2048 = vmax.f32 %v1967, 0.0
    %v2049 = vmax.f32 %v1970, 0.0
    %v2050 = vmax.f32 %v1973, 0.0
    %v2051 = vmax.f32 %v1976, 0.0
    %v2052 = vmax.f32 %v1979, 0.0
    %v2053 = vmax.f32 %v1982, 0.0
    %v2054 = vmax.f32 %v1985, 0.0
    %v2055 = vmax.f32 %v1988, 0.0
    %v2056 = vmax.f32 %v1991, 0.0
    %v2057 = vadd.f32 %v1993, %v1518
    %v2058 = vadd.f32 %v1994, %v1519
    %v2059 = vadd.f32 %v1995, %v1520
    %v2060 = vadd.f32 %v1996, %v1521
    %v2061 = vadd.f32 %v1997, %v1522
    %v2062 = vadd.f32 %v1998, %v1523
    %v2063 = vadd.f32 %v1999, %v1524
    %v2064 = vadd.f32 %v2000, %v1525
    %v2065 = vadd.f32 %v2001, %v1526
    %v2066 = vadd.f32 %v2002, %v1527
    %v2067 = vadd.f32 %v2003, %v1528
    %v2068 = vadd.f32 %v2004, %v1529
    %v2069 = vadd.f32 %v2005, %v1530
    %v2070 = vadd.f32 %v2006, %v1531
    %v2071 = vadd.f32 %v2007, %v1532
    %v2072 = vadd.f32 %v2008, %v1533
    %v2073 = vadd.f32 %v2009, %v1534
    %v2074 = vadd.f32 %v2010, %v1535
    %v2075 = vadd.f32 %v2011, %v1536
    %v2076 = vadd.f32 %v2012, %v1537
    %v2077 = vadd.f32 %v2013, %v1538
    %v2078 = vadd.f32 %v2014, %v1539
    %v2079 = vadd.f32 %v2015, %v1540
    %v2080 = vadd.f32 %v2016, %v1541
    %v2081 = vadd.f32 %v2017, %v1542
    %v2082 = vadd.f32 %v2018, %v1543
    %v2083 = vadd.f32 %v2019, %v1544
    %v2084 = vadd.f32 %v2020, %v1545
    %v2085 = vadd.f32 %v2021, %v1546
    %v2086 = vadd.f32 %v2022, %v1547
    %v2087 = vadd.f32 %v2023, %v1548
    %v2088 = vadd.f32 %v2024, %v1549
    %v2089 = vadd.f32 %v2025, %v1550
    %v2090 = vadd.f32 %v2026, %v1551
    %v2091 = vadd.f32 %v2027, %v1552
    %v2092 = vadd.f32 %v2028, %v1553
    %v2093 = vadd.f32 %v2029, %v1554
    %v2094 = vadd.f32 %v2030, %v1555
    %v2095 = vadd.f32 %v2031, %v1556
    %v2096 = vadd.f32 %v2032, %v1557
    %v2097 = vadd.f32 %v2033, %v1558
    %v2098 = vadd.f32 %v2034, %v1559
    %v2099 = vadd.f32 %v2035, %v1560
    %v2100 = vadd.f32 %v2036, %v1561
    %v2101 = vadd.f32 %v2037, %v1562
    %v2102 = vadd.f32 %v2038, %v1563
    %v2103 = vadd.f32 %v2039, %v1564
    %v2104 = vadd.f32 %v2040, %v1565
    %v2105 = vadd.f32 %v2041, %v1566
    %v2106 = vadd.f32 %v2042, %v1567
    %v2107 = vadd.f32 %v2043, %v1568
    %v2108 = vadd.f32 %v2044, %v1569
    %v2109 = vadd.f32 %v2045, %v1570
    %v2110 = vadd.f32 %v2046, %v1571
    %v2111 = vadd.f32 %v2047, %v1572
    %v2112 = vadd.f32 %v2048, %v1573
    %v2113 = vadd.f32 %v2049, %v1574
    %v2114 = vadd.f32 %v2050, %v1575
    %v2115 = vadd.f32 %v2051, %v1576
    %v2116 = vadd.f32 %v2052, %v1577
    %v2117 = vadd.f32 %v2053, %v1578
    %v2118 = vadd.f32 %v2054, %v1579
    %v2119 = vadd.f32 %v2055, %v1580
    %v2120 = vadd.f32 %v2056, %v1581
    %2121 = vst.msk [vmem:[#allocation2] sm:$0xff] %vm577, %v2057
    %2122 = vst.msk [vmem:[#allocation2 + $0x8] sm:$0xff] %vm577, %v2058
    %2123 = vst.msk [vmem:[#allocation2 + $0x10] sm:$0xff] %vm577, %v2059
    %2124 = vst.msk [vmem:[#allocation2 + $0x18] sm:$0xff] %vm577, %v2060
    %2125 = vst.msk [vmem:[#allocation2 + $0x20] sm:$0xff] %vm577, %v2061
    %2126 = vst.msk [vmem:[#allocation2 + $0x28] sm:$0xff] %vm577, %v2062
    %2127 = vst.msk [vmem:[#allocation2 + $0x30] sm:$0xff] %vm577, %v2063
    %2128 = vst.msk [vmem:[#allocation2 + $0x38] sm:$0xff] %vm577, %v2064
    %2129 = vst.msk [vmem:[#allocation2 + $0x40] sm:$0xff] %vm577, %v2065
    %2130 = vst.msk [vmem:[#allocation2 + $0x48] sm:$0xff] %vm577, %v2066
    %2131 = vst.msk [vmem:[#allocation2 + $0x50] sm:$0xff] %vm577, %v2067
    %2132 = vst.msk [vmem:[#allocation2 + $0x58] sm:$0xff] %vm577, %v2068
    %2133 = vst.msk [vmem:[#allocation2 + $0x60] sm:$0xff] %vm577, %v2069
    %2134 = vst.msk [vmem:[#allocation2 + $0x68] sm:$0xff] %vm577, %v2070
    %2135 = vst.msk [vmem:[#allocation2 + $0x70] sm:$0xff] %vm577, %v2071
    %2136 = vst.msk [vmem:[#allocation2 + $0x78] sm:$0xff] %vm577, %v2072
    %2137 = vst.msk [vmem:[#allocation2 + $0x80] sm:$0xff] %vm577, %v2073
    %2138 = vst.msk [vmem:[#allocation2 + $0x88] sm:$0xff] %vm577, %v2074
    %2139 = vst.msk [vmem:[#allocation2 + $0x90] sm:$0xff] %vm577, %v2075
    %2140 = vst.msk [vmem:[#allocation2 + $0x98] sm:$0xff] %vm577, %v2076
    %2141 = vst.msk [vmem:[#allocation2 + $0xa0] sm:$0xff] %vm577, %v2077
    %2142 = vst.msk [vmem:[#allocation2 + $0xa8] sm:$0xff] %vm577, %v2078
    %2143 = vst.msk [vmem:[#allocation2 + $0xb0] sm:$0xff] %vm577, %v2079
    %2144 = vst.msk [vmem:[#allocation2 + $0xb8] sm:$0xff] %vm577, %v2080
    %2145 = vst.msk [vmem:[#allocation2 + $0xc0] sm:$0xff] %vm577, %v2081
    %2146 = vst.msk [vmem:[#allocation2 + $0xc8] sm:$0xff] %vm577, %v2082
    %2147 = vst.msk [vmem:[#allocation2 + $0xd0] sm:$0xff] %vm577, %v2083
    %2148 = vst.msk [vmem:[#allocation2 + $0xd8] sm:$0xff] %vm577, %v2084
    %2149 = vst.msk [vmem:[#allocation2 + $0xe0] sm:$0xff] %vm577, %v2085
    %2150 = vst.msk [vmem:[#allocation2 + $0xe8] sm:$0xff] %vm577, %v2086
    %2151 = vst.msk [vmem:[#allocation2 + $0xf0] sm:$0xff] %vm577, %v2087
    %2152 = vst.msk [vmem:[#allocation2 + $0xf8] sm:$0xff] %vm577, %v2088
    %2153 = vst.msk [vmem:[#allocation2 + $0x100] sm:$0xff] %vm577, %v2089
    %2154 = vst.msk [vmem:[#allocation2 + $0x108] sm:$0xff] %vm577, %v2090
    %2155 = vst.msk [vmem:[#allocation2 + $0x110] sm:$0xff] %vm577, %v2091
    %2156 = vst.msk [vmem:[#allocation2 + $0x118] sm:$0xff] %vm577, %v2092
    %2157 = vst.msk [vmem:[#allocation2 + $0x120] sm:$0xff] %vm577, %v2093
    %2158 = vst.msk [vmem:[#allocation2 + $0x128] sm:$0xff] %vm577, %v2094
    %2159 = vst.msk [vmem:[#allocation2 + $0x130] sm:$0xff] %vm577, %v2095
    %2160 = vst.msk [vmem:[#allocation2 + $0x138] sm:$0xff] %vm577, %v2096
    %2161 = vst.msk [vmem:[#allocation2 + $0x140] sm:$0xff] %vm577, %v2097
    %2162 = vst.msk [vmem:[#allocation2 + $0x148] sm:$0xff] %vm577, %v2098
    %2163 = vst.msk [vmem:[#allocation2 + $0x150] sm:$0xff] %vm577, %v2099
    %2164 = vst.msk [vmem:[#allocation2 + $0x158] sm:$0xff] %vm577, %v2100
    %2165 = vst.msk [vmem:[#allocation2 + $0x160] sm:$0xff] %vm577, %v2101
    %2166 = vst.msk [vmem:[#allocation2 + $0x168] sm:$0xff] %vm577, %v2102
    %2167 = vst.msk [vmem:[#allocation2 + $0x170] sm:$0xff] %vm577, %v2103
    %2168 = vst.msk [vmem:[#allocation2 + $0x178] sm:$0xff] %vm577, %v2104
    %2169 = vst.msk [vmem:[#allocation2 + $0x180] sm:$0xff] %vm577, %v2105
    %2170 = vst.msk [vmem:[#allocation2 + $0x188] sm:$0xff] %vm577, %v2106
    %2171 = vst.msk [vmem:[#allocation2 + $0x190] sm:$0xff] %vm577, %v2107
    %2172 = vst.msk [vmem:[#allocation2 + $0x198] sm:$0xff] %vm577, %v2108
    %2173 = vst.msk [vmem:[#allocation2 + $0x1a0] sm:$0xff] %vm577, %v2109
    %2174 = vst.msk [vmem:[#allocation2 + $0x1a8] sm:$0xff] %vm577, %v2110
    %2175 = vst.msk [vmem:[#allocation2 + $0x1b0] sm:$0xff] %vm577, %v2111
    %2176 = vst.msk [vmem:[#allocation2 + $0x1b8] sm:$0xff] %vm577, %v2112
    %2177 = vst.msk [vmem:[#allocation2 + $0x1c0] sm:$0xff] %vm577, %v2113
    %2178 = vst.msk [vmem:[#allocation2 + $0x1c8] sm:$0xff] %vm577, %v2114
    %2179 = vst.msk [vmem:[#allocation2 + $0x1d0] sm:$0xff] %vm577, %v2115
    %2180 = vst.msk [vmem:[#allocation2 + $0x1d8] sm:$0xff] %vm577, %v2116
    %2181 = vst.msk [vmem:[#allocation2 + $0x1e0] sm:$0xff] %vm577, %v2117
    %2182 = vst.msk [vmem:[#allocation2 + $0x1e8] sm:$0xff] %vm577, %v2118
    %2183 = vst.msk [vmem:[#allocation2 + $0x1f0] sm:$0xff] %vm577, %v2119
    %2184 = vst.msk [vmem:[#allocation2 + $0x1f8] sm:$0xff] %vm577, %v2120
    %s2185 = scalar_lea.vmem %s3, 96
    %v2186 = vld [vmem:[%s2185] sm:$0xff]
    %v2187 = vld [vmem:[%s2185 + $0x8] sm:$0xff]
    %v2188 = vld [vmem:[%s2185 + $0x10] sm:$0xff]
    %v2189 = vld [vmem:[%s2185 + $0x18] sm:$0xff]
    %s2190 = scalar_lea.vmem %s4, 3
    %v2191 = vld [vmem:[%s2190] sm:$0x1]
    %v2193 = vperm.slane %v2191, 0
    %v2196 = vsel %vm577, %v2057, 0
    %v2199 = vsel %vm577, %v2058, 0
    %v2202 = vsel %vm577, %v2059, 0
    %v2205 = vsel %vm577, %v2060, 0
    %v2208 = vsel %vm577, %v2061, 0
    %v2211 = vsel %vm577, %v2062, 0
    %v2214 = vsel %vm577, %v2063, 0
    %v2217 = vsel %vm577, %v2064, 0
    %v2220 = vsel %vm577, %v2065, 0
    %v2223 = vsel %vm577, %v2066, 0
    %v2226 = vsel %vm577, %v2067, 0
    %v2229 = vsel %vm577, %v2068, 0
    %v2232 = vsel %vm577, %v2069, 0
    %v2235 = vsel %vm577, %v2070, 0
    %v2238 = vsel %vm577, %v2071, 0
    %v2241 = vsel %vm577, %v2072, 0
    %v2244 = vsel %vm577, %v2073, 0
    %v2247 = vsel %vm577, %v2074, 0
    %v2250 = vsel %vm577, %v2075, 0
    %v2253 = vsel %vm577, %v2076, 0
    %v2256 = vsel %vm577, %v2077, 0
    %v2259 = vsel %vm577, %v2078, 0
    %v2262 = vsel %vm577, %v2079, 0
    %v2265 = vsel %vm577, %v2080, 0
    %v2268 = vsel %vm577, %v2081, 0
    %v2271 = vsel %vm577, %v2082, 0
    %v2274 = vsel %vm577, %v2083, 0
    %v2277 = vsel %vm577, %v2084, 0
    %v2280 = vsel %vm577, %v2085, 0
    %v2283 = vsel %vm577, %v2086, 0
    %v2286 = vsel %vm577, %v2087, 0
    %v2289 = vsel %vm577, %v2088, 0
    %v2292 = vsel %vm577, %v2089, 0
    %v2295 = vsel %vm577, %v2090, 0
    %v2298 = vsel %vm577, %v2091, 0
    %v2301 = vsel %vm577, %v2092, 0
    %v2304 = vsel %vm577, %v2093, 0
    %v2307 = vsel %vm577, %v2094, 0
    %v2310 = vsel %vm577, %v2095, 0
    %v2313 = vsel %vm577, %v2096, 0
    %v2316 = vsel %vm577, %v2097, 0
    %v2319 = vsel %vm577, %v2098, 0
    %v2322 = vsel %vm577, %v2099, 0
    %v2325 = vsel %vm577, %v2100, 0
    %v2328 = vsel %vm577, %v2101, 0
    %v2331 = vsel %vm577, %v2102, 0
    %v2334 = vsel %vm577, %v2103, 0
    %v2337 = vsel %vm577, %v2104, 0
    %v2340 = vsel %vm577, %v2105, 0
    %v2343 = vsel %vm577, %v2106, 0
    %v2346 = vsel %vm577, %v2107, 0
    %v2349 = vsel %vm577, %v2108, 0
    %v2352 = vsel %vm577, %v2109, 0
    %v2355 = vsel %vm577, %v2110, 0
    %v2358 = vsel %vm577, %v2111, 0
    %v2361 = vsel %vm577, %v2112, 0
    %v2364 = vsel %vm577, %v2113, 0
    %v2367 = vsel %vm577, %v2114, 0
    %v2370 = vsel %vm577, %v2115, 0
    %v2373 = vsel %vm577, %v2116, 0
    %v2376 = vsel %vm577, %v2117, 0
    %v2379 = vsel %vm577, %v2118, 0
    %v2382 = vsel %vm577, %v2119, 0
    %v2385 = vsel %vm577, %v2120, 0
    %2387 = vmatpush.msra.mxu0 0.0
    %2388 = vmatpush.msra.mxu0 0.0
    %2389 = vmatpush.msra.mxu0 0.0
    %2390 = vmatpush.msra.mxu0 0.0
    %2391 = vmatpush.msra.mxu0 0.0
    %2392 = vmatpush.msra.mxu0 0.0
    %2393 = vmatpush.msra.mxu0 0.0
    %2394 = vmatpush.msra.mxu0 0.0
    %2395 = vmatpush.msra.mxu0 0.0
    %2396 = vmatpush.msra.mxu0 0.0
    %2397 = vmatpush.msra.mxu0 0.0
    %2398 = vmatpush.msra.mxu0 0.0
    %2399 = vmatpush.msra.mxu0 %v2189
    %2400 = vmatpush.msra.mxu0 %v2188
    %2401 = vmatpush.msra.mxu0 %v2187
    %2402 = vmatpush.msra.mxu0 %v2186
    %2403 = vmatmul.f32.gmra.mxu0 %v2196
    %v2404 = vpop.f32.mrf.mxu0
    %v2405 = vadd.f32 %v2193, %v2404
    %2406 = vmatmul.f32.gmra.mxu0 %v2199
    %v2407 = vpop.f32.mrf.mxu0
    %v2408 = vadd.f32 %v2193, %v2407
    %2409 = vmatmul.f32.gmra.mxu0 %v2202
    %v2410 = vpop.f32.mrf.mxu0
    %v2411 = vadd.f32 %v2193, %v2410
    %2412 = vmatmul.f32.gmra.mxu0 %v2205
    %v2413 = vpop.f32.mrf.mxu0
    %v2414 = vadd.f32 %v2193, %v2413
    %2415 = vmatmul.f32.gmra.mxu0 %v2208
    %v2416 = vpop.f32.mrf.mxu0
    %v2417 = vadd.f32 %v2193, %v2416
    %2418 = vmatmul.f32.gmra.mxu0 %v2211
    %v2419 = vpop.f32.mrf.mxu0
    %v2420 = vadd.f32 %v2193, %v2419
    %2421 = vmatmul.f32.gmra.mxu0 %v2214
    %v2422 = vpop.f32.mrf.mxu0
    %v2423 = vadd.f32 %v2193, %v2422
    %2424 = vmatmul.f32.gmra.mxu0 %v2217
    %v2425 = vpop.f32.mrf.mxu0
    %v2426 = vadd.f32 %v2193, %v2425
    %2427 = vmatmul.f32.gmra.mxu0 %v2220
    %v2428 = vpop.f32.mrf.mxu0
    %v2429 = vadd.f32 %v2193, %v2428
    %2430 = vmatmul.f32.gmra.mxu0 %v2223
    %v2431 = vpop.f32.mrf.mxu0
    %v2432 = vadd.f32 %v2193, %v2431
    %2433 = vmatmul.f32.gmra.mxu0 %v2226
    %v2434 = vpop.f32.mrf.mxu0
    %v2435 = vadd.f32 %v2193, %v2434
    %2436 = vmatmul.f32.gmra.mxu0 %v2229
    %v2437 = vpop.f32.mrf.mxu0
    %v2438 = vadd.f32 %v2193, %v2437
    %2439 = vmatmul.f32.gmra.mxu0 %v2232
    %v2440 = vpop.f32.mrf.mxu0
    %v2441 = vadd.f32 %v2193, %v2440
    %2442 = vmatmul.f32.gmra.mxu0 %v2235
    %v2443 = vpop.f32.mrf.mxu0
    %v2444 = vadd.f32 %v2193, %v2443
    %2445 = vmatmul.f32.gmra.mxu0 %v2238
    %v2446 = vpop.f32.mrf.mxu0
    %v2447 = vadd.f32 %v2193, %v2446
    %2448 = vmatmul.f32.gmra.mxu0 %v2241
    %v2449 = vpop.f32.mrf.mxu0
    %v2450 = vadd.f32 %v2193, %v2449
    %2451 = vmatmul.f32.gmra.mxu0 %v2244
    %v2452 = vpop.f32.mrf.mxu0
    %v2453 = vadd.f32 %v2193, %v2452
    %2454 = vmatmul.f32.gmra.mxu0 %v2247
    %v2455 = vpop.f32.mrf.mxu0
    %v2456 = vadd.f32 %v2193, %v2455
    %2457 = vmatmul.f32.gmra.mxu0 %v2250
    %v2458 = vpop.f32.mrf.mxu0
    %v2459 = vadd.f32 %v2193, %v2458
    %2460 = vmatmul.f32.gmra.mxu0 %v2253
    %v2461 = vpop.f32.mrf.mxu0
    %v2462 = vadd.f32 %v2193, %v2461
    %2463 = vmatmul.f32.gmra.mxu0 %v2256
    %v2464 = vpop.f32.mrf.mxu0
    %v2465 = vadd.f32 %v2193, %v2464
    %2466 = vmatmul.f32.gmra.mxu0 %v2259
    %v2467 = vpop.f32.mrf.mxu0
    %v2468 = vadd.f32 %v2193, %v2467
    %2469 = vmatmul.f32.gmra.mxu0 %v2262
    %v2470 = vpop.f32.mrf.mxu0
    %v2471 = vadd.f32 %v2193, %v2470
    %2472 = vmatmul.f32.gmra.mxu0 %v2265
    %v2473 = vpop.f32.mrf.mxu0
    %v2474 = vadd.f32 %v2193, %v2473
    %2475 = vmatmul.f32.gmra.mxu0 %v2268
    %v2476 = vpop.f32.mrf.mxu0
    %v2477 = vadd.f32 %v2193, %v2476
    %2478 = vmatmul.f32.gmra.mxu0 %v2271
    %v2479 = vpop.f32.mrf.mxu0
    %v2480 = vadd.f32 %v2193, %v2479
    %2481 = vmatmul.f32.gmra.mxu0 %v2274
    %v2482 = vpop.f32.mrf.mxu0
    %v2483 = vadd.f32 %v2193, %v2482
    %2484 = vmatmul.f32.gmra.mxu0 %v2277
    %v2485 = vpop.f32.mrf.mxu0
    %v2486 = vadd.f32 %v2193, %v2485
    %2487 = vmatmul.f32.gmra.mxu0 %v2280
    %v2488 = vpop.f32.mrf.mxu0
    %v2489 = vadd.f32 %v2193, %v2488
    %2490 = vmatmul.f32.gmra.mxu0 %v2283
    %v2491 = vpop.f32.mrf.mxu0
    %v2492 = vadd.f32 %v2193, %v2491
    %2493 = vmatmul.f32.gmra.mxu0 %v2286
    %v2494 = vpop.f32.mrf.mxu0
    %v2495 = vadd.f32 %v2193, %v2494
    %2496 = vmatmul.f32.gmra.mxu0 %v2289
    %v2497 = vpop.f32.mrf.mxu0
    %v2498 = vadd.f32 %v2193, %v2497
    %2499 = vmatmul.f32.gmra.mxu0 %v2292
    %v2500 = vpop.f32.mrf.mxu0
    %v2501 = vadd.f32 %v2193, %v2500
    %2502 = vmatmul.f32.gmra.mxu0 %v2295
    %v2503 = vpop.f32.mrf.mxu0
    %v2504 = vadd.f32 %v2193, %v2503
    %2505 = vmatmul.f32.gmra.mxu0 %v2298
    %v2506 = vpop.f32.mrf.mxu0
    %v2507 = vadd.f32 %v2193, %v2506
    %2508 = vmatmul.f32.gmra.mxu0 %v2301
    %v2509 = vpop.f32.mrf.mxu0
    %v2510 = vadd.f32 %v2193, %v2509
    %2511 = vmatmul.f32.gmra.mxu0 %v2304
    %v2512 = vpop.f32.mrf.mxu0
    %v2513 = vadd.f32 %v2193, %v2512
    %2514 = vmatmul.f32.gmra.mxu0 %v2307
    %v2515 = vpop.f32.mrf.mxu0
    %v2516 = vadd.f32 %v2193, %v2515
    %2517 = vmatmul.f32.gmra.mxu0 %v2310
    %v2518 = vpop.f32.mrf.mxu0
    %v2519 = vadd.f32 %v2193, %v2518
    %2520 = vmatmul.f32.gmra.mxu0 %v2313
    %v2521 = vpop.f32.mrf.mxu0
    %v2522 = vadd.f32 %v2193, %v2521
    %2523 = vmatmul.f32.gmra.mxu0 %v2316
    %v2524 = vpop.f32.mrf.mxu0
    %v2525 = vadd.f32 %v2193, %v2524
    %2526 = vmatmul.f32.gmra.mxu0 %v2319
    %v2527 = vpop.f32.mrf.mxu0
    %v2528 = vadd.f32 %v2193, %v2527
    %2529 = vmatmul.f32.gmra.mxu0 %v2322
    %v2530 = vpop.f32.mrf.mxu0
    %v2531 = vadd.f32 %v2193, %v2530
    %2532 = vmatmul.f32.gmra.mxu0 %v2325
    %v2533 = vpop.f32.mrf.mxu0
    %v2534 = vadd.f32 %v2193, %v2533
    %2535 = vmatmul.f32.gmra.mxu0 %v2328
    %v2536 = vpop.f32.mrf.mxu0
    %v2537 = vadd.f32 %v2193, %v2536
    %2538 = vmatmul.f32.gmra.mxu0 %v2331
    %v2539 = vpop.f32.mrf.mxu0
    %v2540 = vadd.f32 %v2193, %v2539
    %2541 = vmatmul.f32.gmra.mxu0 %v2334
    %v2542 = vpop.f32.mrf.mxu0
    %v2543 = vadd.f32 %v2193, %v2542
    %2544 = vmatmul.f32.gmra.mxu0 %v2337
    %v2545 = vpop.f32.mrf.mxu0
    %v2546 = vadd.f32 %v2193, %v2545
    %2547 = vmatmul.f32.gmra.mxu0 %v2340
    %v2548 = vpop.f32.mrf.mxu0
    %v2549 = vadd.f32 %v2193, %v2548
    %2550 = vmatmul.f32.gmra.mxu0 %v2343
    %v2551 = vpop.f32.mrf.mxu0
    %v2552 = vadd.f32 %v2193, %v2551
    %2553 = vmatmul.f32.gmra.mxu0 %v2346
    %v2554 = vpop.f32.mrf.mxu0
    %v2555 = vadd.f32 %v2193, %v2554
    %2556 = vmatmul.f32.gmra.mxu0 %v2349
    %v2557 = vpop.f32.mrf.mxu0
    %v2558 = vadd.f32 %v2193, %v2557
    %2559 = vmatmul.f32.gmra.mxu0 %v2352
    %v2560 = vpop.f32.mrf.mxu0
    %v2561 = vadd.f32 %v2193, %v2560
    %2562 = vmatmul.f32.gmra.mxu0 %v2355
    %v2563 = vpop.f32.mrf.mxu0
    %v2564 = vadd.f32 %v2193, %v2563
    %2565 = vmatmul.f32.gmra.mxu0 %v2358
    %v2566 = vpop.f32.mrf.mxu0
    %v2567 = vadd.f32 %v2193, %v2566
    %2568 = vmatmul.f32.gmra.mxu0 %v2361
    %v2569 = vpop.f32.mrf.mxu0
    %v2570 = vadd.f32 %v2193, %v2569
    %2571 = vmatmul.f32.gmra.mxu0 %v2364
    %v2572 = vpop.f32.mrf.mxu0
    %v2573 = vadd.f32 %v2193, %v2572
    %2574 = vmatmul.f32.gmra.mxu0 %v2367
    %v2575 = vpop.f32.mrf.mxu0
    %v2576 = vadd.f32 %v2193, %v2575
    %2577 = vmatmul.f32.gmra.mxu0 %v2370
    %v2578 = vpop.f32.mrf.mxu0
    %v2579 = vadd.f32 %v2193, %v2578
    %2580 = vmatmul.f32.gmra.mxu0 %v2373
    %v2581 = vpop.f32.mrf.mxu0
    %v2582 = vadd.f32 %v2193, %v2581
    %2583 = vmatmul.f32.gmra.mxu0 %v2376
    %v2584 = vpop.f32.mrf.mxu0
    %v2585 = vadd.f32 %v2193, %v2584
    %2586 = vmatmul.f32.gmra.mxu0 %v2379
    %v2587 = vpop.f32.mrf.mxu0
    %v2588 = vadd.f32 %v2193, %v2587
    %2589 = vmatmul.f32.gmra.mxu0 %v2382
    %v2590 = vpop.f32.mrf.mxu0
    %v2591 = vadd.f32 %v2193, %v2590
    %2592 = vmatmul.f32.gmra.mxu0 %v2385
    %v2593 = vpop.f32.mrf.mxu0
    %v2594 = vadd.f32 %v2193, %v2593
    %2595 = vdwg.mxu0
    %v2596 = vmax.f32 %v2405, 0.0
    %v2597 = vmax.f32 %v2408, 0.0
    %v2598 = vmax.f32 %v2411, 0.0
    %v2599 = vmax.f32 %v2414, 0.0
    %v2600 = vmax.f32 %v2417, 0.0
    %v2601 = vmax.f32 %v2420, 0.0
    %v2602 = vmax.f32 %v2423, 0.0
    %v2603 = vmax.f32 %v2426, 0.0
    %v2604 = vmax.f32 %v2429, 0.0
    %v2605 = vmax.f32 %v2432, 0.0
    %v2606 = vmax.f32 %v2435, 0.0
    %v2607 = vmax.f32 %v2438, 0.0
    %v2608 = vmax.f32 %v2441, 0.0
    %v2609 = vmax.f32 %v2444, 0.0
    %v2610 = vmax.f32 %v2447, 0.0
    %v2611 = vmax.f32 %v2450, 0.0
    %v2612 = vmax.f32 %v2453, 0.0
    %v2613 = vmax.f32 %v2456, 0.0
    %v2614 = vmax.f32 %v2459, 0.0
    %v2615 = vmax.f32 %v2462, 0.0
    %v2616 = vmax.f32 %v2465, 0.0
    %v2617 = vmax.f32 %v2468, 0.0
    %v2618 = vmax.f32 %v2471, 0.0
    %v2619 = vmax.f32 %v2474, 0.0
    %v2620 = vmax.f32 %v2477, 0.0
    %v2621 = vmax.f32 %v2480, 0.0
    %v2622 = vmax.f32 %v2483, 0.0
    %v2623 = vmax.f32 %v2486, 0.0
    %v2624 = vmax.f32 %v2489, 0.0
    %v2625 = vmax.f32 %v2492, 0.0
    %v2626 = vmax.f32 %v2495, 0.0
    %v2627 = vmax.f32 %v2498, 0.0
    %v2628 = vmax.f32 %v2501, 0.0
    %v2629 = vmax.f32 %v2504, 0.0
    %v2630 = vmax.f32 %v2507, 0.0
    %v2631 = vmax.f32 %v2510, 0.0
    %v2632 = vmax.f32 %v2513, 0.0
    %v2633 = vmax.f32 %v2516, 0.0
    %v2634 = vmax.f32 %v2519, 0.0
    %v2635 = vmax.f32 %v2522, 0.0
    %v2636 = vmax.f32 %v2525, 0.0
    %v2637 = vmax.f32 %v2528, 0.0
    %v2638 = vmax.f32 %v2531, 0.0
    %v2639 = vmax.f32 %v2534, 0.0
    %v2640 = vmax.f32 %v2537, 0.0
    %v2641 = vmax.f32 %v2540, 0.0
    %v2642 = vmax.f32 %v2543, 0.0
    %v2643 = vmax.f32 %v2546, 0.0
    %v2644 = vmax.f32 %v2549, 0.0
    %v2645 = vmax.f32 %v2552, 0.0
    %v2646 = vmax.f32 %v2555, 0.0
    %v2647 = vmax.f32 %v2558, 0.0
    %v2648 = vmax.f32 %v2561, 0.0
    %v2649 = vmax.f32 %v2564, 0.0
    %v2650 = vmax.f32 %v2567, 0.0
    %v2651 = vmax.f32 %v2570, 0.0
    %v2652 = vmax.f32 %v2573, 0.0
    %v2653 = vmax.f32 %v2576, 0.0
    %v2654 = vmax.f32 %v2579, 0.0
    %v2655 = vmax.f32 %v2582, 0.0
    %v2656 = vmax.f32 %v2585, 0.0
    %v2657 = vmax.f32 %v2588, 0.0
    %v2658 = vmax.f32 %v2591, 0.0
    %v2659 = vmax.f32 %v2594, 0.0
    %v2660 = vadd.f32 %v2596, %v2057
    %v2661 = vadd.f32 %v2597, %v2058
    %v2662 = vadd.f32 %v2598, %v2059
    %v2663 = vadd.f32 %v2599, %v2060
    %v2664 = vadd.f32 %v2600, %v2061
    %v2665 = vadd.f32 %v2601, %v2062
    %v2666 = vadd.f32 %v2602, %v2063
    %v2667 = vadd.f32 %v2603, %v2064
    %v2668 = vadd.f32 %v2604, %v2065
    %v2669 = vadd.f32 %v2605, %v2066
    %v2670 = vadd.f32 %v2606, %v2067
    %v2671 = vadd.f32 %v2607, %v2068
    %v2672 = vadd.f32 %v2608, %v2069
    %v2673 = vadd.f32 %v2609, %v2070
    %v2674 = vadd.f32 %v2610, %v2071
    %v2675 = vadd.f32 %v2611, %v2072
    %v2676 = vadd.f32 %v2612, %v2073
    %v2677 = vadd.f32 %v2613, %v2074
    %v2678 = vadd.f32 %v2614, %v2075
    %v2679 = vadd.f32 %v2615, %v2076
    %v2680 = vadd.f32 %v2616, %v2077
    %v2681 = vadd.f32 %v2617, %v2078
    %v2682 = vadd.f32 %v2618, %v2079
    %v2683 = vadd.f32 %v2619, %v2080
    %v2684 = vadd.f32 %v2620, %v2081
    %v2685 = vadd.f32 %v2621, %v2082
    %v2686 = vadd.f32 %v2622, %v2083
    %v2687 = vadd.f32 %v2623, %v2084
    %v2688 = vadd.f32 %v2624, %v2085
    %v2689 = vadd.f32 %v2625, %v2086
    %v2690 = vadd.f32 %v2626, %v2087
    %v2691 = vadd.f32 %v2627, %v2088
    %v2692 = vadd.f32 %v2628, %v2089
    %v2693 = vadd.f32 %v2629, %v2090
    %v2694 = vadd.f32 %v2630, %v2091
    %v2695 = vadd.f32 %v2631, %v2092
    %v2696 = vadd.f32 %v2632, %v2093
    %v2697 = vadd.f32 %v2633, %v2094
    %v2698 = vadd.f32 %v2634, %v2095
    %v2699 = vadd.f32 %v2635, %v2096
    %v2700 = vadd.f32 %v2636, %v2097
    %v2701 = vadd.f32 %v2637, %v2098
    %v2702 = vadd.f32 %v2638, %v2099
    %v2703 = vadd.f32 %v2639, %v2100
    %v2704 = vadd.f32 %v2640, %v2101
    %v2705 = vadd.f32 %v2641, %v2102
    %v2706 = vadd.f32 %v2642, %v2103
    %v2707 = vadd.f32 %v2643, %v2104
    %v2708 = vadd.f32 %v2644, %v2105
    %v2709 = vadd.f32 %v2645, %v2106
    %v2710 = vadd.f32 %v2646, %v2107
    %v2711 = vadd.f32 %v2647, %v2108
    %v2712 = vadd.f32 %v2648, %v2109
    %v2713 = vadd.f32 %v2649, %v2110
    %v2714 = vadd.f32 %v2650, %v2111
    %v2715 = vadd.f32 %v2651, %v2112
    %v2716 = vadd.f32 %v2652, %v2113
    %v2717 = vadd.f32 %v2653, %v2114
    %v2718 = vadd.f32 %v2654, %v2115
    %v2719 = vadd.f32 %v2655, %v2116
    %v2720 = vadd.f32 %v2656, %v2117
    %v2721 = vadd.f32 %v2657, %v2118
    %v2722 = vadd.f32 %v2658, %v2119
    %v2723 = vadd.f32 %v2659, %v2120
    %s2724 = scalar_lea.vmem %s3, 128
    %v2725 = vld [vmem:[%s2724] sm:$0xff]
    %v2726 = vld [vmem:[%s2724 + $0x8] sm:$0xff]
    %v2727 = vld [vmem:[%s2724 + $0x10] sm:$0xff]
    %v2728 = vld [vmem:[%s2724 + $0x18] sm:$0xff]
    %s2729 = scalar_lea.vmem %s4, 4
    %v2730 = vld [vmem:[%s2729] sm:$0x1]
    %v2732 = vperm.slane %v2730, 0
    %v2735 = vsel %vm577, %v2660, 0
    %v2738 = vsel %vm577, %v2661, 0
    %v2741 = vsel %vm577, %v2662, 0
    %v2744 = vsel %vm577, %v2663, 0
    %v2747 = vsel %vm577, %v2664, 0
    %v2750 = vsel %vm577, %v2665, 0
    %v2753 = vsel %vm577, %v2666, 0
    %v2756 = vsel %vm577, %v2667, 0
    %v2759 = vsel %vm577, %v2668, 0
    %v2762 = vsel %vm577, %v2669, 0
    %v2765 = vsel %vm577, %v2670, 0
    %v2768 = vsel %vm577, %v2671, 0
    %v2771 = vsel %vm577, %v2672, 0
    %v2774 = vsel %vm577, %v2673, 0
    %v2777 = vsel %vm577, %v2674, 0
    %v2780 = vsel %vm577, %v2675, 0
    %v2783 = vsel %vm577, %v2676, 0
    %v2786 = vsel %vm577, %v2677, 0
    %v2789 = vsel %vm577, %v2678, 0
    %v2792 = vsel %vm577, %v2679, 0
    %v2795 = vsel %vm577, %v2680, 0
    %v2798 = vsel %vm577, %v2681, 0
    %v2801 = vsel %vm577, %v2682, 0
    %v2804 = vsel %vm577, %v2683, 0
    %v2807 = vsel %vm577, %v2684, 0
    %v2810 = vsel %vm577, %v2685, 0
    %v2813 = vsel %vm577, %v2686, 0
    %v2816 = vsel %vm577, %v2687, 0
    %v2819 = vsel %vm577, %v2688, 0
    %v2822 = vsel %vm577, %v2689, 0
    %v2825 = vsel %vm577, %v2690, 0
    %v2828 = vsel %vm577, %v2691, 0
    %v2831 = vsel %vm577, %v2692, 0
    %v2834 = vsel %vm577, %v2693, 0
    %v2837 = vsel %vm577, %v2694, 0
    %v2840 = vsel %vm577, %v2695, 0
    %v2843 = vsel %vm577, %v2696, 0
    %v2846 = vsel %vm577, %v2697, 0
    %v2849 = vsel %vm577, %v2698, 0
    %v2852 = vsel %vm577, %v2699, 0
    %v2855 = vsel %vm577, %v2700, 0
    %v2858 = vsel %vm577, %v2701, 0
    %v2861 = vsel %vm577, %v2702, 0
    %v2864 = vsel %vm577, %v2703, 0
    %v2867 = vsel %vm577, %v2704, 0
    %v2870 = vsel %vm577, %v2705, 0
    %v2873 = vsel %vm577, %v2706, 0
    %v2876 = vsel %vm577, %v2707, 0
    %v2879 = vsel %vm577, %v2708, 0
    %v2882 = vsel %vm577, %v2709, 0
    %v2885 = vsel %vm577, %v2710, 0
    %v2888 = vsel %vm577, %v2711, 0
    %v2891 = vsel %vm577, %v2712, 0
    %v2894 = vsel %vm577, %v2713, 0
    %v2897 = vsel %vm577, %v2714, 0
    %v2900 = vsel %vm577, %v2715, 0
    %v2903 = vsel %vm577, %v2716, 0
    %v2906 = vsel %vm577, %v2717, 0
    %v2909 = vsel %vm577, %v2718, 0
    %v2912 = vsel %vm577, %v2719, 0
    %v2915 = vsel %vm577, %v2720, 0
    %v2918 = vsel %vm577, %v2721, 0
    %v2921 = vsel %vm577, %v2722, 0
    %v2924 = vsel %vm577, %v2723, 0
    %2926 = vmatpush.msra.mxu0 0.0
    %2927 = vmatpush.msra.mxu0 0.0
    %2928 = vmatpush.msra.mxu0 0.0
    %2929 = vmatpush.msra.mxu0 0.0
    %2930 = vmatpush.msra.mxu0 0.0
    %2931 = vmatpush.msra.mxu0 0.0
    %2932 = vmatpush.msra.mxu0 0.0
    %2933 = vmatpush.msra.mxu0 0.0
    %2934 = vmatpush.msra.mxu0 0.0
    %2935 = vmatpush.msra.mxu0 0.0
    %2936 = vmatpush.msra.mxu0 0.0
    %2937 = vmatpush.msra.mxu0 0.0
    %2938 = vmatpush.msra.mxu0 %v2728
    %2939 = vmatpush.msra.mxu0 %v2727
    %2940 = vmatpush.msra.mxu0 %v2726
    %2941 = vmatpush.msra.mxu0 %v2725
    %2942 = vmatmul.f32.gmra.mxu0 %v2735
    %v2943 = vpop.f32.mrf.mxu0
    %v2944 = vadd.f32 %v2732, %v2943
    %2945 = vmatmul.f32.gmra.mxu0 %v2738
    %v2946 = vpop.f32.mrf.mxu0
    %v2947 = vadd.f32 %v2732, %v2946
    %2948 = vmatmul.f32.gmra.mxu0 %v2741
    %v2949 = vpop.f32.mrf.mxu0
    %v2950 = vadd.f32 %v2732, %v2949
    %2951 = vmatmul.f32.gmra.mxu0 %v2744
    %v2952 = vpop.f32.mrf.mxu0
    %v2953 = vadd.f32 %v2732, %v2952
    %2954 = vmatmul.f32.gmra.mxu0 %v2747
    %v2955 = vpop.f32.mrf.mxu0
    %v2956 = vadd.f32 %v2732, %v2955
    %2957 = vmatmul.f32.gmra.mxu0 %v2750
    %v2958 = vpop.f32.mrf.mxu0
    %v2959 = vadd.f32 %v2732, %v2958
    %2960 = vmatmul.f32.gmra.mxu0 %v2753
    %v2961 = vpop.f32.mrf.mxu0
    %v2962 = vadd.f32 %v2732, %v2961
    %2963 = vmatmul.f32.gmra.mxu0 %v2756
    %v2964 = vpop.f32.mrf.mxu0
    %v2965 = vadd.f32 %v2732, %v2964
    %2966 = vmatmul.f32.gmra.mxu0 %v2759
    %v2967 = vpop.f32.mrf.mxu0
    %v2968 = vadd.f32 %v2732, %v2967
    %2969 = vmatmul.f32.gmra.mxu0 %v2762
    %v2970 = vpop.f32.mrf.mxu0
    %v2971 = vadd.f32 %v2732, %v2970
    %2972 = vmatmul.f32.gmra.mxu0 %v2765
    %v2973 = vpop.f32.mrf.mxu0
    %v2974 = vadd.f32 %v2732, %v2973
    %2975 = vmatmul.f32.gmra.mxu0 %v2768
    %v2976 = vpop.f32.mrf.mxu0
    %v2977 = vadd.f32 %v2732, %v2976
    %2978 = vmatmul.f32.gmra.mxu0 %v2771
    %v2979 = vpop.f32.mrf.mxu0
    %v2980 = vadd.f32 %v2732, %v2979
    %2981 = vmatmul.f32.gmra.mxu0 %v2774
    %v2982 = vpop.f32.mrf.mxu0
    %v2983 = vadd.f32 %v2732, %v2982
    %2984 = vmatmul.f32.gmra.mxu0 %v2777
    %v2985 = vpop.f32.mrf.mxu0
    %v2986 = vadd.f32 %v2732, %v2985
    %2987 = vmatmul.f32.gmra.mxu0 %v2780
    %v2988 = vpop.f32.mrf.mxu0
    %v2989 = vadd.f32 %v2732, %v2988
    %2990 = vmatmul.f32.gmra.mxu0 %v2783
    %v2991 = vpop.f32.mrf.mxu0
    %v2992 = vadd.f32 %v2732, %v2991
    %2993 = vmatmul.f32.gmra.mxu0 %v2786
    %v2994 = vpop.f32.mrf.mxu0
    %v2995 = vadd.f32 %v2732, %v2994
    %2996 = vmatmul.f32.gmra.mxu0 %v2789
    %v2997 = vpop.f32.mrf.mxu0
    %v2998 = vadd.f32 %v2732, %v2997
    %2999 = vmatmul.f32.gmra.mxu0 %v2792
    %v3000 = vpop.f32.mrf.mxu0
    %v3001 = vadd.f32 %v2732, %v3000
    %3002 = vmatmul.f32.gmra.mxu0 %v2795
    %v3003 = vpop.f32.mrf.mxu0
    %v3004 = vadd.f32 %v2732, %v3003
    %3005 = vmatmul.f32.gmra.mxu0 %v2798
    %v3006 = vpop.f32.mrf.mxu0
    %v3007 = vadd.f32 %v2732, %v3006
    %3008 = vmatmul.f32.gmra.mxu0 %v2801
    %v3009 = vpop.f32.mrf.mxu0
    %v3010 = vadd.f32 %v2732, %v3009
    %3011 = vmatmul.f32.gmra.mxu0 %v2804
    %v3012 = vpop.f32.mrf.mxu0
    %v3013 = vadd.f32 %v2732, %v3012
    %3014 = vmatmul.f32.gmra.mxu0 %v2807
    %v3015 = vpop.f32.mrf.mxu0
    %v3016 = vadd.f32 %v2732, %v3015
    %3017 = vmatmul.f32.gmra.mxu0 %v2810
    %v3018 = vpop.f32.mrf.mxu0
    %v3019 = vadd.f32 %v2732, %v3018
    %3020 = vmatmul.f32.gmra.mxu0 %v2813
    %v3021 = vpop.f32.mrf.mxu0
    %v3022 = vadd.f32 %v2732, %v3021
    %3023 = vmatmul.f32.gmra.mxu0 %v2816
    %v3024 = vpop.f32.mrf.mxu0
    %v3025 = vadd.f32 %v2732, %v3024
    %3026 = vmatmul.f32.gmra.mxu0 %v2819
    %v3027 = vpop.f32.mrf.mxu0
    %v3028 = vadd.f32 %v2732, %v3027
    %3029 = vmatmul.f32.gmra.mxu0 %v2822
    %v3030 = vpop.f32.mrf.mxu0
    %v3031 = vadd.f32 %v2732, %v3030
    %3032 = vmatmul.f32.gmra.mxu0 %v2825
    %v3033 = vpop.f32.mrf.mxu0
    %v3034 = vadd.f32 %v2732, %v3033
    %3035 = vmatmul.f32.gmra.mxu0 %v2828
    %v3036 = vpop.f32.mrf.mxu0
    %v3037 = vadd.f32 %v2732, %v3036
    %3038 = vmatmul.f32.gmra.mxu0 %v2831
    %v3039 = vpop.f32.mrf.mxu0
    %v3040 = vadd.f32 %v2732, %v3039
    %3041 = vmatmul.f32.gmra.mxu0 %v2834
    %v3042 = vpop.f32.mrf.mxu0
    %v3043 = vadd.f32 %v2732, %v3042
    %3044 = vmatmul.f32.gmra.mxu0 %v2837
    %v3045 = vpop.f32.mrf.mxu0
    %v3046 = vadd.f32 %v2732, %v3045
    %3047 = vmatmul.f32.gmra.mxu0 %v2840
    %v3048 = vpop.f32.mrf.mxu0
    %v3049 = vadd.f32 %v2732, %v3048
    %3050 = vmatmul.f32.gmra.mxu0 %v2843
    %v3051 = vpop.f32.mrf.mxu0
    %v3052 = vadd.f32 %v2732, %v3051
    %3053 = vmatmul.f32.gmra.mxu0 %v2846
    %v3054 = vpop.f32.mrf.mxu0
    %v3055 = vadd.f32 %v2732, %v3054
    %3056 = vmatmul.f32.gmra.mxu0 %v2849
    %v3057 = vpop.f32.mrf.mxu0
    %v3058 = vadd.f32 %v2732, %v3057
    %3059 = vmatmul.f32.gmra.mxu0 %v2852
    %v3060 = vpop.f32.mrf.mxu0
    %v3061 = vadd.f32 %v2732, %v3060
    %3062 = vmatmul.f32.gmra.mxu0 %v2855
    %v3063 = vpop.f32.mrf.mxu0
    %v3064 = vadd.f32 %v2732, %v3063
    %3065 = vmatmul.f32.gmra.mxu0 %v2858
    %v3066 = vpop.f32.mrf.mxu0
    %v3067 = vadd.f32 %v2732, %v3066
    %3068 = vmatmul.f32.gmra.mxu0 %v2861
    %v3069 = vpop.f32.mrf.mxu0
    %v3070 = vadd.f32 %v2732, %v3069
    %3071 = vmatmul.f32.gmra.mxu0 %v2864
    %v3072 = vpop.f32.mrf.mxu0
    %v3073 = vadd.f32 %v2732, %v3072
    %3074 = vmatmul.f32.gmra.mxu0 %v2867
    %v3075 = vpop.f32.mrf.mxu0
    %v3076 = vadd.f32 %v2732, %v3075
    %3077 = vmatmul.f32.gmra.mxu0 %v2870
    %v3078 = vpop.f32.mrf.mxu0
    %v3079 = vadd.f32 %v2732, %v3078
    %3080 = vmatmul.f32.gmra.mxu0 %v2873
    %v3081 = vpop.f32.mrf.mxu0
    %v3082 = vadd.f32 %v2732, %v3081
    %3083 = vmatmul.f32.gmra.mxu0 %v2876
    %v3084 = vpop.f32.mrf.mxu0
    %v3085 = vadd.f32 %v2732, %v3084
    %3086 = vmatmul.f32.gmra.mxu0 %v2879
    %v3087 = vpop.f32.mrf.mxu0
    %v3088 = vadd.f32 %v2732, %v3087
    %3089 = vmatmul.f32.gmra.mxu0 %v2882
    %v3090 = vpop.f32.mrf.mxu0
    %v3091 = vadd.f32 %v2732, %v3090
    %3092 = vmatmul.f32.gmra.mxu0 %v2885
    %v3093 = vpop.f32.mrf.mxu0
    %v3094 = vadd.f32 %v2732, %v3093
    %3095 = vmatmul.f32.gmra.mxu0 %v2888
    %v3096 = vpop.f32.mrf.mxu0
    %v3097 = vadd.f32 %v2732, %v3096
    %3098 = vmatmul.f32.gmra.mxu0 %v2891
    %v3099 = vpop.f32.mrf.mxu0
    %v3100 = vadd.f32 %v2732, %v3099
    %3101 = vmatmul.f32.gmra.mxu0 %v2894
    %v3102 = vpop.f32.mrf.mxu0
    %v3103 = vadd.f32 %v2732, %v3102
    %3104 = vmatmul.f32.gmra.mxu0 %v2897
    %v3105 = vpop.f32.mrf.mxu0
    %v3106 = vadd.f32 %v2732, %v3105
    %3107 = vmatmul.f32.gmra.mxu0 %v2900
    %v3108 = vpop.f32.mrf.mxu0
    %v3109 = vadd.f32 %v2732, %v3108
    %3110 = vmatmul.f32.gmra.mxu0 %v2903
    %v3111 = vpop.f32.mrf.mxu0
    %v3112 = vadd.f32 %v2732, %v3111
    %3113 = vmatmul.f32.gmra.mxu0 %v2906
    %v3114 = vpop.f32.mrf.mxu0
    %v3115 = vadd.f32 %v2732, %v3114
    %3116 = vmatmul.f32.gmra.mxu0 %v2909
    %v3117 = vpop.f32.mrf.mxu0
    %v3118 = vadd.f32 %v2732, %v3117
    %3119 = vmatmul.f32.gmra.mxu0 %v2912
    %v3120 = vpop.f32.mrf.mxu0
    %v3121 = vadd.f32 %v2732, %v3120
    %3122 = vmatmul.f32.gmra.mxu0 %v2915
    %v3123 = vpop.f32.mrf.mxu0
    %v3124 = vadd.f32 %v2732, %v3123
    %3125 = vmatmul.f32.gmra.mxu0 %v2918
    %v3126 = vpop.f32.mrf.mxu0
    %v3127 = vadd.f32 %v2732, %v3126
    %3128 = vmatmul.f32.gmra.mxu0 %v2921
    %v3129 = vpop.f32.mrf.mxu0
    %v3130 = vadd.f32 %v2732, %v3129
    %3131 = vmatmul.f32.gmra.mxu0 %v2924
    %v3132 = vpop.f32.mrf.mxu0
    %v3133 = vadd.f32 %v2732, %v3132
    %3134 = vdwg.mxu0
    %v3135 = vmax.f32 %v2944, 0.0
    %v3136 = vmax.f32 %v2947, 0.0
    %v3137 = vmax.f32 %v2950, 0.0
    %v3138 = vmax.f32 %v2953, 0.0
    %v3139 = vmax.f32 %v2956, 0.0
    %v3140 = vmax.f32 %v2959, 0.0
    %v3141 = vmax.f32 %v2962, 0.0
    %v3142 = vmax.f32 %v2965, 0.0
    %v3143 = vmax.f32 %v2968, 0.0
    %v3144 = vmax.f32 %v2971, 0.0
    %v3145 = vmax.f32 %v2974, 0.0
    %v3146 = vmax.f32 %v2977, 0.0
    %v3147 = vmax.f32 %v2980, 0.0
    %v3148 = vmax.f32 %v2983, 0.0
    %v3149 = vmax.f32 %v2986, 0.0
    %v3150 = vmax.f32 %v2989, 0.0
    %v3151 = vmax.f32 %v2992, 0.0
    %v3152 = vmax.f32 %v2995, 0.0
    %v3153 = vmax.f32 %v2998, 0.0
    %v3154 = vmax.f32 %v3001, 0.0
    %v3155 = vmax.f32 %v3004, 0.0
    %v3156 = vmax.f32 %v3007, 0.0
    %v3157 = vmax.f32 %v3010, 0.0
    %v3158 = vmax.f32 %v3013, 0.0
    %v3159 = vmax.f32 %v3016, 0.0
    %v3160 = vmax.f32 %v3019, 0.0
    %v3161 = vmax.f32 %v3022, 0.0
    %v3162 = vmax.f32 %v3025, 0.0
    %v3163 = vmax.f32 %v3028, 0.0
    %v3164 = vmax.f32 %v3031, 0.0
    %v3165 = vmax.f32 %v3034, 0.0
    %v3166 = vmax.f32 %v3037, 0.0
    %v3167 = vmax.f32 %v3040, 0.0
    %v3168 = vmax.f32 %v3043, 0.0
    %v3169 = vmax.f32 %v3046, 0.0
    %v3170 = vmax.f32 %v3049, 0.0
    %v3171 = vmax.f32 %v3052, 0.0
    %v3172 = vmax.f32 %v3055, 0.0
    %v3173 = vmax.f32 %v3058, 0.0
    %v3174 = vmax.f32 %v3061, 0.0
    %v3175 = vmax.f32 %v3064, 0.0
    %v3176 = vmax.f32 %v3067, 0.0
    %v3177 = vmax.f32 %v3070, 0.0
    %v3178 = vmax.f32 %v3073, 0.0
    %v3179 = vmax.f32 %v3076, 0.0
    %v3180 = vmax.f32 %v3079, 0.0
    %v3181 = vmax.f32 %v3082, 0.0
    %v3182 = vmax.f32 %v3085, 0.0
    %v3183 = vmax.f32 %v3088, 0.0
    %v3184 = vmax.f32 %v3091, 0.0
    %v3185 = vmax.f32 %v3094, 0.0
    %v3186 = vmax.f32 %v3097, 0.0
    %v3187 = vmax.f32 %v3100, 0.0
    %v3188 = vmax.f32 %v3103, 0.0
    %v3189 = vmax.f32 %v3106, 0.0
    %v3190 = vmax.f32 %v3109, 0.0
    %v3191 = vmax.f32 %v3112, 0.0
    %v3192 = vmax.f32 %v3115, 0.0
    %v3193 = vmax.f32 %v3118, 0.0
    %v3194 = vmax.f32 %v3121, 0.0
    %v3195 = vmax.f32 %v3124, 0.0
    %v3196 = vmax.f32 %v3127, 0.0
    %v3197 = vmax.f32 %v3130, 0.0
    %v3198 = vmax.f32 %v3133, 0.0
    %v3199 = vadd.f32 %v3135, %v2660
    %v3200 = vadd.f32 %v3136, %v2661
    %v3201 = vadd.f32 %v3137, %v2662
    %v3202 = vadd.f32 %v3138, %v2663
    %v3203 = vadd.f32 %v3139, %v2664
    %v3204 = vadd.f32 %v3140, %v2665
    %v3205 = vadd.f32 %v3141, %v2666
    %v3206 = vadd.f32 %v3142, %v2667
    %v3207 = vadd.f32 %v3143, %v2668
    %v3208 = vadd.f32 %v3144, %v2669
    %v3209 = vadd.f32 %v3145, %v2670
    %v3210 = vadd.f32 %v3146, %v2671
    %v3211 = vadd.f32 %v3147, %v2672
    %v3212 = vadd.f32 %v3148, %v2673
    %v3213 = vadd.f32 %v3149, %v2674
    %v3214 = vadd.f32 %v3150, %v2675
    %v3215 = vadd.f32 %v3151, %v2676
    %v3216 = vadd.f32 %v3152, %v2677
    %v3217 = vadd.f32 %v3153, %v2678
    %v3218 = vadd.f32 %v3154, %v2679
    %v3219 = vadd.f32 %v3155, %v2680
    %v3220 = vadd.f32 %v3156, %v2681
    %v3221 = vadd.f32 %v3157, %v2682
    %v3222 = vadd.f32 %v3158, %v2683
    %v3223 = vadd.f32 %v3159, %v2684
    %v3224 = vadd.f32 %v3160, %v2685
    %v3225 = vadd.f32 %v3161, %v2686
    %v3226 = vadd.f32 %v3162, %v2687
    %v3227 = vadd.f32 %v3163, %v2688
    %v3228 = vadd.f32 %v3164, %v2689
    %v3229 = vadd.f32 %v3165, %v2690
    %v3230 = vadd.f32 %v3166, %v2691
    %v3231 = vadd.f32 %v3167, %v2692
    %v3232 = vadd.f32 %v3168, %v2693
    %v3233 = vadd.f32 %v3169, %v2694
    %v3234 = vadd.f32 %v3170, %v2695
    %v3235 = vadd.f32 %v3171, %v2696
    %v3236 = vadd.f32 %v3172, %v2697
    %v3237 = vadd.f32 %v3173, %v2698
    %v3238 = vadd.f32 %v3174, %v2699
    %v3239 = vadd.f32 %v3175, %v2700
    %v3240 = vadd.f32 %v3176, %v2701
    %v3241 = vadd.f32 %v3177, %v2702
    %v3242 = vadd.f32 %v3178, %v2703
    %v3243 = vadd.f32 %v3179, %v2704
    %v3244 = vadd.f32 %v3180, %v2705
    %v3245 = vadd.f32 %v3181, %v2706
    %v3246 = vadd.f32 %v3182, %v2707
    %v3247 = vadd.f32 %v3183, %v2708
    %v3248 = vadd.f32 %v3184, %v2709
    %v3249 = vadd.f32 %v3185, %v2710
    %v3250 = vadd.f32 %v3186, %v2711
    %v3251 = vadd.f32 %v3187, %v2712
    %v3252 = vadd.f32 %v3188, %v2713
    %v3253 = vadd.f32 %v3189, %v2714
    %v3254 = vadd.f32 %v3190, %v2715
    %v3255 = vadd.f32 %v3191, %v2716
    %v3256 = vadd.f32 %v3192, %v2717
    %v3257 = vadd.f32 %v3193, %v2718
    %v3258 = vadd.f32 %v3194, %v2719
    %v3259 = vadd.f32 %v3195, %v2720
    %v3260 = vadd.f32 %v3196, %v2721
    %v3261 = vadd.f32 %v3197, %v2722
    %v3262 = vadd.f32 %v3198, %v2723
    %v3263 = vld [vmem:[%s5] sm:$0xff]
    %v3264 = vld [vmem:[%s5 + $0x8] sm:$0xff]
    %v3265 = vld [vmem:[%s5 + $0x10] sm:$0xff]
    %v3266 = vld [vmem:[%s5 + $0x18] sm:$0xff]
    %v3267 = vld [vmem:[%s6] sm:$0x1]
    %v3269 = vperm.slane %v3267, 0
    %v3272 = vsel %vm577, %v3199, 0
    %v3275 = vsel %vm577, %v3200, 0
    %v3278 = vsel %vm577, %v3201, 0
    %v3281 = vsel %vm577, %v3202, 0
    %v3284 = vsel %vm577, %v3203, 0
    %v3287 = vsel %vm577, %v3204, 0
    %v3290 = vsel %vm577, %v3205, 0
    %v3293 = vsel %vm577, %v3206, 0
    %v3296 = vsel %vm577, %v3207, 0
    %v3299 = vsel %vm577, %v3208, 0
    %v3302 = vsel %vm577, %v3209, 0
    %v3305 = vsel %vm577, %v3210, 0
    %v3308 = vsel %vm577, %v3211, 0
    %v3311 = vsel %vm577, %v3212, 0
    %v3314 = vsel %vm577, %v3213, 0
    %v3317 = vsel %vm577, %v3214, 0
    %v3320 = vsel %vm577, %v3215, 0
    %v3323 = vsel %vm577, %v3216, 0
    %v3326 = vsel %vm577, %v3217, 0
    %v3329 = vsel %vm577, %v3218, 0
    %v3332 = vsel %vm577, %v3219, 0
    %v3335 = vsel %vm577, %v3220, 0
    %v3338 = vsel %vm577, %v3221, 0
    %v3341 = vsel %vm577, %v3222, 0
    %v3344 = vsel %vm577, %v3223, 0
    %v3347 = vsel %vm577, %v3224, 0
    %v3350 = vsel %vm577, %v3225, 0
    %v3353 = vsel %vm577, %v3226, 0
    %v3356 = vsel %vm577, %v3227, 0
    %v3359 = vsel %vm577, %v3228, 0
    %v3362 = vsel %vm577, %v3229, 0
    %v3365 = vsel %vm577, %v3230, 0
    %v3368 = vsel %vm577, %v3231, 0
    %v3371 = vsel %vm577, %v3232, 0
    %v3374 = vsel %vm577, %v3233, 0
    %v3377 = vsel %vm577, %v3234, 0
    %v3380 = vsel %vm577, %v3235, 0
    %v3383 = vsel %vm577, %v3236, 0
    %v3386 = vsel %vm577, %v3237, 0
    %v3389 = vsel %vm577, %v3238, 0
    %v3392 = vsel %vm577, %v3239, 0
    %v3395 = vsel %vm577, %v3240, 0
    %v3398 = vsel %vm577, %v3241, 0
    %v3401 = vsel %vm577, %v3242, 0
    %v3404 = vsel %vm577, %v3243, 0
    %v3407 = vsel %vm577, %v3244, 0
    %v3410 = vsel %vm577, %v3245, 0
    %v3413 = vsel %vm577, %v3246, 0
    %v3416 = vsel %vm577, %v3247, 0
    %v3419 = vsel %vm577, %v3248, 0
    %v3422 = vsel %vm577, %v3249, 0
    %v3425 = vsel %vm577, %v3250, 0
    %v3428 = vsel %vm577, %v3251, 0
    %v3431 = vsel %vm577, %v3252, 0
    %v3434 = vsel %vm577, %v3253, 0
    %v3437 = vsel %vm577, %v3254, 0
    %v3440 = vsel %vm577, %v3255, 0
    %v3443 = vsel %vm577, %v3256, 0
    %v3446 = vsel %vm577, %v3257, 0
    %v3449 = vsel %vm577, %v3258, 0
    %v3452 = vsel %vm577, %v3259, 0
    %v3455 = vsel %vm577, %v3260, 0
    %v3458 = vsel %vm577, %v3261, 0
    %v3461 = vsel %vm577, %v3262, 0
    %3463 = vmatpush.msra.mxu0 0.0
    %3464 = vmatpush.msra.mxu0 0.0
    %3465 = vmatpush.msra.mxu0 0.0
    %3466 = vmatpush.msra.mxu0 0.0
    %3467 = vmatpush.msra.mxu0 0.0
    %3468 = vmatpush.msra.mxu0 0.0
    %3469 = vmatpush.msra.mxu0 0.0
    %3470 = vmatpush.msra.mxu0 0.0
    %3471 = vmatpush.msra.mxu0 0.0
    %3472 = vmatpush.msra.mxu0 0.0
    %3473 = vmatpush.msra.mxu0 0.0
    %3474 = vmatpush.msra.mxu0 0.0
    %3475 = vmatpush.msra.mxu0 %v3266
    %3476 = vmatpush.msra.mxu0 %v3265
    %3477 = vmatpush.msra.mxu0 %v3264
    %3478 = vmatpush.msra.mxu0 %v3263
    %3479 = vmatmul.f32.gmra.mxu0 %v3272
    %v3480 = vpop.f32.mrf.mxu0
    %v3481 = vadd.f32 %v3269, %v3480
    %3482 = vmatmul.f32.gmra.mxu0 %v3275
    %v3483 = vpop.f32.mrf.mxu0
    %v3484 = vadd.f32 %v3269, %v3483
    %3485 = vmatmul.f32.gmra.mxu0 %v3278
    %v3486 = vpop.f32.mrf.mxu0
    %v3487 = vadd.f32 %v3269, %v3486
    %3488 = vmatmul.f32.gmra.mxu0 %v3281
    %v3489 = vpop.f32.mrf.mxu0
    %v3490 = vadd.f32 %v3269, %v3489
    %3491 = vmatmul.f32.gmra.mxu0 %v3284
    %v3492 = vpop.f32.mrf.mxu0
    %v3493 = vadd.f32 %v3269, %v3492
    %3494 = vmatmul.f32.gmra.mxu0 %v3287
    %v3495 = vpop.f32.mrf.mxu0
    %v3496 = vadd.f32 %v3269, %v3495
    %3497 = vmatmul.f32.gmra.mxu0 %v3290
    %v3498 = vpop.f32.mrf.mxu0
    %v3499 = vadd.f32 %v3269, %v3498
    %3500 = vmatmul.f32.gmra.mxu0 %v3293
    %v3501 = vpop.f32.mrf.mxu0
    %v3502 = vadd.f32 %v3269, %v3501
    %3503 = vmatmul.f32.gmra.mxu0 %v3296
    %v3504 = vpop.f32.mrf.mxu0
    %v3505 = vadd.f32 %v3269, %v3504
    %3506 = vmatmul.f32.gmra.mxu0 %v3299
    %v3507 = vpop.f32.mrf.mxu0
    %v3508 = vadd.f32 %v3269, %v3507
    %3509 = vmatmul.f32.gmra.mxu0 %v3302
    %v3510 = vpop.f32.mrf.mxu0
    %v3511 = vadd.f32 %v3269, %v3510
    %3512 = vmatmul.f32.gmra.mxu0 %v3305
    %v3513 = vpop.f32.mrf.mxu0
    %v3514 = vadd.f32 %v3269, %v3513
    %3515 = vmatmul.f32.gmra.mxu0 %v3308
    %v3516 = vpop.f32.mrf.mxu0
    %v3517 = vadd.f32 %v3269, %v3516
    %3518 = vmatmul.f32.gmra.mxu0 %v3311
    %v3519 = vpop.f32.mrf.mxu0
    %v3520 = vadd.f32 %v3269, %v3519
    %3521 = vmatmul.f32.gmra.mxu0 %v3314
    %v3522 = vpop.f32.mrf.mxu0
    %v3523 = vadd.f32 %v3269, %v3522
    %3524 = vmatmul.f32.gmra.mxu0 %v3317
    %v3525 = vpop.f32.mrf.mxu0
    %v3526 = vadd.f32 %v3269, %v3525
    %3527 = vmatmul.f32.gmra.mxu0 %v3320
    %v3528 = vpop.f32.mrf.mxu0
    %v3529 = vadd.f32 %v3269, %v3528
    %3530 = vmatmul.f32.gmra.mxu0 %v3323
    %v3531 = vpop.f32.mrf.mxu0
    %v3532 = vadd.f32 %v3269, %v3531
    %3533 = vmatmul.f32.gmra.mxu0 %v3326
    %v3534 = vpop.f32.mrf.mxu0
    %v3535 = vadd.f32 %v3269, %v3534
    %3536 = vmatmul.f32.gmra.mxu0 %v3329
    %v3537 = vpop.f32.mrf.mxu0
    %v3538 = vadd.f32 %v3269, %v3537
    %3539 = vmatmul.f32.gmra.mxu0 %v3332
    %v3540 = vpop.f32.mrf.mxu0
    %v3541 = vadd.f32 %v3269, %v3540
    %3542 = vmatmul.f32.gmra.mxu0 %v3335
    %v3543 = vpop.f32.mrf.mxu0
    %v3544 = vadd.f32 %v3269, %v3543
    %3545 = vmatmul.f32.gmra.mxu0 %v3338
    %v3546 = vpop.f32.mrf.mxu0
    %v3547 = vadd.f32 %v3269, %v3546
    %3548 = vmatmul.f32.gmra.mxu0 %v3341
    %v3549 = vpop.f32.mrf.mxu0
    %v3550 = vadd.f32 %v3269, %v3549
    %3551 = vmatmul.f32.gmra.mxu0 %v3344
    %v3552 = vpop.f32.mrf.mxu0
    %v3553 = vadd.f32 %v3269, %v3552
    %3554 = vmatmul.f32.gmra.mxu0 %v3347
    %v3555 = vpop.f32.mrf.mxu0
    %v3556 = vadd.f32 %v3269, %v3555
    %3557 = vmatmul.f32.gmra.mxu0 %v3350
    %v3558 = vpop.f32.mrf.mxu0
    %v3559 = vadd.f32 %v3269, %v3558
    %3560 = vmatmul.f32.gmra.mxu0 %v3353
    %v3561 = vpop.f32.mrf.mxu0
    %v3562 = vadd.f32 %v3269, %v3561
    %3563 = vmatmul.f32.gmra.mxu0 %v3356
    %v3564 = vpop.f32.mrf.mxu0
    %v3565 = vadd.f32 %v3269, %v3564
    %3566 = vmatmul.f32.gmra.mxu0 %v3359
    %v3567 = vpop.f32.mrf.mxu0
    %v3568 = vadd.f32 %v3269, %v3567
    %3569 = vmatmul.f32.gmra.mxu0 %v3362
    %v3570 = vpop.f32.mrf.mxu0
    %v3571 = vadd.f32 %v3269, %v3570
    %3572 = vmatmul.f32.gmra.mxu0 %v3365
    %v3573 = vpop.f32.mrf.mxu0
    %v3574 = vadd.f32 %v3269, %v3573
    %3575 = vmatmul.f32.gmra.mxu0 %v3368
    %v3576 = vpop.f32.mrf.mxu0
    %v3577 = vadd.f32 %v3269, %v3576
    %3578 = vmatmul.f32.gmra.mxu0 %v3371
    %v3579 = vpop.f32.mrf.mxu0
    %v3580 = vadd.f32 %v3269, %v3579
    %3581 = vmatmul.f32.gmra.mxu0 %v3374
    %v3582 = vpop.f32.mrf.mxu0
    %v3583 = vadd.f32 %v3269, %v3582
    %3584 = vmatmul.f32.gmra.mxu0 %v3377
    %v3585 = vpop.f32.mrf.mxu0
    %v3586 = vadd.f32 %v3269, %v3585
    %3587 = vmatmul.f32.gmra.mxu0 %v3380
    %v3588 = vpop.f32.mrf.mxu0
    %v3589 = vadd.f32 %v3269, %v3588
    %3590 = vmatmul.f32.gmra.mxu0 %v3383
    %v3591 = vpop.f32.mrf.mxu0
    %v3592 = vadd.f32 %v3269, %v3591
    %3593 = vmatmul.f32.gmra.mxu0 %v3386
    %v3594 = vpop.f32.mrf.mxu0
    %v3595 = vadd.f32 %v3269, %v3594
    %3596 = vmatmul.f32.gmra.mxu0 %v3389
    %v3597 = vpop.f32.mrf.mxu0
    %v3598 = vadd.f32 %v3269, %v3597
    %3599 = vmatmul.f32.gmra.mxu0 %v3392
    %v3600 = vpop.f32.mrf.mxu0
    %v3601 = vadd.f32 %v3269, %v3600
    %3602 = vmatmul.f32.gmra.mxu0 %v3395
    %v3603 = vpop.f32.mrf.mxu0
    %v3604 = vadd.f32 %v3269, %v3603
    %3605 = vmatmul.f32.gmra.mxu0 %v3398
    %v3606 = vpop.f32.mrf.mxu0
    %v3607 = vadd.f32 %v3269, %v3606
    %3608 = vmatmul.f32.gmra.mxu0 %v3401
    %v3609 = vpop.f32.mrf.mxu0
    %v3610 = vadd.f32 %v3269, %v3609
    %3611 = vmatmul.f32.gmra.mxu0 %v3404
    %v3612 = vpop.f32.mrf.mxu0
    %v3613 = vadd.f32 %v3269, %v3612
    %3614 = vmatmul.f32.gmra.mxu0 %v3407
    %v3615 = vpop.f32.mrf.mxu0
    %v3616 = vadd.f32 %v3269, %v3615
    %3617 = vmatmul.f32.gmra.mxu0 %v3410
    %v3618 = vpop.f32.mrf.mxu0
    %v3619 = vadd.f32 %v3269, %v3618
    %3620 = vmatmul.f32.gmra.mxu0 %v3413
    %v3621 = vpop.f32.mrf.mxu0
    %v3622 = vadd.f32 %v3269, %v3621
    %3623 = vmatmul.f32.gmra.mxu0 %v3416
    %v3624 = vpop.f32.mrf.mxu0
    %v3625 = vadd.f32 %v3269, %v3624
    %3626 = vmatmul.f32.gmra.mxu0 %v3419
    %v3627 = vpop.f32.mrf.mxu0
    %v3628 = vadd.f32 %v3269, %v3627
    %3629 = vmatmul.f32.gmra.mxu0 %v3422
    %v3630 = vpop.f32.mrf.mxu0
    %v3631 = vadd.f32 %v3269, %v3630
    %3632 = vmatmul.f32.gmra.mxu0 %v3425
    %v3633 = vpop.f32.mrf.mxu0
    %v3634 = vadd.f32 %v3269, %v3633
    %3635 = vmatmul.f32.gmra.mxu0 %v3428
    %v3636 = vpop.f32.mrf.mxu0
    %v3637 = vadd.f32 %v3269, %v3636
    %3638 = vmatmul.f32.gmra.mxu0 %v3431
    %v3639 = vpop.f32.mrf.mxu0
    %v3640 = vadd.f32 %v3269, %v3639
    %3641 = vmatmul.f32.gmra.mxu0 %v3434
    %v3642 = vpop.f32.mrf.mxu0
    %v3643 = vadd.f32 %v3269, %v3642
    %3644 = vmatmul.f32.gmra.mxu0 %v3437
    %v3645 = vpop.f32.mrf.mxu0
    %v3646 = vadd.f32 %v3269, %v3645
    %3647 = vmatmul.f32.gmra.mxu0 %v3440
    %v3648 = vpop.f32.mrf.mxu0
    %v3649 = vadd.f32 %v3269, %v3648
    %3650 = vmatmul.f32.gmra.mxu0 %v3443
    %v3651 = vpop.f32.mrf.mxu0
    %v3652 = vadd.f32 %v3269, %v3651
    %3653 = vmatmul.f32.gmra.mxu0 %v3446
    %v3654 = vpop.f32.mrf.mxu0
    %v3655 = vadd.f32 %v3269, %v3654
    %3656 = vmatmul.f32.gmra.mxu0 %v3449
    %v3657 = vpop.f32.mrf.mxu0
    %v3658 = vadd.f32 %v3269, %v3657
    %3659 = vmatmul.f32.gmra.mxu0 %v3452
    %v3660 = vpop.f32.mrf.mxu0
    %v3661 = vadd.f32 %v3269, %v3660
    %3662 = vmatmul.f32.gmra.mxu0 %v3455
    %v3663 = vpop.f32.mrf.mxu0
    %v3664 = vadd.f32 %v3269, %v3663
    %3665 = vmatmul.f32.gmra.mxu0 %v3458
    %v3666 = vpop.f32.mrf.mxu0
    %v3667 = vadd.f32 %v3269, %v3666
    %3668 = vmatmul.f32.gmra.mxu0 %v3461
    %v3669 = vpop.f32.mrf.mxu0
    %v3670 = vadd.f32 %v3269, %v3669
    %3671 = vdwg.mxu0
    %vm3672 = vcmask 523264
    %3673 = vst.msk [vmem:[#allocation4] sm:$0xff] %vm3672, %v3481
    %3674 = vst.msk [vmem:[#allocation4 + $0x8] sm:$0xff] %vm3672, %v3484
    %3675 = vst.msk [vmem:[#allocation4 + $0x10] sm:$0xff] %vm3672, %v3487
    %3676 = vst.msk [vmem:[#allocation4 + $0x18] sm:$0xff] %vm3672, %v3490
    %3677 = vst.msk [vmem:[#allocation4 + $0x20] sm:$0xff] %vm3672, %v3493
    %3678 = vst.msk [vmem:[#allocation4 + $0x28] sm:$0xff] %vm3672, %v3496
    %3679 = vst.msk [vmem:[#allocation4 + $0x30] sm:$0xff] %vm3672, %v3499
    %3680 = vst.msk [vmem:[#allocation4 + $0x38] sm:$0xff] %vm3672, %v3502
    %3681 = vst.msk [vmem:[#allocation4 + $0x40] sm:$0xff] %vm3672, %v3505
    %3682 = vst.msk [vmem:[#allocation4 + $0x48] sm:$0xff] %vm3672, %v3508
    %3683 = vst.msk [vmem:[#allocation4 + $0x50] sm:$0xff] %vm3672, %v3511
    %3684 = vst.msk [vmem:[#allocation4 + $0x58] sm:$0xff] %vm3672, %v3514
    %3685 = vst.msk [vmem:[#allocation4 + $0x60] sm:$0xff] %vm3672, %v3517
    %3686 = vst.msk [vmem:[#allocation4 + $0x68] sm:$0xff] %vm3672, %v3520
    %3687 = vst.msk [vmem:[#allocation4 + $0x70] sm:$0xff] %vm3672, %v3523
    %3688 = vst.msk [vmem:[#allocation4 + $0x78] sm:$0xff] %vm3672, %v3526
    %3689 = vst.msk [vmem:[#allocation4 + $0x80] sm:$0xff] %vm3672, %v3529
    %3690 = vst.msk [vmem:[#allocation4 + $0x88] sm:$0xff] %vm3672, %v3532
    %3691 = vst.msk [vmem:[#allocation4 + $0x90] sm:$0xff] %vm3672, %v3535
    %3692 = vst.msk [vmem:[#allocation4 + $0x98] sm:$0xff] %vm3672, %v3538
    %3693 = vst.msk [vmem:[#allocation4 + $0xa0] sm:$0xff] %vm3672, %v3541
    %3694 = vst.msk [vmem:[#allocation4 + $0xa8] sm:$0xff] %vm3672, %v3544
    %3695 = vst.msk [vmem:[#allocation4 + $0xb0] sm:$0xff] %vm3672, %v3547
    %3696 = vst.msk [vmem:[#allocation4 + $0xb8] sm:$0xff] %vm3672, %v3550
    %3697 = vst.msk [vmem:[#allocation4 + $0xc0] sm:$0xff] %vm3672, %v3553
    %3698 = vst.msk [vmem:[#allocation4 + $0xc8] sm:$0xff] %vm3672, %v3556
    %3699 = vst.msk [vmem:[#allocation4 + $0xd0] sm:$0xff] %vm3672, %v3559
    %3700 = vst.msk [vmem:[#allocation4 + $0xd8] sm:$0xff] %vm3672, %v3562
    %3701 = vst.msk [vmem:[#allocation4 + $0xe0] sm:$0xff] %vm3672, %v3565
    %3702 = vst.msk [vmem:[#allocation4 + $0xe8] sm:$0xff] %vm3672, %v3568
    %3703 = vst.msk [vmem:[#allocation4 + $0xf0] sm:$0xff] %vm3672, %v3571
    %3704 = vst.msk [vmem:[#allocation4 + $0xf8] sm:$0xff] %vm3672, %v3574
    %3705 = vst.msk [vmem:[#allocation4 + $0x100] sm:$0xff] %vm3672, %v3577
    %3706 = vst.msk [vmem:[#allocation4 + $0x108] sm:$0xff] %vm3672, %v3580
    %3707 = vst.msk [vmem:[#allocation4 + $0x110] sm:$0xff] %vm3672, %v3583
    %3708 = vst.msk [vmem:[#allocation4 + $0x118] sm:$0xff] %vm3672, %v3586
    %3709 = vst.msk [vmem:[#allocation4 + $0x120] sm:$0xff] %vm3672, %v3589
    %3710 = vst.msk [vmem:[#allocation4 + $0x128] sm:$0xff] %vm3672, %v3592
    %3711 = vst.msk [vmem:[#allocation4 + $0x130] sm:$0xff] %vm3672, %v3595
    %3712 = vst.msk [vmem:[#allocation4 + $0x138] sm:$0xff] %vm3672, %v3598
    %3713 = vst.msk [vmem:[#allocation4 + $0x140] sm:$0xff] %vm3672, %v3601
    %3714 = vst.msk [vmem:[#allocation4 + $0x148] sm:$0xff] %vm3672, %v3604
    %3715 = vst.msk [vmem:[#allocation4 + $0x150] sm:$0xff] %vm3672, %v3607
    %3716 = vst.msk [vmem:[#allocation4 + $0x158] sm:$0xff] %vm3672, %v3610
    %3717 = vst.msk [vmem:[#allocation4 + $0x160] sm:$0xff] %vm3672, %v3613
    %3718 = vst.msk [vmem:[#allocation4 + $0x168] sm:$0xff] %vm3672, %v3616
    %3719 = vst.msk [vmem:[#allocation4 + $0x170] sm:$0xff] %vm3672, %v3619
    %3720 = vst.msk [vmem:[#allocation4 + $0x178] sm:$0xff] %vm3672, %v3622
    %3721 = vst.msk [vmem:[#allocation4 + $0x180] sm:$0xff] %vm3672, %v3625
    %3722 = vst.msk [vmem:[#allocation4 + $0x188] sm:$0xff] %vm3672, %v3628
    %3723 = vst.msk [vmem:[#allocation4 + $0x190] sm:$0xff] %vm3672, %v3631
    %3724 = vst.msk [vmem:[#allocation4 + $0x198] sm:$0xff] %vm3672, %v3634
    %3725 = vst.msk [vmem:[#allocation4 + $0x1a0] sm:$0xff] %vm3672, %v3637
    %3726 = vst.msk [vmem:[#allocation4 + $0x1a8] sm:$0xff] %vm3672, %v3640
    %3727 = vst.msk [vmem:[#allocation4 + $0x1b0] sm:$0xff] %vm3672, %v3643
    %3728 = vst.msk [vmem:[#allocation4 + $0x1b8] sm:$0xff] %vm3672, %v3646
    %3729 = vst.msk [vmem:[#allocation4 + $0x1c0] sm:$0xff] %vm3672, %v3649
    %3730 = vst.msk [vmem:[#allocation4 + $0x1c8] sm:$0xff] %vm3672, %v3652
    %3731 = vst.msk [vmem:[#allocation4 + $0x1d0] sm:$0xff] %vm3672, %v3655
    %3732 = vst.msk [vmem:[#allocation4 + $0x1d8] sm:$0xff] %vm3672, %v3658
    %3733 = vst.msk [vmem:[#allocation4 + $0x1e0] sm:$0xff] %vm3672, %v3661
    %3734 = vst.msk [vmem:[#allocation4 + $0x1e8] sm:$0xff] %vm3672, %v3664
    %3735 = vst.msk [vmem:[#allocation4 + $0x1f0] sm:$0xff] %vm3672, %v3667
    %3736 = vst.msk [vmem:[#allocation4 + $0x1f8] sm:$0xff] %vm3672, %v3670
    // Predicated region
    $region30: #{_forward_impl.1} parent=1 // pred_check
      _
    $region31: #{_forward_impl.1} parent=1 // pred_check_branch
      %3738 = sbr.rel (0) target = $region33
    $region32: #{_forward_impl.1} parent=1 // pred_region
      %3740 = vsyncadd [#allocation3], 0
      %s3741 = sshll.u32 [#allocation2], 4
      %s3742 = int_to_ptr.vmem [resolvable:$true] %s3741
      %s3743 = sshll.u32 %s7, 4
      %s3744 = int_to_ptr.hbm [resolvable:$true] %s3743
      %3749 = dma.vmem_to_hbm [thread:$0]  %s3742, 8192, %s3744, [#allocation3], 128, 128, 8
    $region33: #{_forward_impl.1} parent=1 // pred_fallthru
      _
    // Predicated region
    $region34: #{_forward_impl.1} parent=1 // pred_check
      _
    $region35: #{_forward_impl.1} parent=1 // pred_check_branch
      %3751 = sbr.rel (0) target = $region37
    $region36: #{_forward_impl.1} parent=1 // pred_region
      %3753 = vsyncadd [#allocation5], 0
      %s3754 = sshll.u32 [#allocation4], 4
      %s3755 = int_to_ptr.vmem [resolvable:$true] %s3754
      %s3756 = sshll.u32 %s8, 4
      %s3757 = int_to_ptr.hbm [resolvable:$true] %s3756
      %3762 = dma.vmem_to_hbm [thread:$0]  %s3755, 8192, %s3757, [#allocation5], 128, 128, 8
    $region37: #{_forward_impl.1} parent=1 // pred_fallthru
      _
    // Predicated region
    $region38: #{_forward_impl.1} parent=1 // pred_check
      _
    $region39: #{_forward_impl.1} parent=1 // pred_check_branch
      %3764 = sbr.rel (0) target = $region41
    $region40: #{_forward_impl.1} parent=1 // pred_region
      %3766 = dma.done [#allocation3], 8192
    $region41: #{_forward_impl.1} parent=1 // pred_fallthru
      _
    // Predicated region
    $region42: #{_forward_impl.1} parent=1 // pred_check
      _
    $region43: #{_forward_impl.1} parent=1 // pred_check_branch
      %3768 = sbr.rel (0) target = $region45
    $region44: #{_forward_impl.1} parent=1 // pred_region
      %3770 = dma.done [#allocation5], 8192
    $region45: #{_forward_impl.1} parent=1 // pred_fallthru
      _
    %3771 = vsyncpa [#allocation3], 1
    %3772 = vsyncpa [#allocation5], 1

</llo_original>
